<compile_context>
chip_gen: v6e
topology: v6e:2x2x1
jax: 0.10.0
libtpu: 0.0.40
codegen_flags: <defaults>
</compile_context>

<pallas_src>
import numpy as np
import jax
import jax.numpy as jnp
from jax.experimental import pallas as pl
from jax.experimental.pallas import tpu as pltpu


# ------------------------------ fused kernel --------------------------------

def _net_fused_kernel(
    x_ref,                        # (1, 28, 28)  packed input: rows=H, cols=W*Cin
    b1_ref, ss1_ref,              # conv1 bands (3, 28, 208),  scale/shift (2, 208)
    b2_ref, ss2_ref,              # conv2 bands (3, 208, 384), (2, 384)
    sw_ref, rh_ref,               # maxpool col/row selections (2, 384, 192), (2, 12, 24)
    t1_ref,                       # trans1 1x1-conv band (1, 192, 96)
    b3_ref, ss3_ref,              # conv3 bands (3, 96, 160),  (2, 160)
    b4_ref, ss4_ref,              # conv4 bands (3, 160, 128), (2, 128)
    b5_ref, ss5_ref,              # conv5 bands (3, 128, 96),  (2, 96)
    avg_ref, asum_ref,            # avgpool (1, 6)*1/36 and (96, 16) channel-sum
    w6_ref, ss6_ref,              # conv6 (16, 16), (2, 16)
    w7_ref,                       # conv7 (16, 10)
    o_ref,                        # (1, 1, 10) log-softmax output
    a1, at, a3, a4,               # VMEM activation scratch (for sliced reads)
):
    f32 = jnp.float32

    def band_conv(load, band_ref, kh, oh, relu, ss_ref):
        """Packed conv: out = sum_i load(i) @ band[i]; fused ReLU + BN affine."""
        acc = jnp.dot(load(0, oh), band_ref[0], preferred_element_type=f32)
        for i in range(1, kh):
            acc = acc + jnp.dot(load(i, oh), band_ref[i],
                                preferred_element_type=f32)
        if relu:
            acc = jnp.maximum(acc, 0.0)          # module order: Conv -> ReLU -> BN
        if ss_ref is not None:
            acc = acc * ss_ref[0:1, :] + ss_ref[1:2, :]
        return acc

    # conv1: (28, 28*1) -> (26, 26*8)
    a1[...] = band_conv(lambda i, oh: x_ref[0, i:i + oh, :],
                        b1_ref, 3, 26, True, ss1_ref)
    # conv2: (26, 26*8) -> (24, 24*16)
    x2 = band_conv(lambda i, oh: a1[i:i + oh, :], b2_ref, 3, 24, True, ss2_ref)
    # maxpool 2x2: (24, 24*16) -> (12, 12*16)  (0/1-selection matmuls + max)
    tw = jnp.maximum(jnp.dot(x2, sw_ref[0], preferred_element_type=f32),
                     jnp.dot(x2, sw_ref[1], preferred_element_type=f32))
    pooled_map = jnp.maximum(jnp.dot(rh_ref[0], tw, preferred_element_type=f32),
                             jnp.dot(rh_ref[1], tw, preferred_element_type=f32))
    # trans1 1x1 conv (no ReLU/BN): (12, 12*16) -> (12, 12*8)
    at[...] = jnp.dot(pooled_map, t1_ref[0], preferred_element_type=f32)
    # conv3..conv5
    a3[...] = band_conv(lambda i, oh: at[i:i + oh, :], b3_ref, 3, 10, True, ss3_ref)
    a4[...] = band_conv(lambda i, oh: a3[i:i + oh, :], b4_ref, 3, 8, True, ss4_ref)
    x5 = band_conv(lambda i, oh: a4[i:i + oh, :], b5_ref, 3, 6, True, ss5_ref)
    # global avg pool 6x6: (6, 6*16) -> (1, 16)
    rowsum = jnp.dot(avg_ref[...], x5, preferred_element_type=f32)      # (1, 96)
    pooled = jnp.dot(rowsum, asum_ref[...], preferred_element_type=f32)  # (1, 16)
    # conv6 1x1 + ReLU + BN
    y = jnp.maximum(jnp.dot(pooled, w6_ref[...], preferred_element_type=f32), 0.0)
    y = y * ss6_ref[0:1, :] + ss6_ref[1:2, :]
    # conv7 1x1 -> logits
    z = jnp.dot(y, w7_ref[...], preferred_element_type=f32)              # (1, 10)
    # log_softmax
    m = jnp.max(z, axis=-1, keepdims=True)
    s = z - m
    lse = jnp.log(jnp.sum(jnp.exp(s), axis=-1, keepdims=True))
    o_ref[0] = s - lse


# ------------------------- parameter preprocessing ---------------------------

def _band_matrices(w, w_in):
    """Banded (block-Toeplitz) matrices turning a conv into kh matmuls.

    Activation layout per sample: rows = h, cols = w*Cin + ci.
    out[oh, ow*Cout + co] = sum_i (act[oh+i, :] @ band[i])[ow*Cout + co].
    """
    w = np.asarray(w, np.float32)
    c_out, c_in, kh, kw = w.shape
    ow_out = w_in - kw + 1
    bands = np.zeros((kh, w_in * c_in, ow_out * c_out), np.float32)
    for i in range(kh):
        # w_i[j*Cin + ci, co] = w[co, ci, i, j]
        w_i = np.transpose(w[:, :, i, :], (2, 1, 0)).reshape(kw * c_in, c_out)
        for ow in range(ow_out):
            bands[i, ow * c_in: ow * c_in + kw * c_in,
                  ow * c_out:(ow + 1) * c_out] = w_i
    return jnp.asarray(bands)


def _maxpool_matrices(h_in, w_in, c):
    """0/1 selection matrices implementing MaxPool2d(2, 2) via matmul + max."""
    oh, ow_out = h_in // 2, w_in // 2
    sw = np.zeros((2, w_in * c, ow_out * c), np.float32)
    for dj in range(2):
        for ow in range(ow_out):
            for ch in range(c):
                sw[dj, (2 * ow + dj) * c + ch, ow * c + ch] = 1.0
    rh = np.zeros((2, oh, h_in), np.float32)
    for di in range(2):
        for o in range(oh):
            rh[di, o, 2 * o + di] = 1.0
    return jnp.asarray(sw), jnp.asarray(rh)


def _avg_matrices(hw, c):
    """AvgPool(kernel=hw) over an (hw, hw*c) packed map as two matmuls."""
    left = jnp.full((1, hw), 1.0 / (hw * hw), jnp.float32)
    right = np.zeros((hw * c, c), np.float32)
    for w in range(hw):
        for ch in range(c):
            right[w * c + ch, ch] = 1.0
    return left, jnp.asarray(right)


def _pack_scale_shift(scale, shift, ow):
    """Tile per-channel BN scale/shift to the packed (w*c) column layout."""
    return jnp.stack([jnp.tile(scale, ow), jnp.tile(shift, ow)], axis=0)


def _bn_fold(key, c, eps=1e-5):
    """Deterministic BN params folded to per-channel (scale, shift), eval mode."""
    k1, k2, k3, k4 = jax.random.split(key, 4)
    gamma = 1.0 + 0.1 * jax.random.normal(k1, (c,), jnp.float32)
    beta = 0.1 * jax.random.normal(k2, (c,), jnp.float32)
    running_mean = 0.1 * jax.random.normal(k3, (c,), jnp.float32)
    running_var = 1.0 + 0.1 * jnp.abs(jax.random.normal(k4, (c,), jnp.float32))
    scale = gamma / jnp.sqrt(running_var + eps)
    shift = beta - running_mean * scale
    return scale, shift


def init_params(key):
    ks = jax.random.split(key, 16)

    def w(k, shape):
        return 0.1 * jax.random.normal(k, shape, jnp.float32)

    params = {}
    params["conv1"] = (w(ks[0], (8, 1, 3, 3)),) + _bn_fold(ks[1], 8)
    params["conv2"] = (w(ks[2], (16, 8, 3, 3)),) + _bn_fold(ks[3], 16)
    params["trans1"] = (w(ks[4], (8, 16, 1, 1)),)      # 1x1 conv, no ReLU / BN
    params["conv3"] = (w(ks[5], (16, 8, 3, 3)),) + _bn_fold(ks[6], 16)
    params["conv4"] = (w(ks[7], (16, 16, 3, 3)),) + _bn_fold(ks[8], 16)
    params["conv5"] = (w(ks[9], (16, 16, 3, 3)),) + _bn_fold(ks[10], 16)
    params["conv6"] = (w(ks[11], (16, 16, 1, 1)),) + _bn_fold(ks[12], 16)
    params["conv7"] = (w(ks[13], (10, 16, 1, 1)),)     # 1x1 conv, no ReLU / BN
    return params


def prepare_params(params):
    """One-time conversion of PyTorch-layout weights to kernel-ready matrices."""
    w1, s1, b1 = params["conv1"]
    w2, s2, b2 = params["conv2"]
    (wt,) = params["trans1"]
    w3, s3, b3 = params["conv3"]
    w4, s4, b4 = params["conv4"]
    w5, s5, b5 = params["conv5"]
    w6, s6, b6 = params["conv6"]
    (w7,) = params["conv7"]

    sw, rh = _maxpool_matrices(24, 24, 16)
    avg_l, asum = _avg_matrices(6, 16)
    # TODO(synk): BN scale could be folded into the bands when scale>0 for every
    # channel; kept as an in-kernel affine so negative gamma stays correct.
    return (
        _band_matrices(w1, 28), _pack_scale_shift(s1, b1, 26),
        _band_matrices(w2, 26), _pack_scale_shift(s2, b2, 24),
        sw, rh,
        _band_matrices(wt, 12),
        _band_matrices(w3, 12), _pack_scale_shift(s3, b3, 10),
        _band_matrices(w4, 10), _pack_scale_shift(s4, b4, 8),
        _band_matrices(w5, 8), _pack_scale_shift(s5, b5, 6),
        avg_l, asum,
        jnp.asarray(w6, jnp.float32).reshape(16, 16).T, _pack_scale_shift(s6, b6, 1),
        jnp.asarray(w7, jnp.float32).reshape(10, 16).T,
    )


# ---------------------------------- forward ----------------------------------

@jax.jit
def net_forward(x, prep):
    """x: (N, 1, 28, 28) NCHW (matches PyTorch).  Returns (N, 10) log-probs."""
    n = x.shape[0]
    # NCHW -> packed per-sample layout: (N, H, W*C) with C=1.
    xp = jnp.transpose(x, (0, 2, 3, 1)).reshape(n, 28, 28)

    in_specs = [pl.BlockSpec((1, 28, 28), lambda i: (i, 0, 0))]
    in_specs += [pl.BlockSpec(p.shape, lambda i, _z=(0,) * p.ndim: _z)
                 for p in prep]

    out = pl.pallas_call(
        _net_fused_kernel,
        grid=(n,),
        out_shape=jax.ShapeDtypeStruct((n, 1, 10), jnp.float32),
        in_specs=in_specs,
        out_specs=pl.BlockSpec((1, 1, 10), lambda i: (i, 0, 0)),
        scratch_shapes=[
            pltpu.VMEM((26, 208), jnp.float32),   # conv1 out  (26, 26*8)
            pltpu.VMEM((12, 96), jnp.float32),    # trans1 out (12, 12*8)
            pltpu.VMEM((10, 160), jnp.float32),   # conv3 out  (10, 10*16)
            pltpu.VMEM((8, 128), jnp.float32),    # conv4 out  ( 8,  8*16)
        ],
        compiler_params=pltpu.CompilerParams(
            dimension_semantics=("parallel",)),
    )(xp, *prep)
    return out.reshape(n, 10)


if __name__ == "__main__":
    key = jax.random.PRNGKey(0)
    k_param, k_input = jax.random.split(key)
    params = init_params(k_param)
    prep = prepare_params(params)

    # 28x28 single-channel input (MNIST-like); 28 is required so that the
    # AvgPool2d(kernel_size=6) sees an exact 6x6 feature map.
    x = jax.random.normal(k_input, (2, 1, 28, 28), jnp.float32)

    out = jax.block_until_ready(net_forward(x, prep))

    assert out.shape == (2, 10)
    # log-softmax rows must sum (in prob space) to ~1
    assert bool(jnp.all(jnp.abs(jnp.sum(jnp.exp(out), axis=-1) - 1.0) < 1e-4))
    print("KERNEL_OK")
</pallas_src>

<mosaic_0001>
module attributes {stable_mosaic.version = 11 : i64} {
  func.func @_net_fused_kernel(%arg0: i32, %arg1: memref<1x28x28xf32, #tpu.memory_space<vmem>>, %arg2: memref<3x28x208xf32, #tpu.memory_space<vmem>>, %arg3: memref<2x208xf32, #tpu.memory_space<vmem>>, %arg4: memref<3x208x384xf32, #tpu.memory_space<vmem>>, %arg5: memref<2x384xf32, #tpu.memory_space<vmem>>, %arg6: memref<2x384x192xf32, #tpu.memory_space<vmem>>, %arg7: memref<2x12x24xf32, #tpu.memory_space<vmem>>, %arg8: memref<1x192x96xf32, #tpu.memory_space<vmem>>, %arg9: memref<3x96x160xf32, #tpu.memory_space<vmem>>, %arg10: memref<2x160xf32, #tpu.memory_space<vmem>>, %arg11: memref<3x160x128xf32, #tpu.memory_space<vmem>>, %arg12: memref<2x128xf32, #tpu.memory_space<vmem>>, %arg13: memref<3x128x96xf32, #tpu.memory_space<vmem>>, %arg14: memref<2x96xf32, #tpu.memory_space<vmem>>, %arg15: memref<1x6xf32, #tpu.memory_space<vmem>>, %arg16: memref<96x16xf32, #tpu.memory_space<vmem>>, %arg17: memref<16x16xf32, #tpu.memory_space<vmem>>, %arg18: memref<2x16xf32, #tpu.memory_space<vmem>>, %arg19: memref<16x10xf32, #tpu.memory_space<vmem>>, %arg20: memref<1x1x10xf32, #tpu.memory_space<vmem>>, %arg21: memref<26x208xf32, #tpu.memory_space<vmem>>, %arg22: memref<12x96xf32, #tpu.memory_space<vmem>>, %arg23: memref<10x160xf32, #tpu.memory_space<vmem>>, %arg24: memref<8x128xf32, #tpu.memory_space<vmem>>) attributes {dimension_semantics = [#tpu.dimension_semantics<parallel>], iteration_bounds = array<i64: 2>, scalar_prefetch = 0 : i64, scratch_operands = 4 : i64, tpu.core_type = #tpu.core_type<tc>, window_params = [{transform_indices = @transform_0, window_bounds = array<i64: 1, 28, 28>}, {pipeline_mode = #tpu.pipeline_mode<synchronous>, transform_indices = @transform_1, window_bounds = array<i64: 3, 28, 208>}, {pipeline_mode = #tpu.pipeline_mode<synchronous>, transform_indices = @transform_2, window_bounds = array<i64: 2, 208>}, {pipeline_mode = #tpu.pipeline_mode<synchronous>, transform_indices = @transform_3, window_bounds = array<i64: 3, 208, 384>}, {pipeline_mode = #tpu.pipeline_mode<synchronous>, transform_indices = @transform_4, window_bounds = array<i64: 2, 384>}, {pipeline_mode = #tpu.pipeline_mode<synchronous>, transform_indices = @transform_5, window_bounds = array<i64: 2, 384, 192>}, {pipeline_mode = #tpu.pipeline_mode<synchronous>, transform_indices = @transform_6, window_bounds = array<i64: 2, 12, 24>}, {pipeline_mode = #tpu.pipeline_mode<synchronous>, transform_indices = @transform_7, window_bounds = array<i64: 1, 192, 96>}, {pipeline_mode = #tpu.pipeline_mode<synchronous>, transform_indices = @transform_8, window_bounds = array<i64: 3, 96, 160>}, {pipeline_mode = #tpu.pipeline_mode<synchronous>, transform_indices = @transform_9, window_bounds = array<i64: 2, 160>}, {pipeline_mode = #tpu.pipeline_mode<synchronous>, transform_indices = @transform_10, window_bounds = array<i64: 3, 160, 128>}, {pipeline_mode = #tpu.pipeline_mode<synchronous>, transform_indices = @transform_11, window_bounds = array<i64: 2, 128>}, {pipeline_mode = #tpu.pipeline_mode<synchronous>, transform_indices = @transform_12, window_bounds = array<i64: 3, 128, 96>}, {pipeline_mode = #tpu.pipeline_mode<synchronous>, transform_indices = @transform_13, window_bounds = array<i64: 2, 96>}, {pipeline_mode = #tpu.pipeline_mode<synchronous>, transform_indices = @transform_14, window_bounds = array<i64: 1, 6>}, {pipeline_mode = #tpu.pipeline_mode<synchronous>, transform_indices = @transform_15, window_bounds = array<i64: 96, 16>}, {pipeline_mode = #tpu.pipeline_mode<synchronous>, transform_indices = @transform_16, window_bounds = array<i64: 16, 16>}, {pipeline_mode = #tpu.pipeline_mode<synchronous>, transform_indices = @transform_17, window_bounds = array<i64: 2, 16>}, {pipeline_mode = #tpu.pipeline_mode<synchronous>, transform_indices = @transform_18, window_bounds = array<i64: 16, 10>}, {transform_indices = @transform_19, window_bounds = array<i64: 1, 1, 10>}]} {
    %c0 = arith.constant 0 : index
    %c0_0 = arith.constant 0 : index
    %c0_1 = arith.constant 0 : index
    %0 = vector.load %arg1[%c0, %c0_0, %c0_1] : memref<1x28x28xf32, #tpu.memory_space<vmem>>, vector<1x26x28xf32>
    %1 = vector.shape_cast %0 : vector<1x26x28xf32> to vector<26x28xf32>
    %c0_2 = arith.constant 0 : index
    %c0_3 = arith.constant 0 : index
    %c0_4 = arith.constant 0 : index
    %2 = vector.load %arg2[%c0_2, %c0_3, %c0_4] : memref<3x28x208xf32, #tpu.memory_space<vmem>>, vector<1x28x208xf32>
    %3 = vector.shape_cast %2 : vector<1x28x208xf32> to vector<28x208xf32>
    %cst = arith.constant dense<0.000000e+00> : vector<26x208xf32>
    %4 = tpu.matmul %1, %3, %cst {dimension_numbers = #tpu.dot_dimension_numbers<[1], [0], [0], [1], [0, 0, 1, 1], [], []>} : vector<26x28xf32>, vector<28x208xf32>, vector<26x208xf32> -> vector<26x208xf32>
    %c0_5 = arith.constant 0 : index
    %c1 = arith.constant 1 : index
    %c0_6 = arith.constant 0 : index
    %5 = vector.load %arg1[%c0_5, %c1, %c0_6] : memref<1x28x28xf32, #tpu.memory_space<vmem>>, vector<1x26x28xf32>
    %6 = vector.shape_cast %5 : vector<1x26x28xf32> to vector<26x28xf32>
    %c1_7 = arith.constant 1 : index
    %c0_8 = arith.constant 0 : index
    %c0_9 = arith.constant 0 : index
    %7 = vector.load %arg2[%c1_7, %c0_8, %c0_9] : memref<3x28x208xf32, #tpu.memory_space<vmem>>, vector<1x28x208xf32>
    %8 = vector.shape_cast %7 : vector<1x28x208xf32> to vector<28x208xf32>
    %cst_10 = arith.constant dense<0.000000e+00> : vector<26x208xf32>
    %9 = tpu.matmul %6, %8, %cst_10 {dimension_numbers = #tpu.dot_dimension_numbers<[1], [0], [0], [1], [0, 0, 1, 1], [], []>} : vector<26x28xf32>, vector<28x208xf32>, vector<26x208xf32> -> vector<26x208xf32>
    %10 = arith.addf %4, %9 : vector<26x208xf32>
    %c0_11 = arith.constant 0 : index
    %c2 = arith.constant 2 : index
    %c0_12 = arith.constant 0 : index
    %11 = vector.load %arg1[%c0_11, %c2, %c0_12] : memref<1x28x28xf32, #tpu.memory_space<vmem>>, vector<1x26x28xf32>
    %12 = vector.shape_cast %11 : vector<1x26x28xf32> to vector<26x28xf32>
    %c2_13 = arith.constant 2 : index
    %c0_14 = arith.constant 0 : index
    %c0_15 = arith.constant 0 : index
    %13 = vector.load %arg2[%c2_13, %c0_14, %c0_15] : memref<3x28x208xf32, #tpu.memory_space<vmem>>, vector<1x28x208xf32>
    %14 = vector.shape_cast %13 : vector<1x28x208xf32> to vector<28x208xf32>
    %cst_16 = arith.constant dense<0.000000e+00> : vector<26x208xf32>
    %15 = tpu.matmul %12, %14, %cst_16 {dimension_numbers = #tpu.dot_dimension_numbers<[1], [0], [0], [1], [0, 0, 1, 1], [], []>} : vector<26x28xf32>, vector<28x208xf32>, vector<26x208xf32> -> vector<26x208xf32>
    %16 = arith.addf %10, %15 : vector<26x208xf32>
    %cst_17 = arith.constant 0.000000e+00 : f32
    %17 = vector.broadcast %cst_17 : f32 to vector<26x208xf32>
    %18 = arith.maximumf %16, %17 : vector<26x208xf32>
    %c0_18 = arith.constant 0 : index
    %c0_19 = arith.constant 0 : index
    %19 = vector.load %arg3[%c0_18, %c0_19] : memref<2x208xf32, #tpu.memory_space<vmem>>, vector<1x208xf32>
    %20 = vector.broadcast %19 : vector<1x208xf32> to vector<26x208xf32>
    %21 = arith.mulf %18, %20 : vector<26x208xf32>
    %c1_20 = arith.constant 1 : index
    %c0_21 = arith.constant 0 : index
    %22 = vector.load %arg3[%c1_20, %c0_21] : memref<2x208xf32, #tpu.memory_space<vmem>>, vector<1x208xf32>
    %23 = vector.broadcast %22 : vector<1x208xf32> to vector<26x208xf32>
    %24 = arith.addf %21, %23 : vector<26x208xf32>
    %c0_22 = arith.constant 0 : index
    %c0_23 = arith.constant 0 : index
    %25 = vector.load %arg21[%c0_22, %c0_23] : memref<26x208xf32, #tpu.memory_space<vmem>>, vector<26x208xf32>
    tpu.vector_store %arg21[%c0_22, %c0_23], %24 {strides = array<i32>} : memref<26x208xf32, #tpu.memory_space<vmem>>, vector<26x208xf32>,
    %c0_24 = arith.constant 0 : index
    %c0_25 = arith.constant 0 : index
    %26 = vector.load %arg21[%c0_24, %c0_25] : memref<26x208xf32, #tpu.memory_space<vmem>>, vector<24x208xf32>
    %c0_26 = arith.constant 0 : index
    %c0_27 = arith.constant 0 : index
    %c0_28 = arith.constant 0 : index
    %27 = vector.load %arg4[%c0_26, %c0_27, %c0_28] : memref<3x208x384xf32, #tpu.memory_space<vmem>>, vector<1x208x384xf32>
    %28 = vector.shape_cast %27 : vector<1x208x384xf32> to vector<208x384xf32>
    %cst_29 = arith.constant dense<0.000000e+00> : vector<24x384xf32>
    %29 = tpu.matmul %26, %28, %cst_29 {dimension_numbers = #tpu.dot_dimension_numbers<[1], [0], [0], [1], [0, 0, 1, 1], [], []>} : vector<24x208xf32>, vector<208x384xf32>, vector<24x384xf32> -> vector<24x384xf32>
    %c1_30 = arith.constant 1 : index
    %c0_31 = arith.constant 0 : index
    %30 = vector.load %arg21[%c1_30, %c0_31] : memref<26x208xf32, #tpu.memory_space<vmem>>, vector<24x208xf32>
    %c1_32 = arith.constant 1 : index
    %c0_33 = arith.constant 0 : index
    %c0_34 = arith.constant 0 : index
    %31 = vector.load %arg4[%c1_32, %c0_33, %c0_34] : memref<3x208x384xf32, #tpu.memory_space<vmem>>, vector<1x208x384xf32>
    %32 = vector.shape_cast %31 : vector<1x208x384xf32> to vector<208x384xf32>
    %cst_35 = arith.constant dense<0.000000e+00> : vector<24x384xf32>
    %33 = tpu.matmul %30, %32, %cst_35 {dimension_numbers = #tpu.dot_dimension_numbers<[1], [0], [0], [1], [0, 0, 1, 1], [], []>} : vector<24x208xf32>, vector<208x384xf32>, vector<24x384xf32> -> vector<24x384xf32>
    %34 = arith.addf %29, %33 : vector<24x384xf32>
    %c2_36 = arith.constant 2 : index
    %c0_37 = arith.constant 0 : index
    %35 = vector.load %arg21[%c2_36, %c0_37] : memref<26x208xf32, #tpu.memory_space<vmem>>, vector<24x208xf32>
    %c2_38 = arith.constant 2 : index
    %c0_39 = arith.constant 0 : index
    %c0_40 = arith.constant 0 : index
    %36 = vector.load %arg4[%c2_38, %c0_39, %c0_40] : memref<3x208x384xf32, #tpu.memory_space<vmem>>, vector<1x208x384xf32>
    %37 = vector.shape_cast %36 : vector<1x208x384xf32> to vector<208x384xf32>
    %cst_41 = arith.constant dense<0.000000e+00> : vector<24x384xf32>
    %38 = tpu.matmul %35, %37, %cst_41 {dimension_numbers = #tpu.dot_dimension_numbers<[1], [0], [0], [1], [0, 0, 1, 1], [], []>} : vector<24x208xf32>, vector<208x384xf32>, vector<24x384xf32> -> vector<24x384xf32>
    %39 = arith.addf %34, %38 : vector<24x384xf32>
    %cst_42 = arith.constant 0.000000e+00 : f32
    %40 = vector.broadcast %cst_42 : f32 to vector<24x384xf32>
    %41 = arith.maximumf %39, %40 : vector<24x384xf32>
    %c0_43 = arith.constant 0 : index
    %c0_44 = arith.constant 0 : index
    %42 = vector.load %arg5[%c0_43, %c0_44] : memref<2x384xf32, #tpu.memory_space<vmem>>, vector<1x384xf32>
    %43 = vector.broadcast %42 : vector<1x384xf32> to vector<24x384xf32>
    %44 = arith.mulf %41, %43 : vector<24x384xf32>
    %c1_45 = arith.constant 1 : index
    %c0_46 = arith.constant 0 : index
    %45 = vector.load %arg5[%c1_45, %c0_46] : memref<2x384xf32, #tpu.memory_space<vmem>>, vector<1x384xf32>
    %46 = vector.broadcast %45 : vector<1x384xf32> to vector<24x384xf32>
    %47 = arith.addf %44, %46 : vector<24x384xf32>
    %c0_47 = arith.constant 0 : index
    %c0_48 = arith.constant 0 : index
    %c0_49 = arith.constant 0 : index
    %48 = vector.load %arg6[%c0_47, %c0_48, %c0_49] : memref<2x384x192xf32, #tpu.memory_space<vmem>>, vector<1x384x192xf32>
    %49 = vector.shape_cast %48 : vector<1x384x192xf32> to vector<384x192xf32>
    %cst_50 = arith.constant dense<0.000000e+00> : vector<24x192xf32>
    %50 = tpu.matmul %47, %49, %cst_50 {dimension_numbers = #tpu.dot_dimension_numbers<[1], [0], [0], [1], [0, 0, 1, 1], [], []>} : vector<24x384xf32>, vector<384x192xf32>, vector<24x192xf32> -> vector<24x192xf32>
    %c1_51 = arith.constant 1 : index
    %c0_52 = arith.constant 0 : index
    %c0_53 = arith.constant 0 : index
    %51 = vector.load %arg6[%c1_51, %c0_52, %c0_53] : memref<2x384x192xf32, #tpu.memory_space<vmem>>, vector<1x384x192xf32>
    %52 = vector.shape_cast %51 : vector<1x384x192xf32> to vector<384x192xf32>
    %cst_54 = arith.constant dense<0.000000e+00> : vector<24x192xf32>
    %53 = tpu.matmul %47, %52, %cst_54 {dimension_numbers = #tpu.dot_dimension_numbers<[1], [0], [0], [1], [0, 0, 1, 1], [], []>} : vector<24x384xf32>, vector<384x192xf32>, vector<24x192xf32> -> vector<24x192xf32>
    %54 = arith.maximumf %50, %53 : vector<24x192xf32>
    %c0_55 = arith.constant 0 : index
    %c0_56 = arith.constant 0 : index
    %c0_57 = arith.constant 0 : index
    %55 = vector.load %arg7[%c0_55, %c0_56, %c0_57] : memref<2x12x24xf32, #tpu.memory_space<vmem>>, vector<1x12x24xf32>
    %56 = vector.shape_cast %55 : vector<1x12x24xf32> to vector<12x24xf32>
    %cst_58 = arith.constant dense<0.000000e+00> : vector<12x192xf32>
    %57 = tpu.matmul %56, %54, %cst_58 {dimension_numbers = #tpu.dot_dimension_numbers<[1], [0], [0], [1], [0, 0, 1, 1], [], []>} : vector<12x24xf32>, vector<24x192xf32>, vector<12x192xf32> -> vector<12x192xf32>
    %c1_59 = arith.constant 1 : index
    %c0_60 = arith.constant 0 : index
    %c0_61 = arith.constant 0 : index
    %58 = vector.load %arg7[%c1_59, %c0_60, %c0_61] : memref<2x12x24xf32, #tpu.memory_space<vmem>>, vector<1x12x24xf32>
    %59 = vector.shape_cast %58 : vector<1x12x24xf32> to vector<12x24xf32>
    %cst_62 = arith.constant dense<0.000000e+00> : vector<12x192xf32>
    %60 = tpu.matmul %59, %54, %cst_62 {dimension_numbers = #tpu.dot_dimension_numbers<[1], [0], [0], [1], [0, 0, 1, 1], [], []>} : vector<12x24xf32>, vector<24x192xf32>, vector<12x192xf32> -> vector<12x192xf32>
    %61 = arith.maximumf %57, %60 : vector<12x192xf32>
    %c0_63 = arith.constant 0 : index
    %c0_64 = arith.constant 0 : index
    %c0_65 = arith.constant 0 : index
    %62 = vector.load %arg8[%c0_63, %c0_64, %c0_65] : memref<1x192x96xf32, #tpu.memory_space<vmem>>, vector<1x192x96xf32>
    %63 = vector.shape_cast %62 : vector<1x192x96xf32> to vector<192x96xf32>
    %cst_66 = arith.constant dense<0.000000e+00> : vector<12x96xf32>
    %64 = tpu.matmul %61, %63, %cst_66 {dimension_numbers = #tpu.dot_dimension_numbers<[1], [0], [0], [1], [0, 0, 1, 1], [], []>} : vector<12x192xf32>, vector<192x96xf32>, vector<12x96xf32> -> vector<12x96xf32>
    %c0_67 = arith.constant 0 : index
    %c0_68 = arith.constant 0 : index
    %65 = vector.load %arg22[%c0_67, %c0_68] : memref<12x96xf32, #tpu.memory_space<vmem>>, vector<12x96xf32>
    tpu.vector_store %arg22[%c0_67, %c0_68], %64 {strides = array<i32>} : memref<12x96xf32, #tpu.memory_space<vmem>>, vector<12x96xf32>,
    %c0_69 = arith.constant 0 : index
    %c0_70 = arith.constant 0 : index
    %66 = vector.load %arg22[%c0_69, %c0_70] : memref<12x96xf32, #tpu.memory_space<vmem>>, vector<10x96xf32>
    %c0_71 = arith.constant 0 : index
    %c0_72 = arith.constant 0 : index
    %c0_73 = arith.constant 0 : index
    %67 = vector.load %arg9[%c0_71, %c0_72, %c0_73] : memref<3x96x160xf32, #tpu.memory_space<vmem>>, vector<1x96x160xf32>
    %68 = vector.shape_cast %67 : vector<1x96x160xf32> to vector<96x160xf32>
    %cst_74 = arith.constant dense<0.000000e+00> : vector<10x160xf32>
    %69 = tpu.matmul %66, %68, %cst_74 {dimension_numbers = #tpu.dot_dimension_numbers<[1], [0], [0], [1], [0, 0, 1, 1], [], []>} : vector<10x96xf32>, vector<96x160xf32>, vector<10x160xf32> -> vector<10x160xf32>
    %c1_75 = arith.constant 1 : index
    %c0_76 = arith.constant 0 : index
    %70 = vector.load %arg22[%c1_75, %c0_76] : memref<12x96xf32, #tpu.memory_space<vmem>>, vector<10x96xf32>
    %c1_77 = arith.constant 1 : index
    %c0_78 = arith.constant 0 : index
    %c0_79 = arith.constant 0 : index
    %71 = vector.load %arg9[%c1_77, %c0_78, %c0_79] : memref<3x96x160xf32, #tpu.memory_space<vmem>>, vector<1x96x160xf32>
    %72 = vector.shape_cast %71 : vector<1x96x160xf32> to vector<96x160xf32>
    %cst_80 = arith.constant dense<0.000000e+00> : vector<10x160xf32>
    %73 = tpu.matmul %70, %72, %cst_80 {dimension_numbers = #tpu.dot_dimension_numbers<[1], [0], [0], [1], [0, 0, 1, 1], [], []>} : vector<10x96xf32>, vector<96x160xf32>, vector<10x160xf32> -> vector<10x160xf32>
    %74 = arith.addf %69, %73 : vector<10x160xf32>
    %c2_81 = arith.constant 2 : index
    %c0_82 = arith.constant 0 : index
    %75 = vector.load %arg22[%c2_81, %c0_82] : memref<12x96xf32, #tpu.memory_space<vmem>>, vector<10x96xf32>
    %c2_83 = arith.constant 2 : index
    %c0_84 = arith.constant 0 : index
    %c0_85 = arith.constant 0 : index
    %76 = vector.load %arg9[%c2_83, %c0_84, %c0_85] : memref<3x96x160xf32, #tpu.memory_space<vmem>>, vector<1x96x160xf32>
    %77 = vector.shape_cast %76 : vector<1x96x160xf32> to vector<96x160xf32>
    %cst_86 = arith.constant dense<0.000000e+00> : vector<10x160xf32>
    %78 = tpu.matmul %75, %77, %cst_86 {dimension_numbers = #tpu.dot_dimension_numbers<[1], [0], [0], [1], [0, 0, 1, 1], [], []>} : vector<10x96xf32>, vector<96x160xf32>, vector<10x160xf32> -> vector<10x160xf32>
    %79 = arith.addf %74, %78 : vector<10x160xf32>
    %cst_87 = arith.constant 0.000000e+00 : f32
    %80 = vector.broadcast %cst_87 : f32 to vector<10x160xf32>
    %81 = arith.maximumf %79, %80 : vector<10x160xf32>
    %c0_88 = arith.constant 0 : index
    %c0_89 = arith.constant 0 : index
    %82 = vector.load %arg10[%c0_88, %c0_89] : memref<2x160xf32, #tpu.memory_space<vmem>>, vector<1x160xf32>
    %83 = vector.broadcast %82 : vector<1x160xf32> to vector<10x160xf32>
    %84 = arith.mulf %81, %83 : vector<10x160xf32>
    %c1_90 = arith.constant 1 : index
    %c0_91 = arith.constant 0 : index
    %85 = vector.load %arg10[%c1_90, %c0_91] : memref<2x160xf32, #tpu.memory_space<vmem>>, vector<1x160xf32>
    %86 = vector.broadcast %85 : vector<1x160xf32> to vector<10x160xf32>
    %87 = arith.addf %84, %86 : vector<10x160xf32>
    %c0_92 = arith.constant 0 : index
    %c0_93 = arith.constant 0 : index
    %88 = vector.load %arg23[%c0_92, %c0_93] : memref<10x160xf32, #tpu.memory_space<vmem>>, vector<10x160xf32>
    tpu.vector_store %arg23[%c0_92, %c0_93], %87 {strides = array<i32>} : memref<10x160xf32, #tpu.memory_space<vmem>>, vector<10x160xf32>,
    %c0_94 = arith.constant 0 : index
    %c0_95 = arith.constant 0 : index
    %89 = vector.load %arg23[%c0_94, %c0_95] : memref<10x160xf32, #tpu.memory_space<vmem>>, vector<8x160xf32>
    %c0_96 = arith.constant 0 : index
    %c0_97 = arith.constant 0 : index
    %c0_98 = arith.constant 0 : index
    %90 = vector.load %arg11[%c0_96, %c0_97, %c0_98] : memref<3x160x128xf32, #tpu.memory_space<vmem>>, vector<1x160x128xf32>
    %91 = vector.shape_cast %90 : vector<1x160x128xf32> to vector<160x128xf32>
    %cst_99 = arith.constant dense<0.000000e+00> : vector<8x128xf32>
    %92 = tpu.matmul %89, %91, %cst_99 {dimension_numbers = #tpu.dot_dimension_numbers<[1], [0], [0], [1], [0, 0, 1, 1], [], []>} : vector<8x160xf32>, vector<160x128xf32>, vector<8x128xf32> -> vector<8x128xf32>
    %c1_100 = arith.constant 1 : index
    %c0_101 = arith.constant 0 : index
    %93 = vector.load %arg23[%c1_100, %c0_101] : memref<10x160xf32, #tpu.memory_space<vmem>>, vector<8x160xf32>
    %c1_102 = arith.constant 1 : index
    %c0_103 = arith.constant 0 : index
    %c0_104 = arith.constant 0 : index
    %94 = vector.load %arg11[%c1_102, %c0_103, %c0_104] : memref<3x160x128xf32, #tpu.memory_space<vmem>>, vector<1x160x128xf32>
    %95 = vector.shape_cast %94 : vector<1x160x128xf32> to vector<160x128xf32>
    %cst_105 = arith.constant dense<0.000000e+00> : vector<8x128xf32>
    %96 = tpu.matmul %93, %95, %cst_105 {dimension_numbers = #tpu.dot_dimension_numbers<[1], [0], [0], [1], [0, 0, 1, 1], [], []>} : vector<8x160xf32>, vector<160x128xf32>, vector<8x128xf32> -> vector<8x128xf32>
    %97 = arith.addf %92, %96 : vector<8x128xf32>
    %c2_106 = arith.constant 2 : index
    %c0_107 = arith.constant 0 : index
    %98 = vector.load %arg23[%c2_106, %c0_107] : memref<10x160xf32, #tpu.memory_space<vmem>>, vector<8x160xf32>
    %c2_108 = arith.constant 2 : index
    %c0_109 = arith.constant 0 : index
    %c0_110 = arith.constant 0 : index
    %99 = vector.load %arg11[%c2_108, %c0_109, %c0_110] : memref<3x160x128xf32, #tpu.memory_space<vmem>>, vector<1x160x128xf32>
    %100 = vector.shape_cast %99 : vector<1x160x128xf32> to vector<160x128xf32>
    %cst_111 = arith.constant dense<0.000000e+00> : vector<8x128xf32>
    %101 = tpu.matmul %98, %100, %cst_111 {dimension_numbers = #tpu.dot_dimension_numbers<[1], [0], [0], [1], [0, 0, 1, 1], [], []>} : vector<8x160xf32>, vector<160x128xf32>, vector<8x128xf32> -> vector<8x128xf32>
    %102 = arith.addf %97, %101 : vector<8x128xf32>
    %cst_112 = arith.constant 0.000000e+00 : f32
    %103 = vector.broadcast %cst_112 : f32 to vector<8x128xf32>
    %104 = arith.maximumf %102, %103 : vector<8x128xf32>
    %c0_113 = arith.constant 0 : index
    %c0_114 = arith.constant 0 : index
    %105 = vector.load %arg12[%c0_113, %c0_114] : memref<2x128xf32, #tpu.memory_space<vmem>>, vector<1x128xf32>
    %106 = vector.broadcast %105 : vector<1x128xf32> to vector<8x128xf32>
    %107 = arith.mulf %104, %106 : vector<8x128xf32>
    %c1_115 = arith.constant 1 : index
    %c0_116 = arith.constant 0 : index
    %108 = vector.load %arg12[%c1_115, %c0_116] : memref<2x128xf32, #tpu.memory_space<vmem>>, vector<1x128xf32>
    %109 = vector.broadcast %108 : vector<1x128xf32> to vector<8x128xf32>
    %110 = arith.addf %107, %109 : vector<8x128xf32>
    %c0_117 = arith.constant 0 : index
    %c0_118 = arith.constant 0 : index
    %111 = vector.load %arg24[%c0_117, %c0_118] : memref<8x128xf32, #tpu.memory_space<vmem>>, vector<8x128xf32>
    tpu.vector_store %arg24[%c0_117, %c0_118], %110 {strides = array<i32>} : memref<8x128xf32, #tpu.memory_space<vmem>>, vector<8x128xf32>,
    %c0_119 = arith.constant 0 : index
    %c0_120 = arith.constant 0 : index
    %112 = vector.load %arg24[%c0_119, %c0_120] : memref<8x128xf32, #tpu.memory_space<vmem>>, vector<6x128xf32>
    %c0_121 = arith.constant 0 : index
    %c0_122 = arith.constant 0 : index
    %c0_123 = arith.constant 0 : index
    %113 = vector.load %arg13[%c0_121, %c0_122, %c0_123] : memref<3x128x96xf32, #tpu.memory_space<vmem>>, vector<1x128x96xf32>
    %114 = vector.shape_cast %113 : vector<1x128x96xf32> to vector<128x96xf32>
    %cst_124 = arith.constant dense<0.000000e+00> : vector<6x96xf32>
    %115 = tpu.matmul %112, %114, %cst_124 {dimension_numbers = #tpu.dot_dimension_numbers<[1], [0], [0], [1], [0, 0, 1, 1], [], []>} : vector<6x128xf32>, vector<128x96xf32>, vector<6x96xf32> -> vector<6x96xf32>
    %c1_125 = arith.constant 1 : index
    %c0_126 = arith.constant 0 : index
    %116 = vector.load %arg24[%c1_125, %c0_126] : memref<8x128xf32, #tpu.memory_space<vmem>>, vector<6x128xf32>
    %c1_127 = arith.constant 1 : index
    %c0_128 = arith.constant 0 : index
    %c0_129 = arith.constant 0 : index
    %117 = vector.load %arg13[%c1_127, %c0_128, %c0_129] : memref<3x128x96xf32, #tpu.memory_space<vmem>>, vector<1x128x96xf32>
    %118 = vector.shape_cast %117 : vector<1x128x96xf32> to vector<128x96xf32>
    %cst_130 = arith.constant dense<0.000000e+00> : vector<6x96xf32>
    %119 = tpu.matmul %116, %118, %cst_130 {dimension_numbers = #tpu.dot_dimension_numbers<[1], [0], [0], [1], [0, 0, 1, 1], [], []>} : vector<6x128xf32>, vector<128x96xf32>, vector<6x96xf32> -> vector<6x96xf32>
    %120 = arith.addf %115, %119 : vector<6x96xf32>
    %c2_131 = arith.constant 2 : index
    %c0_132 = arith.constant 0 : index
    %121 = vector.load %arg24[%c2_131, %c0_132] : memref<8x128xf32, #tpu.memory_space<vmem>>, vector<6x128xf32>
    %c2_133 = arith.constant 2 : index
    %c0_134 = arith.constant 0 : index
    %c0_135 = arith.constant 0 : index
    %122 = vector.load %arg13[%c2_133, %c0_134, %c0_135] : memref<3x128x96xf32, #tpu.memory_space<vmem>>, vector<1x128x96xf32>
    %123 = vector.shape_cast %122 : vector<1x128x96xf32> to vector<128x96xf32>
    %cst_136 = arith.constant dense<0.000000e+00> : vector<6x96xf32>
    %124 = tpu.matmul %121, %123, %cst_136 {dimension_numbers = #tpu.dot_dimension_numbers<[1], [0], [0], [1], [0, 0, 1, 1], [], []>} : vector<6x128xf32>, vector<128x96xf32>, vector<6x96xf32> -> vector<6x96xf32>
    %125 = arith.addf %120, %124 : vector<6x96xf32>
    %cst_137 = arith.constant 0.000000e+00 : f32
    %126 = vector.broadcast %cst_137 : f32 to vector<6x96xf32>
    %127 = arith.maximumf %125, %126 : vector<6x96xf32>
    %c0_138 = arith.constant 0 : index
    %c0_139 = arith.constant 0 : index
    %128 = vector.load %arg14[%c0_138, %c0_139] : memref<2x96xf32, #tpu.memory_space<vmem>>, vector<1x96xf32>
    %129 = vector.broadcast %128 : vector<1x96xf32> to vector<6x96xf32>
    %130 = arith.mulf %127, %129 : vector<6x96xf32>
    %c1_140 = arith.constant 1 : index
    %c0_141 = arith.constant 0 : index
    %131 = vector.load %arg14[%c1_140, %c0_141] : memref<2x96xf32, #tpu.memory_space<vmem>>, vector<1x96xf32>
    %132 = vector.broadcast %131 : vector<1x96xf32> to vector<6x96xf32>
    %133 = arith.addf %130, %132 : vector<6x96xf32>
    %c0_142 = arith.constant 0 : index
    %c0_143 = arith.constant 0 : index
    %134 = vector.load %arg15[%c0_142, %c0_143] : memref<1x6xf32, #tpu.memory_space<vmem>>, vector<1x6xf32>
    %cst_144 = arith.constant dense<0.000000e+00> : vector<1x96xf32>
    %135 = tpu.matmul %134, %133, %cst_144 {dimension_numbers = #tpu.dot_dimension_numbers<[1], [0], [0], [1], [0, 0, 1, 1], [], []>} : vector<1x6xf32>, vector<6x96xf32>, vector<1x96xf32> -> vector<1x96xf32>
    %c0_145 = arith.constant 0 : index
    %c0_146 = arith.constant 0 : index
    %136 = vector.load %arg16[%c0_145, %c0_146] : memref<96x16xf32, #tpu.memory_space<vmem>>, vector<96x16xf32>
    %cst_147 = arith.constant dense<0.000000e+00> : vector<1x16xf32>
    %137 = tpu.matmul %135, %136, %cst_147 {dimension_numbers = #tpu.dot_dimension_numbers<[1], [0], [0], [1], [0, 0, 1, 1], [], []>} : vector<1x96xf32>, vector<96x16xf32>, vector<1x16xf32> -> vector<1x16xf32>
    %c0_148 = arith.constant 0 : index
    %c0_149 = arith.constant 0 : index
    %138 = vector.load %arg17[%c0_148, %c0_149] : memref<16x16xf32, #tpu.memory_space<vmem>>, vector<16x16xf32>
    %cst_150 = arith.constant dense<0.000000e+00> : vector<1x16xf32>
    %139 = tpu.matmul %137, %138, %cst_150 {dimension_numbers = #tpu.dot_dimension_numbers<[1], [0], [0], [1], [0, 0, 1, 1], [], []>} : vector<1x16xf32>, vector<16x16xf32>, vector<1x16xf32> -> vector<1x16xf32>
    %cst_151 = arith.constant 0.000000e+00 : f32
    %140 = vector.broadcast %cst_151 : f32 to vector<1x16xf32>
    %141 = arith.maximumf %139, %140 : vector<1x16xf32>
    %c0_152 = arith.constant 0 : index
    %c0_153 = arith.constant 0 : index
    %142 = vector.load %arg18[%c0_152, %c0_153] : memref<2x16xf32, #tpu.memory_space<vmem>>, vector<1x16xf32>
    %143 = arith.mulf %141, %142 : vector<1x16xf32>
    %c1_154 = arith.constant 1 : index
    %c0_155 = arith.constant 0 : index
    %144 = vector.load %arg18[%c1_154, %c0_155] : memref<2x16xf32, #tpu.memory_space<vmem>>, vector<1x16xf32>
    %145 = arith.addf %143, %144 : vector<1x16xf32>
    %c0_156 = arith.constant 0 : index
    %c0_157 = arith.constant 0 : index
    %146 = vector.load %arg19[%c0_156, %c0_157] : memref<16x10xf32, #tpu.memory_space<vmem>>, vector<16x10xf32>
    %cst_158 = arith.constant dense<0.000000e+00> : vector<1x10xf32>
    %147 = tpu.matmul %145, %146, %cst_158 {dimension_numbers = #tpu.dot_dimension_numbers<[1], [0], [0], [1], [0, 0, 1, 1], [], []>} : vector<1x16xf32>, vector<16x10xf32>, vector<1x10xf32> -> vector<1x10xf32>
    %cst_159 = arith.constant dense<0xFF800000> : vector<1xf32>
    %148 = vector.multi_reduction <maximumf>, %147, %cst_159 [1] : vector<1x10xf32> to vector<1xf32>
    %149 = vector.shape_cast %148 : vector<1xf32> to vector<1x1xf32>
    %150 = vector.broadcast %149 : vector<1x1xf32> to vector<1x10xf32>
    %151 = arith.subf %147, %150 : vector<1x10xf32>
    %152 = math.exp %151 : vector<1x10xf32>
    %cst_160 = arith.constant dense<0.000000e+00> : vector<1xf32>
    %153 = vector.multi_reduction <add>, %152, %cst_160 [1] : vector<1x10xf32> to vector<1xf32>
    %154 = vector.shape_cast %153 : vector<1xf32> to vector<1x1xf32>
    %155 = math.log %154 : vector<1x1xf32>
    %156 = vector.broadcast %155 : vector<1x1xf32> to vector<1x10xf32>
    %157 = arith.subf %151, %156 : vector<1x10xf32>
    %c0_161 = arith.constant 0 : index
    %c0_162 = arith.constant 0 : index
    %c0_163 = arith.constant 0 : index
    %158 = vector.load %arg20[%c0_161, %c0_162, %c0_163] : memref<1x1x10xf32, #tpu.memory_space<vmem>>, vector<1x1x10xf32>
    %159 = vector.shape_cast %158 : vector<1x1x10xf32> to vector<1x10xf32>
    %160 = vector.shape_cast %157 : vector<1x10xf32> to vector<1x1x10xf32>
    tpu.vector_store %arg20[%c0_161, %c0_162, %c0_163], %160 {strides = array<i32>} : memref<1x1x10xf32, #tpu.memory_space<vmem>>, vector<1x1x10xf32>,
    return
  }
  func.func @transform_0(%arg0: i32) -> (i32, i32, i32) {
    %c0_i32 = arith.constant 0 : i32
    %c0_i32_0 = arith.constant 0 : i32
    %c0_i32_1 = arith.constant 0 : i32
    return %arg0, %c0_i32, %c0_i32_0 : i32, i32, i32
  }
  func.func @transform_1(%arg0: i32) -> (i32, i32, i32) {
    %c0_i32 = arith.constant 0 : i32
    %c0_i32_0 = arith.constant 0 : i32
    %c0_i32_1 = arith.constant 0 : i32
    %c0_i32_2 = arith.constant 0 : i32
    return %c0_i32, %c0_i32_0, %c0_i32_1 : i32, i32, i32
  }
  func.func @transform_2(%arg0: i32) -> (i32, i32) {
    %c0_i32 = arith.constant 0 : i32
    %c0_i32_0 = arith.constant 0 : i32
    %c0_i32_1 = arith.constant 0 : i32
    return %c0_i32, %c0_i32_0 : i32, i32
  }
  func.func @transform_3(%arg0: i32) -> (i32, i32, i32) {
    %c0_i32 = arith.constant 0 : i32
    %c0_i32_0 = arith.constant 0 : i32
    %c0_i32_1 = arith.constant 0 : i32
    %c0_i32_2 = arith.constant 0 : i32
    return %c0_i32, %c0_i32_0, %c0_i32_1 : i32, i32, i32
  }
  func.func @transform_4(%arg0: i32) -> (i32, i32) {
    %c0_i32 = arith.constant 0 : i32
    %c0_i32_0 = arith.constant 0 : i32
    %c0_i32_1 = arith.constant 0 : i32
    return %c0_i32, %c0_i32_0 : i32, i32
  }
  func.func @transform_5(%arg0: i32) -> (i32, i32, i32) {
    %c0_i32 = arith.constant 0 : i32
    %c0_i32_0 = arith.constant 0 : i32
    %c0_i32_1 = arith.constant 0 : i32
    %c0_i32_2 = arith.constant 0 : i32
    return %c0_i32, %c0_i32_0, %c0_i32_1 : i32, i32, i32
  }
  func.func @transform_6(%arg0: i32) -> (i32, i32, i32) {
    %c0_i32 = arith.constant 0 : i32
    %c0_i32_0 = arith.constant 0 : i32
    %c0_i32_1 = arith.constant 0 : i32
    %c0_i32_2 = arith.constant 0 : i32
    return %c0_i32, %c0_i32_0, %c0_i32_1 : i32, i32, i32
  }
  func.func @transform_7(%arg0: i32) -> (i32, i32, i32) {
    %c0_i32 = arith.constant 0 : i32
    %c0_i32_0 = arith.constant 0 : i32
    %c0_i32_1 = arith.constant 0 : i32
    %c0_i32_2 = arith.constant 0 : i32
    return %c0_i32, %c0_i32_0, %c0_i32_1 : i32, i32, i32
  }
  func.func @transform_8(%arg0: i32) -> (i32, i32, i32) {
    %c0_i32 = arith.constant 0 : i32
    %c0_i32_0 = arith.constant 0 : i32
    %c0_i32_1 = arith.constant 0 : i32
    %c0_i32_2 = arith.constant 0 : i32
    return %c0_i32, %c0_i32_0, %c0_i32_1 : i32, i32, i32
  }
  func.func @transform_9(%arg0: i32) -> (i32, i32) {
    %c0_i32 = arith.constant 0 : i32
    %c0_i32_0 = arith.constant 0 : i32
    %c0_i32_1 = arith.constant 0 : i32
    return %c0_i32, %c0_i32_0 : i32, i32
  }
  func.func @transform_10(%arg0: i32) -> (i32, i32, i32) {
    %c0_i32 = arith.constant 0 : i32
    %c0_i32_0 = arith.constant 0 : i32
    %c0_i32_1 = arith.constant 0 : i32
    %c0_i32_2 = arith.constant 0 : i32
    return %c0_i32, %c0_i32_0, %c0_i32_1 : i32, i32, i32
  }
  func.func @transform_11(%arg0: i32) -> (i32, i32) {
    %c0_i32 = arith.constant 0 : i32
    %c0_i32_0 = arith.constant 0 : i32
    %c0_i32_1 = arith.constant 0 : i32
    return %c0_i32, %c0_i32_0 : i32, i32
  }
  func.func @transform_12(%arg0: i32) -> (i32, i32, i32) {
    %c0_i32 = arith.constant 0 : i32
    %c0_i32_0 = arith.constant 0 : i32
    %c0_i32_1 = arith.constant 0 : i32
    %c0_i32_2 = arith.constant 0 : i32
    return %c0_i32, %c0_i32_0, %c0_i32_1 : i32, i32, i32
  }
  func.func @transform_13(%arg0: i32) -> (i32, i32) {
    %c0_i32 = arith.constant 0 : i32
    %c0_i32_0 = arith.constant 0 : i32
    %c0_i32_1 = arith.constant 0 : i32
    return %c0_i32, %c0_i32_0 : i32, i32
  }
  func.func @transform_14(%arg0: i32) -> (i32, i32) {
    %c0_i32 = arith.constant 0 : i32
    %c0_i32_0 = arith.constant 0 : i32
    %c0_i32_1 = arith.constant 0 : i32
    return %c0_i32, %c0_i32_0 : i32, i32
  }
  func.func @transform_15(%arg0: i32) -> (i32, i32) {
    %c0_i32 = arith.constant 0 : i32
    %c0_i32_0 = arith.constant 0 : i32
    %c0_i32_1 = arith.constant 0 : i32
    return %c0_i32, %c0_i32_0 : i32, i32
  }
  func.func @transform_16(%arg0: i32) -> (i32, i32) {
    %c0_i32 = arith.constant 0 : i32
    %c0_i32_0 = arith.constant 0 : i32
    %c0_i32_1 = arith.constant 0 : i32
    return %c0_i32, %c0_i32_0 : i32, i32
  }
  func.func @transform_17(%arg0: i32) -> (i32, i32) {
    %c0_i32 = arith.constant 0 : i32
    %c0_i32_0 = arith.constant 0 : i32
    %c0_i32_1 = arith.constant 0 : i32
    return %c0_i32, %c0_i32_0 : i32, i32
  }
  func.func @transform_18(%arg0: i32) -> (i32, i32) {
    %c0_i32 = arith.constant 0 : i32
    %c0_i32_0 = arith.constant 0 : i32
    %c0_i32_1 = arith.constant 0 : i32
    return %c0_i32, %c0_i32_0 : i32, i32
  }
  func.func @transform_19(%arg0: i32) -> (i32, i32, i32) {
    %c0_i32 = arith.constant 0 : i32
    %c0_i32_0 = arith.constant 0 : i32
    %c0_i32_1 = arith.constant 0 : i32
    return %arg0, %c0_i32, %c0_i32_0 : i32, i32, i32
  }
}

</mosaic_0001>

<llo_original>
// kernel: net_forward.1
$region0: #{net_forward.1}
  #allocation0 [shape = 'u32[]', space=smem, size = 0x4, offset = 0x4, fixed_abs, tag = 'smem constant byte address 0x4 - core index']
  #allocation1 [shape = 'u32[144,128]{1,0:T(1,128)}', space=vmem, size = 0x12000, scoped, tag = 'internal scratch']
  #allocation2 [shape = 'f32[26,208]{1,0:T(8,128)}', space=vmem, size = 0x8000, scoped, tag = 'scratch operand']
  #allocation3 [shape = 'f32[12,96]{1,0:T(8,128)}', space=vmem, size = 0x2000, scoped, tag = 'scratch operand']
  #allocation4 [shape = 'f32[10,160]{1,0:T(8,128)}', space=vmem, size = 0x4000, scoped, tag = 'scratch operand']
  #allocation5 [shape = 'f32[8,128]{1,0:T(8,128)}', space=vmem, size = 0x1000, scoped, tag = 'scratch operand']
  %s0 = inlined_call_operand.vmem [shape: f32[2,28,28], index: 0, kind: input, shape index: {}]
  %s1 = inlined_call_operand.vmem [shape: f32[3,28,208], index: 1, kind: input, shape index: {}]
  %s2 = inlined_call_operand.vmem [shape: f32[2,208], index: 2, kind: input, shape index: {}]
  %s3 = inlined_call_operand.vmem [shape: f32[3,208,384], index: 3, kind: input, shape index: {}]
  %s4 = inlined_call_operand.vmem [shape: f32[2,384], index: 4, kind: input, shape index: {}]
  %s5 = inlined_call_operand.vmem [shape: f32[2,384,192], index: 5, kind: input, shape index: {}]
  %s6 = inlined_call_operand.vmem [shape: f32[2,12,24], index: 6, kind: input, shape index: {}]
  %s7 = inlined_call_operand.vmem [shape: f32[1,192,96], index: 7, kind: input, shape index: {}]
  %s8 = inlined_call_operand.vmem [shape: f32[3,96,160], index: 8, kind: input, shape index: {}]
  %s9 = inlined_call_operand.vmem [shape: f32[2,160], index: 9, kind: input, shape index: {}]
  %s10 = inlined_call_operand.vmem [shape: f32[3,160,128], index: 10, kind: input, shape index: {}]
  %s11 = inlined_call_operand.vmem [shape: f32[2,128], index: 11, kind: input, shape index: {}]
  %s12 = inlined_call_operand.vmem [shape: f32[3,128,96], index: 12, kind: input, shape index: {}]
  %s13 = inlined_call_operand.vmem [shape: f32[2,96], index: 13, kind: input, shape index: {}]
  %s14 = inlined_call_operand.vmem [shape: f32[1,6], index: 14, kind: input, shape index: {}]
  %s15 = inlined_call_operand.vmem [shape: f32[96,16], index: 15, kind: input, shape index: {}]
  %s16 = inlined_call_operand.vmem [shape: f32[16,16], index: 16, kind: input, shape index: {}]
  %s17 = inlined_call_operand.vmem [shape: f32[2,16], index: 17, kind: input, shape index: {}]
  %s18 = inlined_call_operand.vmem [shape: f32[16,10], index: 18, kind: input, shape index: {}]
  %s19 = inlined_call_operand.hbm [shape: f32[2,1,10], index: 19, kind: output, shape index: {}]
  %s20 = sld [smem:[#allocation0]]
  $region109: #{net_forward.1} parent=0
    _
  %s22 = ssub.s32 1, %s20
  %s23 = scalar_select 0, %s22, %s20
  $region1: #{net_forward.1} parent=0
    #allocation6 [shape = 'u8[1024]{0}', space=vmem, size = 0x400, scoped, tag = 'output window, operand 0']
    #allocation7 [shape = 's32[2]{0}', space=sflag, size = 0x8, scoped, tag = 'scoped memory for net_forward.1']
    %24 = vsyncpa [#allocation7], 0
    %s25 = scalar_lea.sflag [#allocation7], 1
    %26 = vsyncpa %s25, 0
    loop: start=0, step=1, limit=4
    $region2: #{net_forward.1} parent=1 // loop_pre_header
      _
    $region3: #{net_forward.1} parent=1 // loop_header
      %s28 = sphi 0, %s32
      %p29 = scmp.ge.s32.totalorder %s28, 4
      %s38 = sphi 0, %s40
      %s41 = sphi 0, %s38
      %s42 = sphi 0, %s41
      %s58 = sphi 0, %s42
      %s62 = sphi 0, %s62
      %s64 = sphi 0, %s62
      %s65 = sphi 0, %s64
      %s79 = sphi 0, %s65
      %s83 = sphi 0, %s83
      %s85 = sphi 0, %s83
      %s86 = sphi 0, %s85
      %s100 = sphi 0, %s86
      %s104 = sphi 0, %s104
      %s106 = sphi 0, %s104
      %s107 = sphi 0, %s106
      %s121 = sphi 0, %s107
      %s125 = sphi 0, %s125
      %s127 = sphi 0, %s125
      %s128 = sphi 0, %s127
      %s142 = sphi 0, %s128
      %s146 = sphi 0, %s146
      %s148 = sphi 0, %s146
      %s149 = sphi 0, %s148
      %s163 = sphi 0, %s149
      %s167 = sphi 0, %s167
      %s169 = sphi 0, %s167
      %s170 = sphi 0, %s169
      %s184 = sphi 0, %s170
      %s188 = sphi 0, %s188
      %s190 = sphi 0, %s188
      %s191 = sphi 0, %s190
      %s205 = sphi 0, %s191
      %s209 = sphi 0, %s209
      %s211 = sphi 0, %s209
      %s212 = sphi 0, %s211
      %s226 = sphi 0, %s212
      %s230 = sphi 0, %s230
      %s232 = sphi 0, %s230
      %s233 = sphi 0, %s232
      %s247 = sphi 0, %s233
      %s251 = sphi 0, %s251
      %s253 = sphi 0, %s251
      %s254 = sphi 0, %s253
      %s268 = sphi 0, %s254
      %s272 = sphi 0, %s272
      %s274 = sphi 0, %s272
      %s275 = sphi 0, %s274
      %s289 = sphi 0, %s275
      %s293 = sphi 0, %s293
      %s295 = sphi 0, %s293
      %s296 = sphi 0, %s295
      %s310 = sphi 0, %s296
      %s314 = sphi 0, %s314
      %s316 = sphi 0, %s314
      %s317 = sphi 0, %s316
      %s331 = sphi 0, %s317
      %s335 = sphi 0, %s335
      %s337 = sphi 0, %s335
      %s338 = sphi 0, %s337
      %s352 = sphi 0, %s338
      %s356 = sphi 0, %s356
      %s358 = sphi 0, %s356
      %s359 = sphi 0, %s358
      %s373 = sphi 0, %s359
      %s377 = sphi 0, %s377
      %s379 = sphi 0, %s377
      %s380 = sphi 0, %s379
      %s394 = sphi 0, %s380
      %s398 = sphi 0, %s398
      %s400 = sphi 0, %s398
      %s401 = sphi 0, %s400
      %s415 = sphi 0, %s401
      %s419 = sphi 0, %s419
      %s421 = sphi 0, %s419
      %s422 = sphi 0, %s421
      %s436 = sphi 0, %s422
      %s442 = sphi 0, %s444
      %s445 = sphi 0, %s442
      %s446 = sphi 0, %s445
      %s462 = sphi 0, %s446
    $region4: #{net_forward.1} parent=1 // loop_header_branch
      %31 = sbr.rel (%p29) target = $region8
    $region5: #{net_forward.1} parent=1 // loop_body
      %s33 = ssub.s32 %s28, 1
      %s34 = ssub.s32 %s28, 2
      %s35 = sadd.s32 %s28, 1
      %s36 = ssub.s32 %s28, %s35
      %p37 = scmp.eq.s32.totalorder %s36, 0
      %s39 = sadd.s32 %s38, 1
      %s40 = scalar_select %p37, %s38, %s39
      %p43 = pneg %p37
      %p44 = scmp.eq.s32.totalorder %s28, 1
      %p45 = por %p43, %p44
      %p46 = scmp.ne.s32.totalorder %s38, %s41
      %p47 = scmp.eq.s32.totalorder %s28, 0
      %p48 = por %p46, %p47
      %p49 = scmp.ne.s32.totalorder %s38, %s41
      %p50 = scmp.eq.s32.totalorder %s33, 1
      %p51 = por %p49, %p50
      %p52 = scmp.ne.s32.totalorder %s41, %s42
      %p53 = scmp.eq.s32.totalorder %s33, 0
      %p54 = por %p52, %p53
      %p55 = scmp.ne.s32.totalorder %s41, %s42
      %p56 = scmp.eq.s32.totalorder %s34, 1
      %p57 = por %p55, %p56
      %p59 = scmp.ne.s32.totalorder %s42, %s58
      %p60 = scmp.eq.s32.totalorder %s34, 0
      %p61 = por %p59, %p60
      %s63 = sadd.s32 %s62, 1
      %p66 = scmp.eq.s32.totalorder %s28, 1
      %p67 = scmp.ne.s32.totalorder %s62, %s64
      %p68 = scmp.eq.s32.totalorder %s28, 0
      %p69 = por %p67, %p68
      %p70 = scmp.ne.s32.totalorder %s62, %s64
      %p71 = scmp.eq.s32.totalorder %s33, 1
      %p72 = por %p70, %p71
      %p73 = scmp.ne.s32.totalorder %s64, %s65
      %p74 = scmp.eq.s32.totalorder %s33, 0
      %p75 = por %p73, %p74
      %p76 = scmp.ne.s32.totalorder %s64, %s65
      %p77 = scmp.eq.s32.totalorder %s34, 1
      %p78 = por %p76, %p77
      %p80 = scmp.ne.s32.totalorder %s65, %s79
      %p81 = scmp.eq.s32.totalorder %s34, 0
      %p82 = por %p80, %p81
      %s84 = sadd.s32 %s83, 1
      %p87 = scmp.eq.s32.totalorder %s28, 1
      %p88 = scmp.ne.s32.totalorder %s83, %s85
      %p89 = scmp.eq.s32.totalorder %s28, 0
      %p90 = por %p88, %p89
      %p91 = scmp.ne.s32.totalorder %s83, %s85
      %p92 = scmp.eq.s32.totalorder %s33, 1
      %p93 = por %p91, %p92
      %p94 = scmp.ne.s32.totalorder %s85, %s86
      %p95 = scmp.eq.s32.totalorder %s33, 0
      %p96 = por %p94, %p95
      %p97 = scmp.ne.s32.totalorder %s85, %s86
      %p98 = scmp.eq.s32.totalorder %s34, 1
      %p99 = por %p97, %p98
      %p101 = scmp.ne.s32.totalorder %s86, %s100
      %p102 = scmp.eq.s32.totalorder %s34, 0
      %p103 = por %p101, %p102
      %s105 = sadd.s32 %s104, 1
      %p108 = scmp.eq.s32.totalorder %s28, 1
      %p109 = scmp.ne.s32.totalorder %s104, %s106
      %p110 = scmp.eq.s32.totalorder %s28, 0
      %p111 = por %p109, %p110
      %p112 = scmp.ne.s32.totalorder %s104, %s106
      %p113 = scmp.eq.s32.totalorder %s33, 1
      %p114 = por %p112, %p113
      %p115 = scmp.ne.s32.totalorder %s106, %s107
      %p116 = scmp.eq.s32.totalorder %s33, 0
      %p117 = por %p115, %p116
      %p118 = scmp.ne.s32.totalorder %s106, %s107
      %p119 = scmp.eq.s32.totalorder %s34, 1
      %p120 = por %p118, %p119
      %p122 = scmp.ne.s32.totalorder %s107, %s121
      %p123 = scmp.eq.s32.totalorder %s34, 0
      %p124 = por %p122, %p123
      %s126 = sadd.s32 %s125, 1
      %p129 = scmp.eq.s32.totalorder %s28, 1
      %p130 = scmp.ne.s32.totalorder %s125, %s127
      %p131 = scmp.eq.s32.totalorder %s28, 0
      %p132 = por %p130, %p131
      %p133 = scmp.ne.s32.totalorder %s125, %s127
      %p134 = scmp.eq.s32.totalorder %s33, 1
      %p135 = por %p133, %p134
      %p136 = scmp.ne.s32.totalorder %s127, %s128
      %p137 = scmp.eq.s32.totalorder %s33, 0
      %p138 = por %p136, %p137
      %p139 = scmp.ne.s32.totalorder %s127, %s128
      %p140 = scmp.eq.s32.totalorder %s34, 1
      %p141 = por %p139, %p140
      %p143 = scmp.ne.s32.totalorder %s128, %s142
      %p144 = scmp.eq.s32.totalorder %s34, 0
      %p145 = por %p143, %p144
      %s147 = sadd.s32 %s146, 1
      %p150 = scmp.eq.s32.totalorder %s28, 1
      %p151 = scmp.ne.s32.totalorder %s146, %s148
      %p152 = scmp.eq.s32.totalorder %s28, 0
      %p153 = por %p151, %p152
      %p154 = scmp.ne.s32.totalorder %s146, %s148
      %p155 = scmp.eq.s32.totalorder %s33, 1
      %p156 = por %p154, %p155
      %p157 = scmp.ne.s32.totalorder %s148, %s149
      %p158 = scmp.eq.s32.totalorder %s33, 0
      %p159 = por %p157, %p158
      %p160 = scmp.ne.s32.totalorder %s148, %s149
      %p161 = scmp.eq.s32.totalorder %s34, 1
      %p162 = por %p160, %p161
      %p164 = scmp.ne.s32.totalorder %s149, %s163
      %p165 = scmp.eq.s32.totalorder %s34, 0
      %p166 = por %p164, %p165
      %s168 = sadd.s32 %s167, 1
      %p171 = scmp.eq.s32.totalorder %s28, 1
      %p172 = scmp.ne.s32.totalorder %s167, %s169
      %p173 = scmp.eq.s32.totalorder %s28, 0
      %p174 = por %p172, %p173
      %p175 = scmp.ne.s32.totalorder %s167, %s169
      %p176 = scmp.eq.s32.totalorder %s33, 1
      %p177 = por %p175, %p176
      %p178 = scmp.ne.s32.totalorder %s169, %s170
      %p179 = scmp.eq.s32.totalorder %s33, 0
      %p180 = por %p178, %p179
      %p181 = scmp.ne.s32.totalorder %s169, %s170
      %p182 = scmp.eq.s32.totalorder %s34, 1
      %p183 = por %p181, %p182
      %p185 = scmp.ne.s32.totalorder %s170, %s184
      %p186 = scmp.eq.s32.totalorder %s34, 0
      %p187 = por %p185, %p186
      %s189 = sadd.s32 %s188, 1
      %p192 = scmp.eq.s32.totalorder %s28, 1
      %p193 = scmp.ne.s32.totalorder %s188, %s190
      %p194 = scmp.eq.s32.totalorder %s28, 0
      %p195 = por %p193, %p194
      %p196 = scmp.ne.s32.totalorder %s188, %s190
      %p197 = scmp.eq.s32.totalorder %s33, 1
      %p198 = por %p196, %p197
      %p199 = scmp.ne.s32.totalorder %s190, %s191
      %p200 = scmp.eq.s32.totalorder %s33, 0
      %p201 = por %p199, %p200
      %p202 = scmp.ne.s32.totalorder %s190, %s191
      %p203 = scmp.eq.s32.totalorder %s34, 1
      %p204 = por %p202, %p203
      %p206 = scmp.ne.s32.totalorder %s191, %s205
      %p207 = scmp.eq.s32.totalorder %s34, 0
      %p208 = por %p206, %p207
      %s210 = sadd.s32 %s209, 1
      %p213 = scmp.eq.s32.totalorder %s28, 1
      %p214 = scmp.ne.s32.totalorder %s209, %s211
      %p215 = scmp.eq.s32.totalorder %s28, 0
      %p216 = por %p214, %p215
      %p217 = scmp.ne.s32.totalorder %s209, %s211
      %p218 = scmp.eq.s32.totalorder %s33, 1
      %p219 = por %p217, %p218
      %p220 = scmp.ne.s32.totalorder %s211, %s212
      %p221 = scmp.eq.s32.totalorder %s33, 0
      %p222 = por %p220, %p221
      %p223 = scmp.ne.s32.totalorder %s211, %s212
      %p224 = scmp.eq.s32.totalorder %s34, 1
      %p225 = por %p223, %p224
      %p227 = scmp.ne.s32.totalorder %s212, %s226
      %p228 = scmp.eq.s32.totalorder %s34, 0
      %p229 = por %p227, %p228
      %s231 = sadd.s32 %s230, 1
      %p234 = scmp.eq.s32.totalorder %s28, 1
      %p235 = scmp.ne.s32.totalorder %s230, %s232
      %p236 = scmp.eq.s32.totalorder %s28, 0
      %p237 = por %p235, %p236
      %p238 = scmp.ne.s32.totalorder %s230, %s232
      %p239 = scmp.eq.s32.totalorder %s33, 1
      %p240 = por %p238, %p239
      %p241 = scmp.ne.s32.totalorder %s232, %s233
      %p242 = scmp.eq.s32.totalorder %s33, 0
      %p243 = por %p241, %p242
      %p244 = scmp.ne.s32.totalorder %s232, %s233
      %p245 = scmp.eq.s32.totalorder %s34, 1
      %p246 = por %p244, %p245
      %p248 = scmp.ne.s32.totalorder %s233, %s247
      %p249 = scmp.eq.s32.totalorder %s34, 0
      %p250 = por %p248, %p249
      %s252 = sadd.s32 %s251, 1
      %p255 = scmp.eq.s32.totalorder %s28, 1
      %p256 = scmp.ne.s32.totalorder %s251, %s253
      %p257 = scmp.eq.s32.totalorder %s28, 0
      %p258 = por %p256, %p257
      %p259 = scmp.ne.s32.totalorder %s251, %s253
      %p260 = scmp.eq.s32.totalorder %s33, 1
      %p261 = por %p259, %p260
      %p262 = scmp.ne.s32.totalorder %s253, %s254
      %p263 = scmp.eq.s32.totalorder %s33, 0
      %p264 = por %p262, %p263
      %p265 = scmp.ne.s32.totalorder %s253, %s254
      %p266 = scmp.eq.s32.totalorder %s34, 1
      %p267 = por %p265, %p266
      %p269 = scmp.ne.s32.totalorder %s254, %s268
      %p270 = scmp.eq.s32.totalorder %s34, 0
      %p271 = por %p269, %p270
      %s273 = sadd.s32 %s272, 1
      %p276 = scmp.eq.s32.totalorder %s28, 1
      %p277 = scmp.ne.s32.totalorder %s272, %s274
      %p278 = scmp.eq.s32.totalorder %s28, 0
      %p279 = por %p277, %p278
      %p280 = scmp.ne.s32.totalorder %s272, %s274
      %p281 = scmp.eq.s32.totalorder %s33, 1
      %p282 = por %p280, %p281
      %p283 = scmp.ne.s32.totalorder %s274, %s275
      %p284 = scmp.eq.s32.totalorder %s33, 0
      %p285 = por %p283, %p284
      %p286 = scmp.ne.s32.totalorder %s274, %s275
      %p287 = scmp.eq.s32.totalorder %s34, 1
      %p288 = por %p286, %p287
      %p290 = scmp.ne.s32.totalorder %s275, %s289
      %p291 = scmp.eq.s32.totalorder %s34, 0
      %p292 = por %p290, %p291
      %s294 = sadd.s32 %s293, 1
      %p297 = scmp.eq.s32.totalorder %s28, 1
      %p298 = scmp.ne.s32.totalorder %s293, %s295
      %p299 = scmp.eq.s32.totalorder %s28, 0
      %p300 = por %p298, %p299
      %p301 = scmp.ne.s32.totalorder %s293, %s295
      %p302 = scmp.eq.s32.totalorder %s33, 1
      %p303 = por %p301, %p302
      %p304 = scmp.ne.s32.totalorder %s295, %s296
      %p305 = scmp.eq.s32.totalorder %s33, 0
      %p306 = por %p304, %p305
      %p307 = scmp.ne.s32.totalorder %s295, %s296
      %p308 = scmp.eq.s32.totalorder %s34, 1
      %p309 = por %p307, %p308
      %p311 = scmp.ne.s32.totalorder %s296, %s310
      %p312 = scmp.eq.s32.totalorder %s34, 0
      %p313 = por %p311, %p312
      %s315 = sadd.s32 %s314, 1
      %p318 = scmp.eq.s32.totalorder %s28, 1
      %p319 = scmp.ne.s32.totalorder %s314, %s316
      %p320 = scmp.eq.s32.totalorder %s28, 0
      %p321 = por %p319, %p320
      %p322 = scmp.ne.s32.totalorder %s314, %s316
      %p323 = scmp.eq.s32.totalorder %s33, 1
      %p324 = por %p322, %p323
      %p325 = scmp.ne.s32.totalorder %s316, %s317
      %p326 = scmp.eq.s32.totalorder %s33, 0
      %p327 = por %p325, %p326
      %p328 = scmp.ne.s32.totalorder %s316, %s317
      %p329 = scmp.eq.s32.totalorder %s34, 1
      %p330 = por %p328, %p329
      %p332 = scmp.ne.s32.totalorder %s317, %s331
      %p333 = scmp.eq.s32.totalorder %s34, 0
      %p334 = por %p332, %p333
      %s336 = sadd.s32 %s335, 1
      %p339 = scmp.eq.s32.totalorder %s28, 1
      %p340 = scmp.ne.s32.totalorder %s335, %s337
      %p341 = scmp.eq.s32.totalorder %s28, 0
      %p342 = por %p340, %p341
      %p343 = scmp.ne.s32.totalorder %s335, %s337
      %p344 = scmp.eq.s32.totalorder %s33, 1
      %p345 = por %p343, %p344
      %p346 = scmp.ne.s32.totalorder %s337, %s338
      %p347 = scmp.eq.s32.totalorder %s33, 0
      %p348 = por %p346, %p347
      %p349 = scmp.ne.s32.totalorder %s337, %s338
      %p350 = scmp.eq.s32.totalorder %s34, 1
      %p351 = por %p349, %p350
      %p353 = scmp.ne.s32.totalorder %s338, %s352
      %p354 = scmp.eq.s32.totalorder %s34, 0
      %p355 = por %p353, %p354
      %s357 = sadd.s32 %s356, 1
      %p360 = scmp.eq.s32.totalorder %s28, 1
      %p361 = scmp.ne.s32.totalorder %s356, %s358
      %p362 = scmp.eq.s32.totalorder %s28, 0
      %p363 = por %p361, %p362
      %p364 = scmp.ne.s32.totalorder %s356, %s358
      %p365 = scmp.eq.s32.totalorder %s33, 1
      %p366 = por %p364, %p365
      %p367 = scmp.ne.s32.totalorder %s358, %s359
      %p368 = scmp.eq.s32.totalorder %s33, 0
      %p369 = por %p367, %p368
      %p370 = scmp.ne.s32.totalorder %s358, %s359
      %p371 = scmp.eq.s32.totalorder %s34, 1
      %p372 = por %p370, %p371
      %p374 = scmp.ne.s32.totalorder %s359, %s373
      %p375 = scmp.eq.s32.totalorder %s34, 0
      %p376 = por %p374, %p375
      %s378 = sadd.s32 %s377, 1
      %p381 = scmp.eq.s32.totalorder %s28, 1
      %p382 = scmp.ne.s32.totalorder %s377, %s379
      %p383 = scmp.eq.s32.totalorder %s28, 0
      %p384 = por %p382, %p383
      %p385 = scmp.ne.s32.totalorder %s377, %s379
      %p386 = scmp.eq.s32.totalorder %s33, 1
      %p387 = por %p385, %p386
      %p388 = scmp.ne.s32.totalorder %s379, %s380
      %p389 = scmp.eq.s32.totalorder %s33, 0
      %p390 = por %p388, %p389
      %p391 = scmp.ne.s32.totalorder %s379, %s380
      %p392 = scmp.eq.s32.totalorder %s34, 1
      %p393 = por %p391, %p392
      %p395 = scmp.ne.s32.totalorder %s380, %s394
      %p396 = scmp.eq.s32.totalorder %s34, 0
      %p397 = por %p395, %p396
      %s399 = sadd.s32 %s398, 1
      %p402 = scmp.eq.s32.totalorder %s28, 1
      %p403 = scmp.ne.s32.totalorder %s398, %s400
      %p404 = scmp.eq.s32.totalorder %s28, 0
      %p405 = por %p403, %p404
      %p406 = scmp.ne.s32.totalorder %s398, %s400
      %p407 = scmp.eq.s32.totalorder %s33, 1
      %p408 = por %p406, %p407
      %p409 = scmp.ne.s32.totalorder %s400, %s401
      %p410 = scmp.eq.s32.totalorder %s33, 0
      %p411 = por %p409, %p410
      %p412 = scmp.ne.s32.totalorder %s400, %s401
      %p413 = scmp.eq.s32.totalorder %s34, 1
      %p414 = por %p412, %p413
      %p416 = scmp.ne.s32.totalorder %s401, %s415
      %p417 = scmp.eq.s32.totalorder %s34, 0
      %p418 = por %p416, %p417
      %s420 = sadd.s32 %s419, 1
      %p423 = scmp.eq.s32.totalorder %s28, 1
      %p424 = scmp.ne.s32.totalorder %s419, %s421
      %p425 = scmp.eq.s32.totalorder %s28, 0
      %p426 = por %p424, %p425
      %p427 = scmp.ne.s32.totalorder %s419, %s421
      %p428 = scmp.eq.s32.totalorder %s33, 1
      %p429 = por %p427, %p428
      %p430 = scmp.ne.s32.totalorder %s421, %s422
      %p431 = scmp.eq.s32.totalorder %s33, 0
      %p432 = por %p430, %p431
      %p433 = scmp.ne.s32.totalorder %s421, %s422
      %p434 = scmp.eq.s32.totalorder %s34, 1
      %p435 = por %p433, %p434
      %p437 = scmp.ne.s32.totalorder %s422, %s436
      %p438 = scmp.eq.s32.totalorder %s34, 0
      %p439 = por %p437, %p438
      %s440 = ssub.s32 %s28, %s35
      %p441 = scmp.eq.s32.totalorder %s440, 0
      %s443 = sadd.s32 %s442, 1
      %s444 = scalar_select %p441, %s442, %s443
      %p447 = pneg %p441
      %p448 = scmp.eq.s32.totalorder %s28, 1
      %p449 = por %p447, %p448
      %p450 = scmp.ne.s32.totalorder %s442, %s445
      %p451 = scmp.eq.s32.totalorder %s28, 0
      %p452 = por %p450, %p451
      %p453 = scmp.ne.s32.totalorder %s442, %s445
      %p454 = scmp.eq.s32.totalorder %s33, 1
      %p455 = por %p453, %p454
      %p456 = scmp.ne.s32.totalorder %s445, %s446
      %p457 = scmp.eq.s32.totalorder %s33, 0
      %p458 = por %p456, %p457
      %p459 = scmp.ne.s32.totalorder %s445, %s446
      %p460 = scmp.eq.s32.totalorder %s34, 1
      %p461 = por %p459, %p460
      %p463 = scmp.ne.s32.totalorder %s446, %s462
      %p464 = scmp.eq.s32.totalorder %s34, 0
      %p465 = por %p463, %p464
      %p466 = scmp.le.s32.totalorder 1, %s28
      %p467 = scmp.lt.s32.totalorder %s28, 3
      %p468 = pnand %p466, %p467
      %p469 = pneg %p468
      // Predicated region
      $region9: #{net_forward.1} parent=5 // pred_check
        _
      $region10: #{net_forward.1} parent=5 // pred_check_branch
        %471 = sbr.rel (%p468) target = $region12
      $region11: #{net_forward.1} parent=5 // pred_region
        %s472 = ssub.s32 %s28, 1
        // Predicated region
        $region13: #{net_forward.1} parent=11 // pred_check
          %p473 = pneg %p75
        $region14: #{net_forward.1} parent=11 // pred_check_branch
          %475 = sbr.rel (%p473) target = $region16
        $region15: #{net_forward.1} parent=11 // pred_region
          _
        $region16: #{net_forward.1} parent=11 // pred_fallthru
          _
        // Predicated region
        $region17: #{net_forward.1} parent=11 // pred_check
          %p476 = pneg %p96
        $region18: #{net_forward.1} parent=11 // pred_check_branch
          %478 = sbr.rel (%p476) target = $region20
        $region19: #{net_forward.1} parent=11 // pred_region
          _
        $region20: #{net_forward.1} parent=11 // pred_fallthru
          _
        // Predicated region
        $region21: #{net_forward.1} parent=11 // pred_check
          %p479 = pneg %p117
        $region22: #{net_forward.1} parent=11 // pred_check_branch
          %481 = sbr.rel (%p479) target = $region24
        $region23: #{net_forward.1} parent=11 // pred_region
          _
        $region24: #{net_forward.1} parent=11 // pred_fallthru
          _
        // Predicated region
        $region25: #{net_forward.1} parent=11 // pred_check
          %p482 = pneg %p138
        $region26: #{net_forward.1} parent=11 // pred_check_branch
          %484 = sbr.rel (%p482) target = $region28
        $region27: #{net_forward.1} parent=11 // pred_region
          _
        $region28: #{net_forward.1} parent=11 // pred_fallthru
          _
        // Predicated region
        $region29: #{net_forward.1} parent=11 // pred_check
          %p485 = pneg %p159
        $region30: #{net_forward.1} parent=11 // pred_check_branch
          %487 = sbr.rel (%p485) target = $region32
        $region31: #{net_forward.1} parent=11 // pred_region
          _
        $region32: #{net_forward.1} parent=11 // pred_fallthru
          _
        // Predicated region
        $region33: #{net_forward.1} parent=11 // pred_check
          %p488 = pneg %p180
        $region34: #{net_forward.1} parent=11 // pred_check_branch
          %490 = sbr.rel (%p488) target = $region36
        $region35: #{net_forward.1} parent=11 // pred_region
          _
        $region36: #{net_forward.1} parent=11 // pred_fallthru
          _
        // Predicated region
        $region37: #{net_forward.1} parent=11 // pred_check
          %p491 = pneg %p201
        $region38: #{net_forward.1} parent=11 // pred_check_branch
          %493 = sbr.rel (%p491) target = $region40
        $region39: #{net_forward.1} parent=11 // pred_region
          _
        $region40: #{net_forward.1} parent=11 // pred_fallthru
          _
        // Predicated region
        $region41: #{net_forward.1} parent=11 // pred_check
          %p494 = pneg %p222
        $region42: #{net_forward.1} parent=11 // pred_check_branch
          %496 = sbr.rel (%p494) target = $region44
        $region43: #{net_forward.1} parent=11 // pred_region
          _
        $region44: #{net_forward.1} parent=11 // pred_fallthru
          _
        // Predicated region
        $region45: #{net_forward.1} parent=11 // pred_check
          %p497 = pneg %p243
        $region46: #{net_forward.1} parent=11 // pred_check_branch
          %499 = sbr.rel (%p497) target = $region48
        $region47: #{net_forward.1} parent=11 // pred_region
          _
        $region48: #{net_forward.1} parent=11 // pred_fallthru
          _
        // Predicated region
        $region49: #{net_forward.1} parent=11 // pred_check
          %p500 = pneg %p264
        $region50: #{net_forward.1} parent=11 // pred_check_branch
          %502 = sbr.rel (%p500) target = $region52
        $region51: #{net_forward.1} parent=11 // pred_region
          _
        $region52: #{net_forward.1} parent=11 // pred_fallthru
          _
        // Predicated region
        $region53: #{net_forward.1} parent=11 // pred_check
          %p503 = pneg %p285
        $region54: #{net_forward.1} parent=11 // pred_check_branch
          %505 = sbr.rel (%p503) target = $region56
        $region55: #{net_forward.1} parent=11 // pred_region
          _
        $region56: #{net_forward.1} parent=11 // pred_fallthru
          _
        // Predicated region
        $region57: #{net_forward.1} parent=11 // pred_check
          %p506 = pneg %p306
        $region58: #{net_forward.1} parent=11 // pred_check_branch
          %508 = sbr.rel (%p506) target = $region60
        $region59: #{net_forward.1} parent=11 // pred_region
          _
        $region60: #{net_forward.1} parent=11 // pred_fallthru
          _
        // Predicated region
        $region61: #{net_forward.1} parent=11 // pred_check
          %p509 = pneg %p327
        $region62: #{net_forward.1} parent=11 // pred_check_branch
          %511 = sbr.rel (%p509) target = $region64
        $region63: #{net_forward.1} parent=11 // pred_region
          _
        $region64: #{net_forward.1} parent=11 // pred_fallthru
          _
        // Predicated region
        $region65: #{net_forward.1} parent=11 // pred_check
          %p512 = pneg %p348
        $region66: #{net_forward.1} parent=11 // pred_check_branch
          %514 = sbr.rel (%p512) target = $region68
        $region67: #{net_forward.1} parent=11 // pred_region
          _
        $region68: #{net_forward.1} parent=11 // pred_fallthru
          _
        // Predicated region
        $region69: #{net_forward.1} parent=11 // pred_check
          %p515 = pneg %p369
        $region70: #{net_forward.1} parent=11 // pred_check_branch
          %517 = sbr.rel (%p515) target = $region72
        $region71: #{net_forward.1} parent=11 // pred_region
          _
        $region72: #{net_forward.1} parent=11 // pred_fallthru
          _
        // Predicated region
        $region73: #{net_forward.1} parent=11 // pred_check
          %p518 = pneg %p390
        $region74: #{net_forward.1} parent=11 // pred_check_branch
          %520 = sbr.rel (%p518) target = $region76
        $region75: #{net_forward.1} parent=11 // pred_region
          _
        $region76: #{net_forward.1} parent=11 // pred_fallthru
          _
        // Predicated region
        $region77: #{net_forward.1} parent=11 // pred_check
          %p521 = pneg %p411
        $region78: #{net_forward.1} parent=11 // pred_check_branch
          %523 = sbr.rel (%p521) target = $region80
        $region79: #{net_forward.1} parent=11 // pred_region
          _
        $region80: #{net_forward.1} parent=11 // pred_fallthru
          _
        // Predicated region
        $region81: #{net_forward.1} parent=11 // pred_check
          %p524 = pneg %p432
        $region82: #{net_forward.1} parent=11 // pred_check_branch
          %526 = sbr.rel (%p524) target = $region84
        $region83: #{net_forward.1} parent=11 // pred_region
          _
        $region84: #{net_forward.1} parent=11 // pred_fallthru
          _
      $region12: #{net_forward.1} parent=5 // pred_fallthru
        _
      %p527 = scmp.lt.s32.totalorder %s28, 2
      // Predicated region
      $region85: #{net_forward.1} parent=5 // pred_check
        %p528 = pneg %p527
      $region86: #{net_forward.1} parent=5 // pred_check_branch
        %530 = sbr.rel (%p528) target = $region88
      $region87: #{net_forward.1} parent=5 // pred_region
        // Predicated region
        $region89: #{net_forward.1} parent=87 // pred_check
          %p531 = pneg %p48
        $region90: #{net_forward.1} parent=87 // pred_check_branch
          %533 = sbr.rel (%p531) target = $region92
        $region91: #{net_forward.1} parent=87 // pred_region
          %p534 = scmp.lt.s32.totalorder %s28, 1
          %s535 = scalar_select %p534, %s28, 1
          %s536 = smul.addr %s535, 4
          %s537 = smul.addr %s536, 8
          %s538 = scalar_lea.vmem %s0, %s537
        $region92: #{net_forward.1} parent=87 // pred_fallthru
          _
      $region88: #{net_forward.1} parent=5 // pred_fallthru
        _
      %p539 = scmp.le.s32.totalorder 1, %s28
      %p540 = scmp.lt.s32.totalorder %s28, 3
      %p541 = pnand %p539, %p540
      %p542 = pneg %p541
      // Predicated region
      $region93: #{net_forward.1} parent=5 // pred_check
        _
      $region94: #{net_forward.1} parent=5 // pred_check_branch
        %544 = sbr.rel (%p541) target = $region96
      $region95: #{net_forward.1} parent=5 // pred_region
        %s545 = ssub.s32 %s28, 1
        %p546 = scmp.lt.s32.totalorder %s33, 1
        %s547 = scalar_select %p546, %s33, 1
        %s548 = smul.addr %s547, 4
        %s549 = smul.addr %s548, 8
        %s550 = scalar_lea.vmem %s0, %s549
        %p551 = pneg %p54
        %p552 = pneg %p51
        %p553 = pneg %p75
        %p554 = pneg %p72
        %p555 = pneg %p96
        %p556 = pneg %p93
        %p557 = pneg %p117
        %p558 = pneg %p114
        %p559 = pneg %p138
        %p560 = pneg %p135
        %p561 = pneg %p159
        %p562 = pneg %p156
        %p563 = pneg %p180
        %p564 = pneg %p177
        %p565 = pneg %p201
        %p566 = pneg %p198
        %p567 = pneg %p222
        %p568 = pneg %p219
        %p569 = pneg %p243
        %p570 = pneg %p240
        %p571 = pneg %p264
        %p572 = pneg %p261
        %p573 = pneg %p285
        %p574 = pneg %p282
        %p575 = pneg %p306
        %p576 = pneg %p303
        %p577 = pneg %p327
        %p578 = pneg %p324
        %p579 = pneg %p348
        %p580 = pneg %p345
        %p581 = pneg %p369
        %p582 = pneg %p366
        %p583 = pneg %p390
        %p584 = pneg %p387
        %p585 = pneg %p411
        %p586 = pneg %p408
        %p587 = pneg %p432
        %p588 = pneg %p429
        %p589 = pneg %p458
        %p590 = pneg %p455
        %s591 = sand.u32 %s445, 1
        %s592 = scalar_lea.sflag [#allocation7], %s591
        %s593 = sand.u32 %s445, 1
        %s594 = scalar_lea.vmem [#allocation6], %s593
        %p595 = scmp.lt.s32.totalorder %s33, 1
        %s596 = scalar_select %p595, %s33, 1
        %s597 = smul.addr %s596, 4
        %s598 = smul.addr %s597, 8
        %s599 = scalar_lea.vmem %s0, %s598
        %v600 = vld [vmem:[%s599] sm:$0xff]
        %v601 = vld [vmem:[%s599 + $0x8] sm:$0xff]
        %v602 = vld [vmem:[%s599 + $0x10] sm:$0xff]
        %v603 = vld [vmem:[%s599 + $0x18] sm:$0x3]
        %v604 = vld [vmem:[%s1] sm:$0xff]
        %v605 = vld [vmem:[%s1 + $0x8] sm:$0xff]
        %v606 = vld [vmem:[%s1 + $0x10] sm:$0xff]
        %v607 = vld [vmem:[%s1 + $0x18] sm:$0xff]
        %v608 = vld [vmem:[%s1 + $0x20] sm:$0xff]
        %v609 = vld [vmem:[%s1 + $0x28] sm:$0xff]
        %v610 = vld [vmem:[%s1 + $0x30] sm:$0xf]
        %v611 = vld [vmem:[%s1 + $0x38] sm:$0xf]
        %v612 = vld [vmem:[%s599 + $0x1] sm:$0xff]
        %v613 = vld [vmem:[%s599 + $0x9] sm:$0xff]
        %v614 = vld [vmem:[%s599 + $0x11] sm:$0xff]
        %v615 = vld [vmem:[%s599 + $0x19] sm:$0x3]
        %s616 = scalar_lea.vmem %s1, 64
        %v617 = vld [vmem:[%s616] sm:$0xff]
        %v618 = vld [vmem:[%s616 + $0x8] sm:$0xff]
        %v619 = vld [vmem:[%s616 + $0x10] sm:$0xff]
        %v620 = vld [vmem:[%s616 + $0x18] sm:$0xff]
        %v621 = vld [vmem:[%s616 + $0x20] sm:$0xff]
        %v622 = vld [vmem:[%s616 + $0x28] sm:$0xff]
        %v623 = vld [vmem:[%s616 + $0x30] sm:$0xf]
        %v624 = vld [vmem:[%s616 + $0x38] sm:$0xf]
        %vm625 = vcmask 228352
        %v627 = vsel %vm625, %v612, 0
        %v630 = vsel %vm625, %v613, 0
        %v633 = vsel %vm625, %v614, 0
        %v636 = vsel %vm625, %v615, 0
        %vm638 = vcmask 1043456
        %v640 = vsel %vm638, %v623, 0
        %v643 = vsel %vm638, %v624, 0
        %645 = vmatprep.subr.mxu0 0.0
        %646 = vmatpush1.msra.mxu0 0.0
        %647 = vmatprep.subr.mxu0 0.0
        %648 = vmatpush1.msra.mxu0 0.0
        %649 = vmatprep.subr.mxu0 0.0
        %650 = vmatpush1.msra.mxu0 0.0
        %651 = vmatprep.subr.mxu0 0.0
        %652 = vmatpush1.msra.mxu0 0.0
        %653 = vmatprep.subr.mxu0 0.0
        %654 = vmatpush1.msra.mxu0 0.0
        %655 = vmatprep.subr.mxu0 0.0
        %656 = vmatpush1.msra.mxu0 0.0
        %657 = vmatprep.subr.mxu0 0.0
        %658 = vmatpush1.msra.mxu0 0.0
        %659 = vmatprep.subr.mxu0 0.0
        %660 = vmatpush1.msra.mxu0 0.0
        %661 = vmatprep.subr.mxu0 0.0
        %662 = vmatpush1.msra.mxu0 0.0
        %663 = vmatprep.subr.mxu0 0.0
        %664 = vmatpush1.msra.mxu0 0.0
        %665 = vmatprep.subr.mxu0 0.0
        %666 = vmatpush1.msra.mxu0 0.0
        %667 = vmatprep.subr.mxu0 0.0
        %668 = vmatpush1.msra.mxu0 0.0
        %669 = vmatprep.subr.mxu0 %v643
        %670 = vmatpush1.msra.mxu0 %v640
        %671 = vmatprep.subr.mxu0 %v622
        %672 = vmatpush1.msra.mxu0 %v621
        %673 = vmatprep.subr.mxu0 %v620
        %674 = vmatpush1.msra.mxu0 %v619
        %675 = vmatprep.subr.mxu0 %v618
        %676 = vmatpush1.msra.mxu0 %v617
        %677 = vmatprep.subr.mxu0 0.0
        %678 = vmatpush2.msra.mxu0 0.0
        %679 = vmatprep.subr.mxu0 0.0
        %680 = vmatpush2.msra.mxu0 0.0
        %681 = vmatprep.subr.mxu0 0.0
        %682 = vmatpush2.msra.mxu0 0.0
        %683 = vmatprep.subr.mxu0 0.0
        %684 = vmatpush2.msra.mxu0 0.0
        %685 = vmatprep.subr.mxu0 0.0
        %686 = vmatpush2.msra.mxu0 0.0
        %687 = vmatprep.subr.mxu0 0.0
        %688 = vmatpush2.msra.mxu0 0.0
        %689 = vmatprep.subr.mxu0 0.0
        %690 = vmatpush2.msra.mxu0 0.0
        %691 = vmatprep.subr.mxu0 0.0
        %692 = vmatpush2.msra.mxu0 0.0
        %693 = vmatprep.subr.mxu0 0.0
        %694 = vmatpush2.msra.mxu0 0.0
        %695 = vmatprep.subr.mxu0 0.0
        %696 = vmatpush2.msra.mxu0 0.0
        %697 = vmatprep.subr.mxu0 0.0
        %698 = vmatpush2.msra.mxu0 0.0
        %699 = vmatprep.subr.mxu0 0.0
        %700 = vmatpush2.msra.mxu0 0.0
        %701 = vmatprep.subr.mxu0 0.0
        %702 = vmatpush2.msra.mxu0 0.0
        %703 = vmatprep.subr.mxu0 0.0
        %704 = vmatpush2.msra.mxu0 0.0
        %705 = vmatprep.subr.mxu0 0.0
        %706 = vmatpush2.msra.mxu0 0.0
        %707 = vmatprep.subr.mxu0 0.0
        %708 = vmatpush2.msra.mxu0 0.0
        %709 = vmatprep.mubr.f32.mxu0 0.0
        %710 = vmatmul.mubr.f32.gmra.mxu0 %v627
        %v711 = vpop.f32.mrf.mxu0
        %v712 = vadd.f32 0.0, %v711
        %v713 = vpop.f32.mrf.mxu0
        %v714 = vadd.f32 0.0, %v713
        %715 = vmatprep.mubr.f32.mxu0 0.0
        %716 = vmatmul.mubr.f32.gmra.mxu0 %v630
        %v717 = vpop.f32.mrf.mxu0
        %v718 = vadd.f32 0.0, %v717
        %v719 = vpop.f32.mrf.mxu0
        %v720 = vadd.f32 0.0, %v719
        %721 = vmatprep.mubr.f32.mxu0 0.0
        %722 = vmatmul.mubr.f32.gmra.mxu0 %v633
        %v723 = vpop.f32.mrf.mxu0
        %v724 = vadd.f32 0.0, %v723
        %v725 = vpop.f32.mrf.mxu0
        %v726 = vadd.f32 0.0, %v725
        %727 = vmatprep.mubr.f32.mxu0 0.0
        %728 = vmatmul.mubr.f32.gmra.mxu0 %v636
        %v729 = vpop.f32.mrf.mxu0
        %v730 = vadd.f32 0.0, %v729
        %v731 = vpop.f32.mrf.mxu0
        %v732 = vadd.f32 0.0, %v731
        %733 = vdwg.mxu0
        %v735 = vsel %vm625, %v600, 0
        %v738 = vsel %vm625, %v601, 0
        %v741 = vsel %vm625, %v602, 0
        %v744 = vsel %vm625, %v603, 0
        %v747 = vsel %vm638, %v610, 0
        %v750 = vsel %vm638, %v611, 0
        %752 = vmatprep.subr.mxu0 0.0
        %753 = vmatpush1.msra.mxu0 0.0
        %754 = vmatprep.subr.mxu0 0.0
        %755 = vmatpush1.msra.mxu0 0.0
        %756 = vmatprep.subr.mxu0 0.0
        %757 = vmatpush1.msra.mxu0 0.0
        %758 = vmatprep.subr.mxu0 0.0
        %759 = vmatpush1.msra.mxu0 0.0
        %760 = vmatprep.subr.mxu0 0.0
        %761 = vmatpush1.msra.mxu0 0.0
        %762 = vmatprep.subr.mxu0 0.0
        %763 = vmatpush1.msra.mxu0 0.0
        %764 = vmatprep.subr.mxu0 0.0
        %765 = vmatpush1.msra.mxu0 0.0
        %766 = vmatprep.subr.mxu0 0.0
        %767 = vmatpush1.msra.mxu0 0.0
        %768 = vmatprep.subr.mxu0 0.0
        %769 = vmatpush1.msra.mxu0 0.0
        %770 = vmatprep.subr.mxu0 0.0
        %771 = vmatpush1.msra.mxu0 0.0
        %772 = vmatprep.subr.mxu0 0.0
        %773 = vmatpush1.msra.mxu0 0.0
        %774 = vmatprep.subr.mxu0 0.0
        %775 = vmatpush1.msra.mxu0 0.0
        %776 = vmatprep.subr.mxu0 %v750
        %777 = vmatpush1.msra.mxu0 %v747
        %778 = vmatprep.subr.mxu0 %v609
        %779 = vmatpush1.msra.mxu0 %v608
        %780 = vmatprep.subr.mxu0 %v607
        %781 = vmatpush1.msra.mxu0 %v606
        %782 = vmatprep.subr.mxu0 %v605
        %783 = vmatpush1.msra.mxu0 %v604
        %784 = vmatprep.subr.mxu0 0.0
        %785 = vmatpush2.msra.mxu0 0.0
        %786 = vmatprep.subr.mxu0 0.0
        %787 = vmatpush2.msra.mxu0 0.0
        %788 = vmatprep.subr.mxu0 0.0
        %789 = vmatpush2.msra.mxu0 0.0
        %790 = vmatprep.subr.mxu0 0.0
        %791 = vmatpush2.msra.mxu0 0.0
        %792 = vmatprep.subr.mxu0 0.0
        %793 = vmatpush2.msra.mxu0 0.0
        %794 = vmatprep.subr.mxu0 0.0
        %795 = vmatpush2.msra.mxu0 0.0
        %796 = vmatprep.subr.mxu0 0.0
        %797 = vmatpush2.msra.mxu0 0.0
        %798 = vmatprep.subr.mxu0 0.0
        %799 = vmatpush2.msra.mxu0 0.0
        %800 = vmatprep.subr.mxu0 0.0
        %801 = vmatpush2.msra.mxu0 0.0
        %802 = vmatprep.subr.mxu0 0.0
        %803 = vmatpush2.msra.mxu0 0.0
        %804 = vmatprep.subr.mxu0 0.0
        %805 = vmatpush2.msra.mxu0 0.0
        %806 = vmatprep.subr.mxu0 0.0
        %807 = vmatpush2.msra.mxu0 0.0
        %808 = vmatprep.subr.mxu0 0.0
        %809 = vmatpush2.msra.mxu0 0.0
        %810 = vmatprep.subr.mxu0 0.0
        %811 = vmatpush2.msra.mxu0 0.0
        %812 = vmatprep.subr.mxu0 0.0
        %813 = vmatpush2.msra.mxu0 0.0
        %814 = vmatprep.subr.mxu0 0.0
        %815 = vmatpush2.msra.mxu0 0.0
        %816 = vmatprep.mubr.f32.mxu0 0.0
        %817 = vmatmul.mubr.f32.gmra.mxu0 %v735
        %v818 = vpop.f32.mrf.mxu0
        %v819 = vadd.f32 %v712, %v818
        %v820 = vpop.f32.mrf.mxu0
        %v821 = vadd.f32 %v714, %v820
        %822 = vmatprep.mubr.f32.mxu0 0.0
        %823 = vmatmul.mubr.f32.gmra.mxu0 %v738
        %v824 = vpop.f32.mrf.mxu0
        %v825 = vadd.f32 %v718, %v824
        %v826 = vpop.f32.mrf.mxu0
        %v827 = vadd.f32 %v720, %v826
        %828 = vmatprep.mubr.f32.mxu0 0.0
        %829 = vmatmul.mubr.f32.gmra.mxu0 %v741
        %v830 = vpop.f32.mrf.mxu0
        %v831 = vadd.f32 %v724, %v830
        %v832 = vpop.f32.mrf.mxu0
        %v833 = vadd.f32 %v726, %v832
        %834 = vmatprep.mubr.f32.mxu0 0.0
        %835 = vmatmul.mubr.f32.gmra.mxu0 %v744
        %v836 = vpop.f32.mrf.mxu0
        %v837 = vadd.f32 %v730, %v836
        %v838 = vpop.f32.mrf.mxu0
        %v839 = vadd.f32 %v732, %v838
        %840 = vdwg.mxu0
        %v841 = vld [vmem:[%s599 + $0x2] sm:$0xff]
        %v842 = vld [vmem:[%s599 + $0xa] sm:$0xff]
        %v843 = vld [vmem:[%s599 + $0x12] sm:$0xff]
        %v844 = vld [vmem:[%s599 + $0x1a] sm:$0x3]
        %s845 = scalar_lea.vmem %s1, 128
        %v846 = vld [vmem:[%s845] sm:$0xff]
        %v847 = vld [vmem:[%s845 + $0x8] sm:$0xff]
        %v848 = vld [vmem:[%s845 + $0x10] sm:$0xff]
        %v849 = vld [vmem:[%s845 + $0x18] sm:$0xff]
        %v850 = vld [vmem:[%s845 + $0x20] sm:$0xff]
        %v851 = vld [vmem:[%s845 + $0x28] sm:$0xff]
        %v852 = vld [vmem:[%s845 + $0x30] sm:$0xf]
        %v853 = vld [vmem:[%s845 + $0x38] sm:$0xf]
        %v855 = vsel %vm625, %v841, 0
        %v858 = vsel %vm625, %v842, 0
        %v861 = vsel %vm625, %v843, 0
        %v864 = vsel %vm625, %v844, 0
        %v867 = vsel %vm638, %v852, 0
        %v870 = vsel %vm638, %v853, 0
        %872 = vmatprep.subr.mxu0 0.0
        %873 = vmatpush1.msra.mxu0 0.0
        %874 = vmatprep.subr.mxu0 0.0
        %875 = vmatpush1.msra.mxu0 0.0
        %876 = vmatprep.subr.mxu0 0.0
        %877 = vmatpush1.msra.mxu0 0.0
        %878 = vmatprep.subr.mxu0 0.0
        %879 = vmatpush1.msra.mxu0 0.0
        %880 = vmatprep.subr.mxu0 0.0
        %881 = vmatpush1.msra.mxu0 0.0
        %882 = vmatprep.subr.mxu0 0.0
        %883 = vmatpush1.msra.mxu0 0.0
        %884 = vmatprep.subr.mxu0 0.0
        %885 = vmatpush1.msra.mxu0 0.0
        %886 = vmatprep.subr.mxu0 0.0
        %887 = vmatpush1.msra.mxu0 0.0
        %888 = vmatprep.subr.mxu0 0.0
        %889 = vmatpush1.msra.mxu0 0.0
        %890 = vmatprep.subr.mxu0 0.0
        %891 = vmatpush1.msra.mxu0 0.0
        %892 = vmatprep.subr.mxu0 0.0
        %893 = vmatpush1.msra.mxu0 0.0
        %894 = vmatprep.subr.mxu0 0.0
        %895 = vmatpush1.msra.mxu0 0.0
        %896 = vmatprep.subr.mxu0 %v870
        %897 = vmatpush1.msra.mxu0 %v867
        %898 = vmatprep.subr.mxu0 %v851
        %899 = vmatpush1.msra.mxu0 %v850
        %900 = vmatprep.subr.mxu0 %v849
        %901 = vmatpush1.msra.mxu0 %v848
        %902 = vmatprep.subr.mxu0 %v847
        %903 = vmatpush1.msra.mxu0 %v846
        %904 = vmatprep.subr.mxu0 0.0
        %905 = vmatpush2.msra.mxu0 0.0
        %906 = vmatprep.subr.mxu0 0.0
        %907 = vmatpush2.msra.mxu0 0.0
        %908 = vmatprep.subr.mxu0 0.0
        %909 = vmatpush2.msra.mxu0 0.0
        %910 = vmatprep.subr.mxu0 0.0
        %911 = vmatpush2.msra.mxu0 0.0
        %912 = vmatprep.subr.mxu0 0.0
        %913 = vmatpush2.msra.mxu0 0.0
        %914 = vmatprep.subr.mxu0 0.0
        %915 = vmatpush2.msra.mxu0 0.0
        %916 = vmatprep.subr.mxu0 0.0
        %917 = vmatpush2.msra.mxu0 0.0
        %918 = vmatprep.subr.mxu0 0.0
        %919 = vmatpush2.msra.mxu0 0.0
        %920 = vmatprep.subr.mxu0 0.0
        %921 = vmatpush2.msra.mxu0 0.0
        %922 = vmatprep.subr.mxu0 0.0
        %923 = vmatpush2.msra.mxu0 0.0
        %924 = vmatprep.subr.mxu0 0.0
        %925 = vmatpush2.msra.mxu0 0.0
        %926 = vmatprep.subr.mxu0 0.0
        %927 = vmatpush2.msra.mxu0 0.0
        %928 = vmatprep.subr.mxu0 0.0
        %929 = vmatpush2.msra.mxu0 0.0
        %930 = vmatprep.subr.mxu0 0.0
        %931 = vmatpush2.msra.mxu0 0.0
        %932 = vmatprep.subr.mxu0 0.0
        %933 = vmatpush2.msra.mxu0 0.0
        %934 = vmatprep.subr.mxu0 0.0
        %935 = vmatpush2.msra.mxu0 0.0
        %936 = vmatprep.mubr.f32.mxu0 0.0
        %937 = vmatmul.mubr.f32.gmra.mxu0 %v855
        %v938 = vpop.f32.mrf.mxu0
        %v939 = vadd.f32 0.0, %v938
        %v940 = vpop.f32.mrf.mxu0
        %v941 = vadd.f32 0.0, %v940
        %942 = vmatprep.mubr.f32.mxu0 0.0
        %943 = vmatmul.mubr.f32.gmra.mxu0 %v858
        %v944 = vpop.f32.mrf.mxu0
        %v945 = vadd.f32 0.0, %v944
        %v946 = vpop.f32.mrf.mxu0
        %v947 = vadd.f32 0.0, %v946
        %948 = vmatprep.mubr.f32.mxu0 0.0
        %949 = vmatmul.mubr.f32.gmra.mxu0 %v861
        %v950 = vpop.f32.mrf.mxu0
        %v951 = vadd.f32 0.0, %v950
        %v952 = vpop.f32.mrf.mxu0
        %v953 = vadd.f32 0.0, %v952
        %954 = vmatprep.mubr.f32.mxu0 0.0
        %955 = vmatmul.mubr.f32.gmra.mxu0 %v864
        %v956 = vpop.f32.mrf.mxu0
        %v957 = vadd.f32 0.0, %v956
        %v958 = vpop.f32.mrf.mxu0
        %v959 = vadd.f32 0.0, %v958
        %960 = vdwg.mxu0
        %v961 = vadd.f32 %v819, %v939
        %v962 = vadd.f32 %v821, %v941
        %v963 = vadd.f32 %v825, %v945
        %v964 = vadd.f32 %v827, %v947
        %v965 = vadd.f32 %v831, %v951
        %v966 = vadd.f32 %v833, %v953
        %v967 = vadd.f32 %v837, %v957
        %v968 = vadd.f32 %v839, %v959
        %v969 = vmax.f32 %v961, 0.0
        %v970 = vmax.f32 %v962, 0.0
        %v971 = vmax.f32 %v963, 0.0
        %v972 = vmax.f32 %v964, 0.0
        %v973 = vmax.f32 %v965, 0.0
        %v974 = vmax.f32 %v966, 0.0
        %v975 = vmax.f32 %v967, 0.0
        %v976 = vmax.f32 %v968, 0.0
        %v977 = vld [vmem:[%s2] ss:$2 sm:$0x3]
        %v979 = vlaneseq
        %v980 = vshrl.u32 %v979, 7
        %v981 = vsub.s32 0, %v980
        %v982 = vrot.slane %v977, %v981
        %v983 = vlaneseq
        %v984 = vshrl.u32 %v983, 7
        %v985 = vsub.s32 1, %v984
        %v986 = vrot.slane %v977, %v985
        %v989 = vmul.f32 %v969, %v982
        %v990 = vmul.f32 %v970, %v986
        %v991 = vmul.f32 %v971, %v982
        %v992 = vmul.f32 %v972, %v986
        %v993 = vmul.f32 %v973, %v982
        %v994 = vmul.f32 %v974, %v986
        %v995 = vmul.f32 %v975, %v982
        %v996 = vmul.f32 %v976, %v986
        %s997 = scalar_lea.vmem %s2, 1
        %v998 = vld [vmem:[%s997] ss:$2 sm:$0x3]
        %v1000 = vlaneseq
        %v1001 = vshrl.u32 %v1000, 7
        %v1002 = vsub.s32 0, %v1001
        %v1003 = vrot.slane %v998, %v1002
        %v1004 = vlaneseq
        %v1005 = vshrl.u32 %v1004, 7
        %v1006 = vsub.s32 1, %v1005
        %v1007 = vrot.slane %v998, %v1006
        %v1010 = vadd.f32 %v989, %v1003
        %v1011 = vadd.f32 %v990, %v1007
        %v1012 = vadd.f32 %v991, %v1003
        %v1013 = vadd.f32 %v992, %v1007
        %v1014 = vadd.f32 %v993, %v1003
        %v1015 = vadd.f32 %v994, %v1007
        %v1016 = vadd.f32 %v995, %v1003
        %v1017 = vadd.f32 %v996, %v1007
        %1018 = vst [vmem:[#allocation2] sm:$0xff] %v1010
        %vm1019 = vcmask 654336
        %1020 = vst.msk [vmem:[#allocation2 + $0x8] sm:$0xff] %vm1019, %v1011
        %1021 = vst [vmem:[#allocation2 + $0x10] sm:$0xff] %v1012
        %1022 = vst.msk [vmem:[#allocation2 + $0x18] sm:$0xff] %vm1019, %v1013
        %1023 = vst [vmem:[#allocation2 + $0x20] sm:$0xff] %v1014
        %1024 = vst.msk [vmem:[#allocation2 + $0x28] sm:$0xff] %vm1019, %v1015
        %1025 = vst [vmem:[#allocation2 + $0x30] sm:$0x3] %v1016
        %vm1026 = vcmask 648192
        %1027 = vst.msk [vmem:[#allocation2 + $0x38] sm:$0x3] %vm1026, %v1017
        %v1028 = vld [vmem:[#allocation2] sm:$0xff]
        %v1029 = vld [vmem:[#allocation2 + $0x8] sm:$0xff]
        %v1030 = vld [vmem:[#allocation2 + $0x10] sm:$0xff]
        %v1031 = vld [vmem:[#allocation2 + $0x18] sm:$0xff]
        %v1032 = vld [vmem:[#allocation2 + $0x20] sm:$0xff]
        %v1033 = vld [vmem:[#allocation2 + $0x28] sm:$0xff]
        %v1034 = vld [vmem:[%s3] sm:$0xff]
        %v1035 = vld [vmem:[%s3 + $0x8] sm:$0xff]
        %v1036 = vld [vmem:[%s3 + $0x10] sm:$0xff]
        %v1037 = vld [vmem:[%s3 + $0x18] sm:$0xff]
        %v1038 = vld [vmem:[%s3 + $0x20] sm:$0xff]
        %v1039 = vld [vmem:[%s3 + $0x28] sm:$0xff]
        %v1040 = vld [vmem:[%s3 + $0x30] sm:$0xff]
        %v1041 = vld [vmem:[%s3 + $0x38] sm:$0xff]
        %v1042 = vld [vmem:[%s3 + $0x40] sm:$0xff]
        %v1043 = vld [vmem:[%s3 + $0x48] sm:$0xff]
        %v1044 = vld [vmem:[%s3 + $0x50] sm:$0xff]
        %v1045 = vld [vmem:[%s3 + $0x58] sm:$0xff]
        %v1046 = vld [vmem:[%s3 + $0x60] sm:$0xff]
        %v1047 = vld [vmem:[%s3 + $0x68] sm:$0xff]
        %v1048 = vld [vmem:[%s3 + $0x70] sm:$0xff]
        %v1049 = vld [vmem:[%s3 + $0x78] sm:$0xff]
        %v1050 = vld [vmem:[%s3 + $0x80] sm:$0xff]
        %v1051 = vld [vmem:[%s3 + $0x88] sm:$0xff]
        %v1052 = vld [vmem:[%s3 + $0x90] sm:$0xff]
        %v1053 = vld [vmem:[%s3 + $0x98] sm:$0xff]
        %v1054 = vld [vmem:[%s3 + $0xa0] sm:$0xff]
        %v1055 = vld [vmem:[%s3 + $0xa8] sm:$0xff]
        %v1056 = vld [vmem:[%s3 + $0xb0] sm:$0xff]
        %v1057 = vld [vmem:[%s3 + $0xb8] sm:$0xff]
        %v1058 = vld [vmem:[%s3 + $0xc0] sm:$0xff]
        %v1059 = vld [vmem:[%s3 + $0xc8] sm:$0xff]
        %v1060 = vld [vmem:[%s3 + $0xd0] sm:$0xff]
        %v1061 = vld [vmem:[%s3 + $0xd8] sm:$0xff]
        %v1062 = vld [vmem:[%s3 + $0xe0] sm:$0xff]
        %v1063 = vld [vmem:[%s3 + $0xe8] sm:$0xff]
        %v1064 = vld [vmem:[%s3 + $0xf0] sm:$0xff]
        %v1065 = vld [vmem:[%s3 + $0xf8] sm:$0xff]
        %v1066 = vld [vmem:[%s3 + $0x100] sm:$0xff]
        %v1067 = vld [vmem:[%s3 + $0x108] sm:$0xff]
        %v1068 = vld [vmem:[%s3 + $0x110] sm:$0xff]
        %v1069 = vld [vmem:[%s3 + $0x118] sm:$0xff]
        %v1070 = vld [vmem:[%s3 + $0x120] sm:$0xff]
        %v1071 = vld [vmem:[%s3 + $0x128] sm:$0xff]
        %v1072 = vld [vmem:[%s3 + $0x130] sm:$0xff]
        %v1073 = vld [vmem:[%s3 + $0x138] sm:$0xff]
        %v1074 = vld [vmem:[%s3 + $0x140] sm:$0xff]
        %v1075 = vld [vmem:[%s3 + $0x148] sm:$0xff]
        %v1076 = vld [vmem:[%s3 + $0x150] sm:$0xff]
        %v1077 = vld [vmem:[%s3 + $0x158] sm:$0xff]
        %v1078 = vld [vmem:[%s3 + $0x160] sm:$0xff]
        %v1079 = vld [vmem:[%s3 + $0x168] sm:$0xff]
        %v1080 = vld [vmem:[%s3 + $0x170] sm:$0xff]
        %v1081 = vld [vmem:[%s3 + $0x178] sm:$0xff]
        %v1082 = vld [vmem:[%s3 + $0x180] sm:$0xff]
        %v1083 = vld [vmem:[%s3 + $0x188] sm:$0xff]
        %v1084 = vld [vmem:[%s3 + $0x190] sm:$0xff]
        %v1085 = vld [vmem:[%s3 + $0x198] sm:$0xff]
        %v1086 = vld [vmem:[%s3 + $0x1a0] sm:$0xff]
        %v1087 = vld [vmem:[%s3 + $0x1a8] sm:$0xff]
        %v1088 = vld [vmem:[%s3 + $0x1b0] sm:$0xff]
        %v1089 = vld [vmem:[%s3 + $0x1b8] sm:$0xff]
        %v1090 = vld [vmem:[%s3 + $0x1c0] sm:$0xff]
        %v1091 = vld [vmem:[%s3 + $0x1c8] sm:$0xff]
        %v1092 = vld [vmem:[%s3 + $0x1d0] sm:$0xff]
        %v1093 = vld [vmem:[%s3 + $0x1d8] sm:$0xff]
        %v1094 = vld [vmem:[%s3 + $0x1e0] sm:$0xff]
        %v1095 = vld [vmem:[%s3 + $0x1e8] sm:$0xff]
        %v1096 = vld [vmem:[%s3 + $0x1f0] sm:$0xff]
        %v1097 = vld [vmem:[%s3 + $0x1f8] sm:$0xff]
        %v1098 = vld [vmem:[%s3 + $0x200] sm:$0xff]
        %v1099 = vld [vmem:[%s3 + $0x208] sm:$0xff]
        %v1100 = vld [vmem:[%s3 + $0x210] sm:$0xff]
        %v1101 = vld [vmem:[%s3 + $0x218] sm:$0xff]
        %v1102 = vld [vmem:[%s3 + $0x220] sm:$0xff]
        %v1103 = vld [vmem:[%s3 + $0x228] sm:$0xff]
        %v1104 = vld [vmem:[%s3 + $0x230] sm:$0xff]
        %v1105 = vld [vmem:[%s3 + $0x238] sm:$0xff]
        %v1106 = vld [vmem:[%s3 + $0x240] sm:$0xff]
        %v1107 = vld [vmem:[%s3 + $0x248] sm:$0xff]
        %v1108 = vld [vmem:[%s3 + $0x250] sm:$0xff]
        %v1109 = vld [vmem:[%s3 + $0x258] sm:$0xff]
        %v1110 = vld [vmem:[%s3 + $0x260] sm:$0xff]
        %v1111 = vld [vmem:[%s3 + $0x268] sm:$0xff]
        %v1112 = vld [vmem:[#allocation2] sm:$0xfe]
        %v1113 = vld [vmem:[#allocation2 + $0x8] sm:$0xfe]
        %v1114 = vld [vmem:[#allocation2 + $0x30] sm:$0x1]
        %v1115 = vld [vmem:[#allocation2 + $0x38] sm:$0x1]
        %s1116 = scalar_lea.vmem %s3, 624
        %v1117 = vld [vmem:[%s1116] sm:$0xff]
        %v1118 = vld [vmem:[%s1116 + $0x8] sm:$0xff]
        %v1119 = vld [vmem:[%s1116 + $0x10] sm:$0xff]
        %v1120 = vld [vmem:[%s1116 + $0x18] sm:$0xff]
        %v1121 = vld [vmem:[%s1116 + $0x20] sm:$0xff]
        %v1122 = vld [vmem:[%s1116 + $0x28] sm:$0xff]
        %v1123 = vld [vmem:[%s1116 + $0x30] sm:$0xff]
        %v1124 = vld [vmem:[%s1116 + $0x38] sm:$0xff]
        %v1125 = vld [vmem:[%s1116 + $0x40] sm:$0xff]
        %v1126 = vld [vmem:[%s1116 + $0x48] sm:$0xff]
        %v1127 = vld [vmem:[%s1116 + $0x50] sm:$0xff]
        %v1128 = vld [vmem:[%s1116 + $0x58] sm:$0xff]
        %v1129 = vld [vmem:[%s1116 + $0x60] sm:$0xff]
        %v1130 = vld [vmem:[%s1116 + $0x68] sm:$0xff]
        %v1131 = vld [vmem:[%s1116 + $0x70] sm:$0xff]
        %v1132 = vld [vmem:[%s1116 + $0x78] sm:$0xff]
        %v1133 = vld [vmem:[%s1116 + $0x80] sm:$0xff]
        %v1134 = vld [vmem:[%s1116 + $0x88] sm:$0xff]
        %v1135 = vld [vmem:[%s1116 + $0x90] sm:$0xff]
        %v1136 = vld [vmem:[%s1116 + $0x98] sm:$0xff]
        %v1137 = vld [vmem:[%s1116 + $0xa0] sm:$0xff]
        %v1138 = vld [vmem:[%s1116 + $0xa8] sm:$0xff]
        %v1139 = vld [vmem:[%s1116 + $0xb0] sm:$0xff]
        %v1140 = vld [vmem:[%s1116 + $0xb8] sm:$0xff]
        %v1141 = vld [vmem:[%s1116 + $0xc0] sm:$0xff]
        %v1142 = vld [vmem:[%s1116 + $0xc8] sm:$0xff]
        %v1143 = vld [vmem:[%s1116 + $0xd0] sm:$0xff]
        %v1144 = vld [vmem:[%s1116 + $0xd8] sm:$0xff]
        %v1145 = vld [vmem:[%s1116 + $0xe0] sm:$0xff]
        %v1146 = vld [vmem:[%s1116 + $0xe8] sm:$0xff]
        %v1147 = vld [vmem:[%s1116 + $0xf0] sm:$0xff]
        %v1148 = vld [vmem:[%s1116 + $0xf8] sm:$0xff]
        %v1149 = vld [vmem:[%s1116 + $0x100] sm:$0xff]
        %v1150 = vld [vmem:[%s1116 + $0x108] sm:$0xff]
        %v1151 = vld [vmem:[%s1116 + $0x110] sm:$0xff]
        %v1152 = vld [vmem:[%s1116 + $0x118] sm:$0xff]
        %v1153 = vld [vmem:[%s1116 + $0x120] sm:$0xff]
        %v1154 = vld [vmem:[%s1116 + $0x128] sm:$0xff]
        %v1155 = vld [vmem:[%s1116 + $0x130] sm:$0xff]
        %v1156 = vld [vmem:[%s1116 + $0x138] sm:$0xff]
        %v1157 = vld [vmem:[%s1116 + $0x140] sm:$0xff]
        %v1158 = vld [vmem:[%s1116 + $0x148] sm:$0xff]
        %v1159 = vld [vmem:[%s1116 + $0x150] sm:$0xff]
        %v1160 = vld [vmem:[%s1116 + $0x158] sm:$0xff]
        %v1161 = vld [vmem:[%s1116 + $0x160] sm:$0xff]
        %v1162 = vld [vmem:[%s1116 + $0x168] sm:$0xff]
        %v1163 = vld [vmem:[%s1116 + $0x170] sm:$0xff]
        %v1164 = vld [vmem:[%s1116 + $0x178] sm:$0xff]
        %v1165 = vld [vmem:[%s1116 + $0x180] sm:$0xff]
        %v1166 = vld [vmem:[%s1116 + $0x188] sm:$0xff]
        %v1167 = vld [vmem:[%s1116 + $0x190] sm:$0xff]
        %v1168 = vld [vmem:[%s1116 + $0x198] sm:$0xff]
        %v1169 = vld [vmem:[%s1116 + $0x1a0] sm:$0xff]
        %v1170 = vld [vmem:[%s1116 + $0x1a8] sm:$0xff]
        %v1171 = vld [vmem:[%s1116 + $0x1b0] sm:$0xff]
        %v1172 = vld [vmem:[%s1116 + $0x1b8] sm:$0xff]
        %v1173 = vld [vmem:[%s1116 + $0x1c0] sm:$0xff]
        %v1174 = vld [vmem:[%s1116 + $0x1c8] sm:$0xff]
        %v1175 = vld [vmem:[%s1116 + $0x1d0] sm:$0xff]
        %v1176 = vld [vmem:[%s1116 + $0x1d8] sm:$0xff]
        %v1177 = vld [vmem:[%s1116 + $0x1e0] sm:$0xff]
        %v1178 = vld [vmem:[%s1116 + $0x1e8] sm:$0xff]
        %v1179 = vld [vmem:[%s1116 + $0x1f0] sm:$0xff]
        %v1180 = vld [vmem:[%s1116 + $0x1f8] sm:$0xff]
        %v1181 = vld [vmem:[%s1116 + $0x200] sm:$0xff]
        %v1182 = vld [vmem:[%s1116 + $0x208] sm:$0xff]
        %v1183 = vld [vmem:[%s1116 + $0x210] sm:$0xff]
        %v1184 = vld [vmem:[%s1116 + $0x218] sm:$0xff]
        %v1185 = vld [vmem:[%s1116 + $0x220] sm:$0xff]
        %v1186 = vld [vmem:[%s1116 + $0x228] sm:$0xff]
        %v1187 = vld [vmem:[%s1116 + $0x230] sm:$0xff]
        %v1188 = vld [vmem:[%s1116 + $0x238] sm:$0xff]
        %v1189 = vld [vmem:[%s1116 + $0x240] sm:$0xff]
        %v1190 = vld [vmem:[%s1116 + $0x248] sm:$0xff]
        %v1191 = vld [vmem:[%s1116 + $0x250] sm:$0xff]
        %v1192 = vld [vmem:[%s1116 + $0x258] sm:$0xff]
        %v1193 = vld [vmem:[%s1116 + $0x260] sm:$0xff]
        %v1194 = vld [vmem:[%s1116 + $0x268] sm:$0xff]
        %vm1203 = vcmask 1046528
        %v1204 = vrot.slane %v1112, 1
        %v1205 = vrot.slane %v1030, 1
        %v1206 = vsel %vm1203, %v1204, %v1205
        %v1207 = vrot.slane %v1113, 1
        %v1208 = vrot.slane %v1031, 1
        %v1209 = vsel %vm1203, %v1207, %v1208
        %v1210 = vrot.slane %v1032, 1
        %v1211 = vsel %vm1203, %v1205, %v1210
        %v1212 = vrot.slane %v1033, 1
        %v1213 = vsel %vm1203, %v1208, %v1212
        %v1214 = vrot.slane %v1114, 1
        %v1215 = vsel %vm1203, %v1210, %v1214
        %v1216 = vrot.slane %v1115, 1
        %v1217 = vsel %vm1203, %v1212, %v1216
        %v1221 = vsel %vm1019, %v1209, 0
        %v1223 = vsel %vm1019, %v1213, 0
        %v1225 = vsel %vm1019, %v1217, 0
        %1227 = vmatprep.subr.mxu0 %v1163
        %1228 = vmatpush1.msra.mxu0 %v1162
        %1229 = vmatprep.subr.mxu0 %v1160
        %1230 = vmatpush1.msra.mxu0 %v1159
        %1231 = vmatprep.subr.mxu0 %v1157
        %1232 = vmatpush1.msra.mxu0 %v1156
        %1233 = vmatprep.subr.mxu0 %v1154
        %1234 = vmatpush1.msra.mxu0 %v1153
        %1235 = vmatprep.subr.mxu0 %v1151
        %1236 = vmatpush1.msra.mxu0 %v1150
        %1237 = vmatprep.subr.mxu0 %v1148
        %1238 = vmatpush1.msra.mxu0 %v1147
        %1239 = vmatprep.subr.mxu0 %v1145
        %1240 = vmatpush1.msra.mxu0 %v1144
        %1241 = vmatprep.subr.mxu0 %v1142
        %1242 = vmatpush1.msra.mxu0 %v1141
        %1243 = vmatprep.subr.mxu0 %v1139
        %1244 = vmatpush1.msra.mxu0 %v1138
        %1245 = vmatprep.subr.mxu0 %v1136
        %1246 = vmatpush1.msra.mxu0 %v1135
        %1247 = vmatprep.subr.mxu0 %v1133
        %1248 = vmatpush1.msra.mxu0 %v1132
        %1249 = vmatprep.subr.mxu0 %v1130
        %1250 = vmatpush1.msra.mxu0 %v1129
        %1251 = vmatprep.subr.mxu0 %v1127
        %1252 = vmatpush1.msra.mxu0 %v1126
        %1253 = vmatprep.subr.mxu0 %v1124
        %1254 = vmatpush1.msra.mxu0 %v1123
        %1255 = vmatprep.subr.mxu0 %v1121
        %1256 = vmatpush1.msra.mxu0 %v1120
        %1257 = vmatprep.subr.mxu0 %v1118
        %1258 = vmatpush1.msra.mxu0 %v1117
        %1259 = vmatprep.subr.mxu0 0.0
        %1260 = vmatpush2.msra.mxu0 0.0
        %1261 = vmatprep.subr.mxu0 0.0
        %1262 = vmatpush2.msra.mxu0 0.0
        %1263 = vmatprep.subr.mxu0 0.0
        %1264 = vmatpush2.msra.mxu0 0.0
        %1265 = vmatprep.subr.mxu0 0.0
        %1266 = vmatpush2.msra.mxu0 0.0
        %1267 = vmatprep.subr.mxu0 0.0
        %1268 = vmatpush2.msra.mxu0 0.0
        %1269 = vmatprep.subr.mxu0 0.0
        %1270 = vmatpush2.msra.mxu0 0.0
        %1271 = vmatprep.subr.mxu0 %v1193
        %1272 = vmatpush2.msra.mxu0 %v1192
        %1273 = vmatprep.subr.mxu0 %v1190
        %1274 = vmatpush2.msra.mxu0 %v1189
        %1275 = vmatprep.subr.mxu0 %v1187
        %1276 = vmatpush2.msra.mxu0 %v1186
        %1277 = vmatprep.subr.mxu0 %v1184
        %1278 = vmatpush2.msra.mxu0 %v1183
        %1279 = vmatprep.subr.mxu0 %v1181
        %1280 = vmatpush2.msra.mxu0 %v1180
        %1281 = vmatprep.subr.mxu0 %v1178
        %1282 = vmatpush2.msra.mxu0 %v1177
        %1283 = vmatprep.subr.mxu0 %v1175
        %1284 = vmatpush2.msra.mxu0 %v1174
        %1285 = vmatprep.subr.mxu0 %v1172
        %1286 = vmatpush2.msra.mxu0 %v1171
        %1287 = vmatprep.subr.mxu0 %v1169
        %1288 = vmatpush2.msra.mxu0 %v1168
        %1289 = vmatprep.subr.mxu0 %v1166
        %1290 = vmatpush2.msra.mxu0 %v1165
        %1291 = vmatprep.mubr.f32.mxu0 %v1221
        %1292 = vmatmul.mubr.f32.gmra.mxu0 %v1206
        %v1293 = vpop.f32.mrf.mxu0
        %v1294 = vadd.f32 0.0, %v1293
        %v1295 = vpop.f32.mrf.mxu0
        %v1296 = vadd.f32 0.0, %v1295
        %1297 = vmatprep.mubr.f32.mxu0 %v1223
        %1298 = vmatmul.mubr.f32.gmra.mxu0 %v1211
        %v1299 = vpop.f32.mrf.mxu0
        %v1300 = vadd.f32 0.0, %v1299
        %v1301 = vpop.f32.mrf.mxu0
        %v1302 = vadd.f32 0.0, %v1301
        %1303 = vmatprep.mubr.f32.mxu0 %v1225
        %1304 = vmatmul.mubr.f32.gmra.mxu0 %v1215
        %v1305 = vpop.f32.mrf.mxu0
        %v1306 = vadd.f32 0.0, %v1305
        %v1307 = vpop.f32.mrf.mxu0
        %v1308 = vadd.f32 0.0, %v1307
        %1309 = vdwg.mxu0
        %1310 = vmatprep.subr.mxu0 0.0
        %1311 = vmatpush1.msra.mxu0 %v1164
        %1312 = vmatprep.subr.mxu0 0.0
        %1313 = vmatpush1.msra.mxu0 %v1161
        %1314 = vmatprep.subr.mxu0 0.0
        %1315 = vmatpush1.msra.mxu0 %v1158
        %1316 = vmatprep.subr.mxu0 0.0
        %1317 = vmatpush1.msra.mxu0 %v1155
        %1318 = vmatprep.subr.mxu0 0.0
        %1319 = vmatpush1.msra.mxu0 %v1152
        %1320 = vmatprep.subr.mxu0 0.0
        %1321 = vmatpush1.msra.mxu0 %v1149
        %1322 = vmatprep.subr.mxu0 0.0
        %1323 = vmatpush1.msra.mxu0 %v1146
        %1324 = vmatprep.subr.mxu0 0.0
        %1325 = vmatpush1.msra.mxu0 %v1143
        %1326 = vmatprep.subr.mxu0 0.0
        %1327 = vmatpush1.msra.mxu0 %v1140
        %1328 = vmatprep.subr.mxu0 0.0
        %1329 = vmatpush1.msra.mxu0 %v1137
        %1330 = vmatprep.subr.mxu0 0.0
        %1331 = vmatpush1.msra.mxu0 %v1134
        %1332 = vmatprep.subr.mxu0 0.0
        %1333 = vmatpush1.msra.mxu0 %v1131
        %1334 = vmatprep.subr.mxu0 0.0
        %1335 = vmatpush1.msra.mxu0 %v1128
        %1336 = vmatprep.subr.mxu0 0.0
        %1337 = vmatpush1.msra.mxu0 %v1125
        %1338 = vmatprep.subr.mxu0 0.0
        %1339 = vmatpush1.msra.mxu0 %v1122
        %1340 = vmatprep.subr.mxu0 0.0
        %1341 = vmatpush1.msra.mxu0 %v1119
        %1342 = vmatprep.subr.mxu0 0.0
        %1343 = vmatpush2.msra.mxu0 0.0
        %1344 = vmatprep.subr.mxu0 0.0
        %1345 = vmatpush2.msra.mxu0 0.0
        %1346 = vmatprep.subr.mxu0 0.0
        %1347 = vmatpush2.msra.mxu0 0.0
        %1348 = vmatprep.subr.mxu0 0.0
        %1349 = vmatpush2.msra.mxu0 0.0
        %1350 = vmatprep.subr.mxu0 0.0
        %1351 = vmatpush2.msra.mxu0 0.0
        %1352 = vmatprep.subr.mxu0 0.0
        %1353 = vmatpush2.msra.mxu0 0.0
        %1354 = vmatprep.subr.mxu0 0.0
        %1355 = vmatpush2.msra.mxu0 %v1194
        %1356 = vmatprep.subr.mxu0 0.0
        %1357 = vmatpush2.msra.mxu0 %v1191
        %1358 = vmatprep.subr.mxu0 0.0
        %1359 = vmatpush2.msra.mxu0 %v1188
        %1360 = vmatprep.subr.mxu0 0.0
        %1361 = vmatpush2.msra.mxu0 %v1185
        %1362 = vmatprep.subr.mxu0 0.0
        %1363 = vmatpush2.msra.mxu0 %v1182
        %1364 = vmatprep.subr.mxu0 0.0
        %1365 = vmatpush2.msra.mxu0 %v1179
        %1366 = vmatprep.subr.mxu0 0.0
        %1367 = vmatpush2.msra.mxu0 %v1176
        %1368 = vmatprep.subr.mxu0 0.0
        %1369 = vmatpush2.msra.mxu0 %v1173
        %1370 = vmatprep.subr.mxu0 0.0
        %1371 = vmatpush2.msra.mxu0 %v1170
        %1372 = vmatprep.subr.mxu0 0.0
        %1373 = vmatpush2.msra.mxu0 %v1167
        %1374 = vmatprep.mubr.f32.mxu0 %v1221
        %1375 = vmatmul.mubr.f32.gmra.mxu0 %v1206
        %v1376 = vpop.f32.mrf.mxu0
        %v1377 = vadd.f32 0.0, %v1376
        %v1378 = vpop.f32.mrf.mxu0
        %1379 = vmatprep.mubr.f32.mxu0 %v1223
        %1380 = vmatmul.mubr.f32.gmra.mxu0 %v1211
        %v1381 = vpop.f32.mrf.mxu0
        %v1382 = vadd.f32 0.0, %v1381
        %v1383 = vpop.f32.mrf.mxu0
        %1384 = vmatprep.mubr.f32.mxu0 %v1225
        %1385 = vmatmul.mubr.f32.gmra.mxu0 %v1215
        %v1386 = vpop.f32.mrf.mxu0
        %v1387 = vadd.f32 0.0, %v1386
        %v1388 = vpop.f32.mrf.mxu0
        %1389 = vdwg.mxu0
        %v1391 = vsel %vm1019, %v1029, 0
        %v1393 = vsel %vm1019, %v1031, 0
        %v1395 = vsel %vm1019, %v1033, 0
        %1397 = vmatprep.subr.mxu0 %v1080
        %1398 = vmatpush1.msra.mxu0 %v1079
        %1399 = vmatprep.subr.mxu0 %v1077
        %1400 = vmatpush1.msra.mxu0 %v1076
        %1401 = vmatprep.subr.mxu0 %v1074
        %1402 = vmatpush1.msra.mxu0 %v1073
        %1403 = vmatprep.subr.mxu0 %v1071
        %1404 = vmatpush1.msra.mxu0 %v1070
        %1405 = vmatprep.subr.mxu0 %v1068
        %1406 = vmatpush1.msra.mxu0 %v1067
        %1407 = vmatprep.subr.mxu0 %v1065
        %1408 = vmatpush1.msra.mxu0 %v1064
        %1409 = vmatprep.subr.mxu0 %v1062
        %1410 = vmatpush1.msra.mxu0 %v1061
        %1411 = vmatprep.subr.mxu0 %v1059
        %1412 = vmatpush1.msra.mxu0 %v1058
        %1413 = vmatprep.subr.mxu0 %v1056
        %1414 = vmatpush1.msra.mxu0 %v1055
        %1415 = vmatprep.subr.mxu0 %v1053
        %1416 = vmatpush1.msra.mxu0 %v1052
        %1417 = vmatprep.subr.mxu0 %v1050
        %1418 = vmatpush1.msra.mxu0 %v1049
        %1419 = vmatprep.subr.mxu0 %v1047
        %1420 = vmatpush1.msra.mxu0 %v1046
        %1421 = vmatprep.subr.mxu0 %v1044
        %1422 = vmatpush1.msra.mxu0 %v1043
        %1423 = vmatprep.subr.mxu0 %v1041
        %1424 = vmatpush1.msra.mxu0 %v1040
        %1425 = vmatprep.subr.mxu0 %v1038
        %1426 = vmatpush1.msra.mxu0 %v1037
        %1427 = vmatprep.subr.mxu0 %v1035
        %1428 = vmatpush1.msra.mxu0 %v1034
        %1429 = vmatprep.subr.mxu0 0.0
        %1430 = vmatpush2.msra.mxu0 0.0
        %1431 = vmatprep.subr.mxu0 0.0
        %1432 = vmatpush2.msra.mxu0 0.0
        %1433 = vmatprep.subr.mxu0 0.0
        %1434 = vmatpush2.msra.mxu0 0.0
        %1435 = vmatprep.subr.mxu0 0.0
        %1436 = vmatpush2.msra.mxu0 0.0
        %1437 = vmatprep.subr.mxu0 0.0
        %1438 = vmatpush2.msra.mxu0 0.0
        %1439 = vmatprep.subr.mxu0 0.0
        %1440 = vmatpush2.msra.mxu0 0.0
        %1441 = vmatprep.subr.mxu0 %v1110
        %1442 = vmatpush2.msra.mxu0 %v1109
        %1443 = vmatprep.subr.mxu0 %v1107
        %1444 = vmatpush2.msra.mxu0 %v1106
        %1445 = vmatprep.subr.mxu0 %v1104
        %1446 = vmatpush2.msra.mxu0 %v1103
        %1447 = vmatprep.subr.mxu0 %v1101
        %1448 = vmatpush2.msra.mxu0 %v1100
        %1449 = vmatprep.subr.mxu0 %v1098
        %1450 = vmatpush2.msra.mxu0 %v1097
        %1451 = vmatprep.subr.mxu0 %v1095
        %1452 = vmatpush2.msra.mxu0 %v1094
        %1453 = vmatprep.subr.mxu0 %v1092
        %1454 = vmatpush2.msra.mxu0 %v1091
        %1455 = vmatprep.subr.mxu0 %v1089
        %1456 = vmatpush2.msra.mxu0 %v1088
        %1457 = vmatprep.subr.mxu0 %v1086
        %1458 = vmatpush2.msra.mxu0 %v1085
        %1459 = vmatprep.subr.mxu0 %v1083
        %1460 = vmatpush2.msra.mxu0 %v1082
        %1461 = vmatprep.mubr.f32.mxu0 %v1391
        %1462 = vmatmul.mubr.f32.gmra.mxu0 %v1028
        %v1463 = vpop.f32.mrf.mxu0
        %v1464 = vadd.f32 %v1294, %v1463
        %v1465 = vpop.f32.mrf.mxu0
        %v1466 = vadd.f32 %v1296, %v1465
        %1467 = vmatprep.mubr.f32.mxu0 %v1393
        %1468 = vmatmul.mubr.f32.gmra.mxu0 %v1030
        %v1469 = vpop.f32.mrf.mxu0
        %v1470 = vadd.f32 %v1300, %v1469
        %v1471 = vpop.f32.mrf.mxu0
        %v1472 = vadd.f32 %v1302, %v1471
        %1473 = vmatprep.mubr.f32.mxu0 %v1395
        %1474 = vmatmul.mubr.f32.gmra.mxu0 %v1032
        %v1475 = vpop.f32.mrf.mxu0
        %v1476 = vadd.f32 %v1306, %v1475
        %v1477 = vpop.f32.mrf.mxu0
        %v1478 = vadd.f32 %v1308, %v1477
        %1479 = vdwg.mxu0
        %1480 = vmatprep.subr.mxu0 0.0
        %1481 = vmatpush1.msra.mxu0 %v1081
        %1482 = vmatprep.subr.mxu0 0.0
        %1483 = vmatpush1.msra.mxu0 %v1078
        %1484 = vmatprep.subr.mxu0 0.0
        %1485 = vmatpush1.msra.mxu0 %v1075
        %1486 = vmatprep.subr.mxu0 0.0
        %1487 = vmatpush1.msra.mxu0 %v1072
        %1488 = vmatprep.subr.mxu0 0.0
        %1489 = vmatpush1.msra.mxu0 %v1069
        %1490 = vmatprep.subr.mxu0 0.0
        %1491 = vmatpush1.msra.mxu0 %v1066
        %1492 = vmatprep.subr.mxu0 0.0
        %1493 = vmatpush1.msra.mxu0 %v1063
        %1494 = vmatprep.subr.mxu0 0.0
        %1495 = vmatpush1.msra.mxu0 %v1060
        %1496 = vmatprep.subr.mxu0 0.0
        %1497 = vmatpush1.msra.mxu0 %v1057
        %1498 = vmatprep.subr.mxu0 0.0
        %1499 = vmatpush1.msra.mxu0 %v1054
        %1500 = vmatprep.subr.mxu0 0.0
        %1501 = vmatpush1.msra.mxu0 %v1051
        %1502 = vmatprep.subr.mxu0 0.0
        %1503 = vmatpush1.msra.mxu0 %v1048
        %1504 = vmatprep.subr.mxu0 0.0
        %1505 = vmatpush1.msra.mxu0 %v1045
        %1506 = vmatprep.subr.mxu0 0.0
        %1507 = vmatpush1.msra.mxu0 %v1042
        %1508 = vmatprep.subr.mxu0 0.0
        %1509 = vmatpush1.msra.mxu0 %v1039
        %1510 = vmatprep.subr.mxu0 0.0
        %1511 = vmatpush1.msra.mxu0 %v1036
        %1512 = vmatprep.subr.mxu0 0.0
        %1513 = vmatpush2.msra.mxu0 0.0
        %1514 = vmatprep.subr.mxu0 0.0
        %1515 = vmatpush2.msra.mxu0 0.0
        %1516 = vmatprep.subr.mxu0 0.0
        %1517 = vmatpush2.msra.mxu0 0.0
        %1518 = vmatprep.subr.mxu0 0.0
        %1519 = vmatpush2.msra.mxu0 0.0
        %1520 = vmatprep.subr.mxu0 0.0
        %1521 = vmatpush2.msra.mxu0 0.0
        %1522 = vmatprep.subr.mxu0 0.0
        %1523 = vmatpush2.msra.mxu0 0.0
        %1524 = vmatprep.subr.mxu0 0.0
        %1525 = vmatpush2.msra.mxu0 %v1111
        %1526 = vmatprep.subr.mxu0 0.0
        %1527 = vmatpush2.msra.mxu0 %v1108
        %1528 = vmatprep.subr.mxu0 0.0
        %1529 = vmatpush2.msra.mxu0 %v1105
        %1530 = vmatprep.subr.mxu0 0.0
        %1531 = vmatpush2.msra.mxu0 %v1102
        %1532 = vmatprep.subr.mxu0 0.0
        %1533 = vmatpush2.msra.mxu0 %v1099
        %1534 = vmatprep.subr.mxu0 0.0
        %1535 = vmatpush2.msra.mxu0 %v1096
        %1536 = vmatprep.subr.mxu0 0.0
        %1537 = vmatpush2.msra.mxu0 %v1093
        %1538 = vmatprep.subr.mxu0 0.0
        %1539 = vmatpush2.msra.mxu0 %v1090
        %1540 = vmatprep.subr.mxu0 0.0
        %1541 = vmatpush2.msra.mxu0 %v1087
        %1542 = vmatprep.subr.mxu0 0.0
        %1543 = vmatpush2.msra.mxu0 %v1084
        %1544 = vmatprep.mubr.f32.mxu0 %v1391
        %1545 = vmatmul.mubr.f32.gmra.mxu0 %v1028
        %v1546 = vpop.f32.mrf.mxu0
        %v1547 = vadd.f32 %v1377, %v1546
        %v1548 = vpop.f32.mrf.mxu0
        %1549 = vmatprep.mubr.f32.mxu0 %v1393
        %1550 = vmatmul.mubr.f32.gmra.mxu0 %v1030
        %v1551 = vpop.f32.mrf.mxu0
        %v1552 = vadd.f32 %v1382, %v1551
        %v1553 = vpop.f32.mrf.mxu0
        %1554 = vmatprep.mubr.f32.mxu0 %v1395
        %1555 = vmatmul.mubr.f32.gmra.mxu0 %v1032
        %v1556 = vpop.f32.mrf.mxu0
        %v1557 = vadd.f32 %v1387, %v1556
        %v1558 = vpop.f32.mrf.mxu0
        %1559 = vdwg.mxu0
        %v1560 = vld [vmem:[#allocation2] sm:$0xfc]
        %v1561 = vld [vmem:[#allocation2 + $0x8] sm:$0xfc]
        %v1562 = vld [vmem:[#allocation2 + $0x30] sm:$0x3]
        %v1563 = vld [vmem:[#allocation2 + $0x38] sm:$0x3]
        %s1564 = scalar_lea.vmem %s3, 1248
        %v1565 = vld [vmem:[%s1564] sm:$0xff]
        %v1566 = vld [vmem:[%s1564 + $0x8] sm:$0xff]
        %v1567 = vld [vmem:[%s1564 + $0x10] sm:$0xff]
        %v1568 = vld [vmem:[%s1564 + $0x18] sm:$0xff]
        %v1569 = vld [vmem:[%s1564 + $0x20] sm:$0xff]
        %v1570 = vld [vmem:[%s1564 + $0x28] sm:$0xff]
        %v1571 = vld [vmem:[%s1564 + $0x30] sm:$0xff]
        %v1572 = vld [vmem:[%s1564 + $0x38] sm:$0xff]
        %v1573 = vld [vmem:[%s1564 + $0x40] sm:$0xff]
        %v1574 = vld [vmem:[%s1564 + $0x48] sm:$0xff]
        %v1575 = vld [vmem:[%s1564 + $0x50] sm:$0xff]
        %v1576 = vld [vmem:[%s1564 + $0x58] sm:$0xff]
        %v1577 = vld [vmem:[%s1564 + $0x60] sm:$0xff]
        %v1578 = vld [vmem:[%s1564 + $0x68] sm:$0xff]
        %v1579 = vld [vmem:[%s1564 + $0x70] sm:$0xff]
        %v1580 = vld [vmem:[%s1564 + $0x78] sm:$0xff]
        %v1581 = vld [vmem:[%s1564 + $0x80] sm:$0xff]
        %v1582 = vld [vmem:[%s1564 + $0x88] sm:$0xff]
        %v1583 = vld [vmem:[%s1564 + $0x90] sm:$0xff]
        %v1584 = vld [vmem:[%s1564 + $0x98] sm:$0xff]
        %v1585 = vld [vmem:[%s1564 + $0xa0] sm:$0xff]
        %v1586 = vld [vmem:[%s1564 + $0xa8] sm:$0xff]
        %v1587 = vld [vmem:[%s1564 + $0xb0] sm:$0xff]
        %v1588 = vld [vmem:[%s1564 + $0xb8] sm:$0xff]
        %v1589 = vld [vmem:[%s1564 + $0xc0] sm:$0xff]
        %v1590 = vld [vmem:[%s1564 + $0xc8] sm:$0xff]
        %v1591 = vld [vmem:[%s1564 + $0xd0] sm:$0xff]
        %v1592 = vld [vmem:[%s1564 + $0xd8] sm:$0xff]
        %v1593 = vld [vmem:[%s1564 + $0xe0] sm:$0xff]
        %v1594 = vld [vmem:[%s1564 + $0xe8] sm:$0xff]
        %v1595 = vld [vmem:[%s1564 + $0xf0] sm:$0xff]
        %v1596 = vld [vmem:[%s1564 + $0xf8] sm:$0xff]
        %v1597 = vld [vmem:[%s1564 + $0x100] sm:$0xff]
        %v1598 = vld [vmem:[%s1564 + $0x108] sm:$0xff]
        %v1599 = vld [vmem:[%s1564 + $0x110] sm:$0xff]
        %v1600 = vld [vmem:[%s1564 + $0x118] sm:$0xff]
        %v1601 = vld [vmem:[%s1564 + $0x120] sm:$0xff]
        %v1602 = vld [vmem:[%s1564 + $0x128] sm:$0xff]
        %v1603 = vld [vmem:[%s1564 + $0x130] sm:$0xff]
        %v1604 = vld [vmem:[%s1564 + $0x138] sm:$0xff]
        %v1605 = vld [vmem:[%s1564 + $0x140] sm:$0xff]
        %v1606 = vld [vmem:[%s1564 + $0x148] sm:$0xff]
        %v1607 = vld [vmem:[%s1564 + $0x150] sm:$0xff]
        %v1608 = vld [vmem:[%s1564 + $0x158] sm:$0xff]
        %v1609 = vld [vmem:[%s1564 + $0x160] sm:$0xff]
        %v1610 = vld [vmem:[%s1564 + $0x168] sm:$0xff]
        %v1611 = vld [vmem:[%s1564 + $0x170] sm:$0xff]
        %v1612 = vld [vmem:[%s1564 + $0x178] sm:$0xff]
        %v1613 = vld [vmem:[%s1564 + $0x180] sm:$0xff]
        %v1614 = vld [vmem:[%s1564 + $0x188] sm:$0xff]
        %v1615 = vld [vmem:[%s1564 + $0x190] sm:$0xff]
        %v1616 = vld [vmem:[%s1564 + $0x198] sm:$0xff]
        %v1617 = vld [vmem:[%s1564 + $0x1a0] sm:$0xff]
        %v1618 = vld [vmem:[%s1564 + $0x1a8] sm:$0xff]
        %v1619 = vld [vmem:[%s1564 + $0x1b0] sm:$0xff]
        %v1620 = vld [vmem:[%s1564 + $0x1b8] sm:$0xff]
        %v1621 = vld [vmem:[%s1564 + $0x1c0] sm:$0xff]
        %v1622 = vld [vmem:[%s1564 + $0x1c8] sm:$0xff]
        %v1623 = vld [vmem:[%s1564 + $0x1d0] sm:$0xff]
        %v1624 = vld [vmem:[%s1564 + $0x1d8] sm:$0xff]
        %v1625 = vld [vmem:[%s1564 + $0x1e0] sm:$0xff]
        %v1626 = vld [vmem:[%s1564 + $0x1e8] sm:$0xff]
        %v1627 = vld [vmem:[%s1564 + $0x1f0] sm:$0xff]
        %v1628 = vld [vmem:[%s1564 + $0x1f8] sm:$0xff]
        %v1629 = vld [vmem:[%s1564 + $0x200] sm:$0xff]
        %v1630 = vld [vmem:[%s1564 + $0x208] sm:$0xff]
        %v1631 = vld [vmem:[%s1564 + $0x210] sm:$0xff]
        %v1632 = vld [vmem:[%s1564 + $0x218] sm:$0xff]
        %v1633 = vld [vmem:[%s1564 + $0x220] sm:$0xff]
        %v1634 = vld [vmem:[%s1564 + $0x228] sm:$0xff]
        %v1635 = vld [vmem:[%s1564 + $0x230] sm:$0xff]
        %v1636 = vld [vmem:[%s1564 + $0x238] sm:$0xff]
        %v1637 = vld [vmem:[%s1564 + $0x240] sm:$0xff]
        %v1638 = vld [vmem:[%s1564 + $0x248] sm:$0xff]
        %v1639 = vld [vmem:[%s1564 + $0x250] sm:$0xff]
        %v1640 = vld [vmem:[%s1564 + $0x258] sm:$0xff]
        %v1641 = vld [vmem:[%s1564 + $0x260] sm:$0xff]
        %v1642 = vld [vmem:[%s1564 + $0x268] sm:$0xff]
        %vm1647 = vcmask 1045504
        %v1648 = vrot.slane %v1560, 2
        %v1649 = vrot.slane %v1030, 2
        %v1650 = vsel %vm1647, %v1648, %v1649
        %v1651 = vrot.slane %v1561, 2
        %v1652 = vrot.slane %v1031, 2
        %v1653 = vsel %vm1647, %v1651, %v1652
        %v1654 = vrot.slane %v1032, 2
        %v1655 = vsel %vm1647, %v1649, %v1654
        %v1656 = vrot.slane %v1033, 2
        %v1657 = vsel %vm1647, %v1652, %v1656
        %v1658 = vrot.slane %v1562, 2
        %v1659 = vsel %vm1647, %v1654, %v1658
        %v1660 = vrot.slane %v1563, 2
        %v1661 = vsel %vm1647, %v1656, %v1660
        %v1665 = vsel %vm1019, %v1653, 0
        %v1667 = vsel %vm1019, %v1657, 0
        %v1669 = vsel %vm1019, %v1661, 0
        %1671 = vmatprep.subr.mxu0 %v1611
        %1672 = vmatpush1.msra.mxu0 %v1610
        %1673 = vmatprep.subr.mxu0 %v1608
        %1674 = vmatpush1.msra.mxu0 %v1607
        %1675 = vmatprep.subr.mxu0 %v1605
        %1676 = vmatpush1.msra.mxu0 %v1604
        %1677 = vmatprep.subr.mxu0 %v1602
        %1678 = vmatpush1.msra.mxu0 %v1601
        %1679 = vmatprep.subr.mxu0 %v1599
        %1680 = vmatpush1.msra.mxu0 %v1598
        %1681 = vmatprep.subr.mxu0 %v1596
        %1682 = vmatpush1.msra.mxu0 %v1595
        %1683 = vmatprep.subr.mxu0 %v1593
        %1684 = vmatpush1.msra.mxu0 %v1592
        %1685 = vmatprep.subr.mxu0 %v1590
        %1686 = vmatpush1.msra.mxu0 %v1589
        %1687 = vmatprep.subr.mxu0 %v1587
        %1688 = vmatpush1.msra.mxu0 %v1586
        %1689 = vmatprep.subr.mxu0 %v1584
        %1690 = vmatpush1.msra.mxu0 %v1583
        %1691 = vmatprep.subr.mxu0 %v1581
        %1692 = vmatpush1.msra.mxu0 %v1580
        %1693 = vmatprep.subr.mxu0 %v1578
        %1694 = vmatpush1.msra.mxu0 %v1577
        %1695 = vmatprep.subr.mxu0 %v1575
        %1696 = vmatpush1.msra.mxu0 %v1574
        %1697 = vmatprep.subr.mxu0 %v1572
        %1698 = vmatpush1.msra.mxu0 %v1571
        %1699 = vmatprep.subr.mxu0 %v1569
        %1700 = vmatpush1.msra.mxu0 %v1568
        %1701 = vmatprep.subr.mxu0 %v1566
        %1702 = vmatpush1.msra.mxu0 %v1565
        %1703 = vmatprep.subr.mxu0 0.0
        %1704 = vmatpush2.msra.mxu0 0.0
        %1705 = vmatprep.subr.mxu0 0.0
        %1706 = vmatpush2.msra.mxu0 0.0
        %1707 = vmatprep.subr.mxu0 0.0
        %1708 = vmatpush2.msra.mxu0 0.0
        %1709 = vmatprep.subr.mxu0 0.0
        %1710 = vmatpush2.msra.mxu0 0.0
        %1711 = vmatprep.subr.mxu0 0.0
        %1712 = vmatpush2.msra.mxu0 0.0
        %1713 = vmatprep.subr.mxu0 0.0
        %1714 = vmatpush2.msra.mxu0 0.0
        %1715 = vmatprep.subr.mxu0 %v1641
        %1716 = vmatpush2.msra.mxu0 %v1640
        %1717 = vmatprep.subr.mxu0 %v1638
        %1718 = vmatpush2.msra.mxu0 %v1637
        %1719 = vmatprep.subr.mxu0 %v1635
        %1720 = vmatpush2.msra.mxu0 %v1634
        %1721 = vmatprep.subr.mxu0 %v1632
        %1722 = vmatpush2.msra.mxu0 %v1631
        %1723 = vmatprep.subr.mxu0 %v1629
        %1724 = vmatpush2.msra.mxu0 %v1628
        %1725 = vmatprep.subr.mxu0 %v1626
        %1726 = vmatpush2.msra.mxu0 %v1625
        %1727 = vmatprep.subr.mxu0 %v1623
        %1728 = vmatpush2.msra.mxu0 %v1622
        %1729 = vmatprep.subr.mxu0 %v1620
        %1730 = vmatpush2.msra.mxu0 %v1619
        %1731 = vmatprep.subr.mxu0 %v1617
        %1732 = vmatpush2.msra.mxu0 %v1616
        %1733 = vmatprep.subr.mxu0 %v1614
        %1734 = vmatpush2.msra.mxu0 %v1613
        %1735 = vmatprep.mubr.f32.mxu0 %v1665
        %1736 = vmatmul.mubr.f32.gmra.mxu0 %v1650
        %v1737 = vpop.f32.mrf.mxu0
        %v1738 = vadd.f32 0.0, %v1737
        %v1739 = vpop.f32.mrf.mxu0
        %v1740 = vadd.f32 0.0, %v1739
        %1741 = vmatprep.mubr.f32.mxu0 %v1667
        %1742 = vmatmul.mubr.f32.gmra.mxu0 %v1655
        %v1743 = vpop.f32.mrf.mxu0
        %v1744 = vadd.f32 0.0, %v1743
        %v1745 = vpop.f32.mrf.mxu0
        %v1746 = vadd.f32 0.0, %v1745
        %1747 = vmatprep.mubr.f32.mxu0 %v1669
        %1748 = vmatmul.mubr.f32.gmra.mxu0 %v1659
        %v1749 = vpop.f32.mrf.mxu0
        %v1750 = vadd.f32 0.0, %v1749
        %v1751 = vpop.f32.mrf.mxu0
        %v1752 = vadd.f32 0.0, %v1751
        %1753 = vdwg.mxu0
        %1754 = vmatprep.subr.mxu0 0.0
        %1755 = vmatpush1.msra.mxu0 %v1612
        %1756 = vmatprep.subr.mxu0 0.0
        %1757 = vmatpush1.msra.mxu0 %v1609
        %1758 = vmatprep.subr.mxu0 0.0
        %1759 = vmatpush1.msra.mxu0 %v1606
        %1760 = vmatprep.subr.mxu0 0.0
        %1761 = vmatpush1.msra.mxu0 %v1603
        %1762 = vmatprep.subr.mxu0 0.0
        %1763 = vmatpush1.msra.mxu0 %v1600
        %1764 = vmatprep.subr.mxu0 0.0
        %1765 = vmatpush1.msra.mxu0 %v1597
        %1766 = vmatprep.subr.mxu0 0.0
        %1767 = vmatpush1.msra.mxu0 %v1594
        %1768 = vmatprep.subr.mxu0 0.0
        %1769 = vmatpush1.msra.mxu0 %v1591
        %1770 = vmatprep.subr.mxu0 0.0
        %1771 = vmatpush1.msra.mxu0 %v1588
        %1772 = vmatprep.subr.mxu0 0.0
        %1773 = vmatpush1.msra.mxu0 %v1585
        %1774 = vmatprep.subr.mxu0 0.0
        %1775 = vmatpush1.msra.mxu0 %v1582
        %1776 = vmatprep.subr.mxu0 0.0
        %1777 = vmatpush1.msra.mxu0 %v1579
        %1778 = vmatprep.subr.mxu0 0.0
        %1779 = vmatpush1.msra.mxu0 %v1576
        %1780 = vmatprep.subr.mxu0 0.0
        %1781 = vmatpush1.msra.mxu0 %v1573
        %1782 = vmatprep.subr.mxu0 0.0
        %1783 = vmatpush1.msra.mxu0 %v1570
        %1784 = vmatprep.subr.mxu0 0.0
        %1785 = vmatpush1.msra.mxu0 %v1567
        %1786 = vmatprep.subr.mxu0 0.0
        %1787 = vmatpush2.msra.mxu0 0.0
        %1788 = vmatprep.subr.mxu0 0.0
        %1789 = vmatpush2.msra.mxu0 0.0
        %1790 = vmatprep.subr.mxu0 0.0
        %1791 = vmatpush2.msra.mxu0 0.0
        %1792 = vmatprep.subr.mxu0 0.0
        %1793 = vmatpush2.msra.mxu0 0.0
        %1794 = vmatprep.subr.mxu0 0.0
        %1795 = vmatpush2.msra.mxu0 0.0
        %1796 = vmatprep.subr.mxu0 0.0
        %1797 = vmatpush2.msra.mxu0 0.0
        %1798 = vmatprep.subr.mxu0 0.0
        %1799 = vmatpush2.msra.mxu0 %v1642
        %1800 = vmatprep.subr.mxu0 0.0
        %1801 = vmatpush2.msra.mxu0 %v1639
        %1802 = vmatprep.subr.mxu0 0.0
        %1803 = vmatpush2.msra.mxu0 %v1636
        %1804 = vmatprep.subr.mxu0 0.0
        %1805 = vmatpush2.msra.mxu0 %v1633
        %1806 = vmatprep.subr.mxu0 0.0
        %1807 = vmatpush2.msra.mxu0 %v1630
        %1808 = vmatprep.subr.mxu0 0.0
        %1809 = vmatpush2.msra.mxu0 %v1627
        %1810 = vmatprep.subr.mxu0 0.0
        %1811 = vmatpush2.msra.mxu0 %v1624
        %1812 = vmatprep.subr.mxu0 0.0
        %1813 = vmatpush2.msra.mxu0 %v1621
        %1814 = vmatprep.subr.mxu0 0.0
        %1815 = vmatpush2.msra.mxu0 %v1618
        %1816 = vmatprep.subr.mxu0 0.0
        %1817 = vmatpush2.msra.mxu0 %v1615
        %1818 = vmatprep.mubr.f32.mxu0 %v1665
        %1819 = vmatmul.mubr.f32.gmra.mxu0 %v1650
        %v1820 = vpop.f32.mrf.mxu0
        %v1821 = vadd.f32 0.0, %v1820
        %v1822 = vpop.f32.mrf.mxu0
        %1823 = vmatprep.mubr.f32.mxu0 %v1667
        %1824 = vmatmul.mubr.f32.gmra.mxu0 %v1655
        %v1825 = vpop.f32.mrf.mxu0
        %v1826 = vadd.f32 0.0, %v1825
        %v1827 = vpop.f32.mrf.mxu0
        %1828 = vmatprep.mubr.f32.mxu0 %v1669
        %1829 = vmatmul.mubr.f32.gmra.mxu0 %v1659
        %v1830 = vpop.f32.mrf.mxu0
        %v1831 = vadd.f32 0.0, %v1830
        %v1832 = vpop.f32.mrf.mxu0
        %1833 = vdwg.mxu0
        %v1834 = vadd.f32 %v1464, %v1738
        %v1835 = vadd.f32 %v1466, %v1740
        %v1836 = vadd.f32 %v1547, %v1821
        %v1837 = vadd.f32 %v1470, %v1744
        %v1838 = vadd.f32 %v1472, %v1746
        %v1839 = vadd.f32 %v1552, %v1826
        %v1840 = vadd.f32 %v1476, %v1750
        %v1841 = vadd.f32 %v1478, %v1752
        %v1842 = vadd.f32 %v1557, %v1831
        %v1843 = vmax.f32 %v1834, 0.0
        %v1844 = vmax.f32 %v1835, 0.0
        %v1845 = vmax.f32 %v1836, 0.0
        %v1846 = vmax.f32 %v1837, 0.0
        %v1847 = vmax.f32 %v1838, 0.0
        %v1848 = vmax.f32 %v1839, 0.0
        %v1849 = vmax.f32 %v1840, 0.0
        %v1850 = vmax.f32 %v1841, 0.0
        %v1851 = vmax.f32 %v1842, 0.0
        %v1852 = vld [vmem:[%s4] ss:$2 sm:$0x7]
        %v1854 = vlaneseq
        %v1855 = vshrl.u32 %v1854, 7
        %v1856 = vsub.s32 0, %v1855
        %v1857 = vrot.slane %v1852, %v1856
        %v1858 = vlaneseq
        %v1859 = vshrl.u32 %v1858, 7
        %v1860 = vsub.s32 1, %v1859
        %v1861 = vrot.slane %v1852, %v1860
        %v1862 = vlaneseq
        %v1863 = vshrl.u32 %v1862, 7
        %v1864 = vsub.s32 2, %v1863
        %v1865 = vrot.slane %v1852, %v1864
        %v1869 = vmul.f32 %v1843, %v1857
        %v1870 = vmul.f32 %v1844, %v1861
        %v1871 = vmul.f32 %v1845, %v1865
        %v1872 = vmul.f32 %v1846, %v1857
        %v1873 = vmul.f32 %v1847, %v1861
        %v1874 = vmul.f32 %v1848, %v1865
        %v1875 = vmul.f32 %v1849, %v1857
        %v1876 = vmul.f32 %v1850, %v1861
        %v1877 = vmul.f32 %v1851, %v1865
        %s1878 = scalar_lea.vmem %s4, 1
        %v1879 = vld [vmem:[%s1878] ss:$2 sm:$0x7]
        %v1881 = vlaneseq
        %v1882 = vshrl.u32 %v1881, 7
        %v1883 = vsub.s32 0, %v1882
        %v1884 = vrot.slane %v1879, %v1883
        %v1885 = vlaneseq
        %v1886 = vshrl.u32 %v1885, 7
        %v1887 = vsub.s32 1, %v1886
        %v1888 = vrot.slane %v1879, %v1887
        %v1889 = vlaneseq
        %v1890 = vshrl.u32 %v1889, 7
        %v1891 = vsub.s32 2, %v1890
        %v1892 = vrot.slane %v1879, %v1891
        %v1896 = vadd.f32 %v1869, %v1884
        %v1897 = vadd.f32 %v1870, %v1888
        %v1898 = vadd.f32 %v1871, %v1892
        %v1899 = vadd.f32 %v1872, %v1884
        %v1900 = vadd.f32 %v1873, %v1888
        %v1901 = vadd.f32 %v1874, %v1892
        %v1902 = vadd.f32 %v1875, %v1884
        %v1903 = vadd.f32 %v1876, %v1888
        %v1904 = vadd.f32 %v1877, %v1892
        %v1905 = vld [vmem:[%s5] sm:$0xff]
        %v1906 = vld [vmem:[%s5 + $0x8] sm:$0xff]
        %v1907 = vld [vmem:[%s5 + $0x10] sm:$0xff]
        %v1908 = vld [vmem:[%s5 + $0x18] sm:$0xff]
        %v1909 = vld [vmem:[%s5 + $0x20] sm:$0xff]
        %v1910 = vld [vmem:[%s5 + $0x28] sm:$0xff]
        %v1911 = vld [vmem:[%s5 + $0x30] sm:$0xff]
        %v1912 = vld [vmem:[%s5 + $0x38] sm:$0xff]
        %v1913 = vld [vmem:[%s5 + $0x40] sm:$0xff]
        %v1914 = vld [vmem:[%s5 + $0x48] sm:$0xff]
        %v1915 = vld [vmem:[%s5 + $0x50] sm:$0xff]
        %v1916 = vld [vmem:[%s5 + $0x58] sm:$0xff]
        %v1917 = vld [vmem:[%s5 + $0x60] sm:$0xff]
        %v1918 = vld [vmem:[%s5 + $0x68] sm:$0xff]
        %v1919 = vld [vmem:[%s5 + $0x70] sm:$0xff]
        %v1920 = vld [vmem:[%s5 + $0x78] sm:$0xff]
        %v1921 = vld [vmem:[%s5 + $0x80] sm:$0xff]
        %v1922 = vld [vmem:[%s5 + $0x88] sm:$0xff]
        %v1923 = vld [vmem:[%s5 + $0x90] sm:$0xff]
        %v1924 = vld [vmem:[%s5 + $0x98] sm:$0xff]
        %v1925 = vld [vmem:[%s5 + $0xa0] sm:$0xff]
        %v1926 = vld [vmem:[%s5 + $0xa8] sm:$0xff]
        %v1927 = vld [vmem:[%s5 + $0xb0] sm:$0xff]
        %v1928 = vld [vmem:[%s5 + $0xb8] sm:$0xff]
        %v1929 = vld [vmem:[%s5 + $0xc0] sm:$0xff]
        %v1930 = vld [vmem:[%s5 + $0xc8] sm:$0xff]
        %v1931 = vld [vmem:[%s5 + $0xd0] sm:$0xff]
        %v1932 = vld [vmem:[%s5 + $0xd8] sm:$0xff]
        %v1933 = vld [vmem:[%s5 + $0xe0] sm:$0xff]
        %v1934 = vld [vmem:[%s5 + $0xe8] sm:$0xff]
        %v1935 = vld [vmem:[%s5 + $0xf0] sm:$0xff]
        %v1936 = vld [vmem:[%s5 + $0xf8] sm:$0xff]
        %v1937 = vld [vmem:[%s5 + $0x100] sm:$0xff]
        %v1938 = vld [vmem:[%s5 + $0x108] sm:$0xff]
        %v1939 = vld [vmem:[%s5 + $0x110] sm:$0xff]
        %v1940 = vld [vmem:[%s5 + $0x118] sm:$0xff]
        %v1941 = vld [vmem:[%s5 + $0x120] sm:$0xff]
        %v1942 = vld [vmem:[%s5 + $0x128] sm:$0xff]
        %v1943 = vld [vmem:[%s5 + $0x130] sm:$0xff]
        %v1944 = vld [vmem:[%s5 + $0x138] sm:$0xff]
        %v1945 = vld [vmem:[%s5 + $0x140] sm:$0xff]
        %v1946 = vld [vmem:[%s5 + $0x148] sm:$0xff]
        %v1947 = vld [vmem:[%s5 + $0x150] sm:$0xff]
        %v1948 = vld [vmem:[%s5 + $0x158] sm:$0xff]
        %v1949 = vld [vmem:[%s5 + $0x160] sm:$0xff]
        %v1950 = vld [vmem:[%s5 + $0x168] sm:$0xff]
        %v1951 = vld [vmem:[%s5 + $0x170] sm:$0xff]
        %v1952 = vld [vmem:[%s5 + $0x178] sm:$0xff]
        %v1953 = vld [vmem:[%s5 + $0x180] sm:$0xff]
        %v1954 = vld [vmem:[%s5 + $0x188] sm:$0xff]
        %v1955 = vld [vmem:[%s5 + $0x190] sm:$0xff]
        %v1956 = vld [vmem:[%s5 + $0x198] sm:$0xff]
        %v1957 = vld [vmem:[%s5 + $0x1a0] sm:$0xff]
        %v1958 = vld [vmem:[%s5 + $0x1a8] sm:$0xff]
        %v1959 = vld [vmem:[%s5 + $0x1b0] sm:$0xff]
        %v1960 = vld [vmem:[%s5 + $0x1b8] sm:$0xff]
        %v1961 = vld [vmem:[%s5 + $0x1c0] sm:$0xff]
        %v1962 = vld [vmem:[%s5 + $0x1c8] sm:$0xff]
        %v1963 = vld [vmem:[%s5 + $0x1d0] sm:$0xff]
        %v1964 = vld [vmem:[%s5 + $0x1d8] sm:$0xff]
        %v1965 = vld [vmem:[%s5 + $0x1e0] sm:$0xff]
        %v1966 = vld [vmem:[%s5 + $0x1e8] sm:$0xff]
        %v1967 = vld [vmem:[%s5 + $0x1f0] sm:$0xff]
        %v1968 = vld [vmem:[%s5 + $0x1f8] sm:$0xff]
        %v1969 = vld [vmem:[%s5 + $0x200] sm:$0xff]
        %v1970 = vld [vmem:[%s5 + $0x208] sm:$0xff]
        %v1971 = vld [vmem:[%s5 + $0x210] sm:$0xff]
        %v1972 = vld [vmem:[%s5 + $0x218] sm:$0xff]
        %v1973 = vld [vmem:[%s5 + $0x220] sm:$0xff]
        %v1974 = vld [vmem:[%s5 + $0x228] sm:$0xff]
        %v1975 = vld [vmem:[%s5 + $0x230] sm:$0xff]
        %v1976 = vld [vmem:[%s5 + $0x238] sm:$0xff]
        %v1977 = vld [vmem:[%s5 + $0x240] sm:$0xff]
        %v1978 = vld [vmem:[%s5 + $0x248] sm:$0xff]
        %v1979 = vld [vmem:[%s5 + $0x250] sm:$0xff]
        %v1980 = vld [vmem:[%s5 + $0x258] sm:$0xff]
        %v1981 = vld [vmem:[%s5 + $0x260] sm:$0xff]
        %v1982 = vld [vmem:[%s5 + $0x268] sm:$0xff]
        %v1983 = vld [vmem:[%s5 + $0x270] sm:$0xff]
        %v1984 = vld [vmem:[%s5 + $0x278] sm:$0xff]
        %v1985 = vld [vmem:[%s5 + $0x280] sm:$0xff]
        %v1986 = vld [vmem:[%s5 + $0x288] sm:$0xff]
        %v1987 = vld [vmem:[%s5 + $0x290] sm:$0xff]
        %v1988 = vld [vmem:[%s5 + $0x298] sm:$0xff]
        %v1989 = vld [vmem:[%s5 + $0x2a0] sm:$0xff]
        %v1990 = vld [vmem:[%s5 + $0x2a8] sm:$0xff]
        %v1991 = vld [vmem:[%s5 + $0x2b0] sm:$0xff]
        %v1992 = vld [vmem:[%s5 + $0x2b8] sm:$0xff]
        %v1993 = vld [vmem:[%s5 + $0x2c0] sm:$0xff]
        %v1994 = vld [vmem:[%s5 + $0x2c8] sm:$0xff]
        %v1995 = vld [vmem:[%s5 + $0x2d0] sm:$0xff]
        %v1996 = vld [vmem:[%s5 + $0x2d8] sm:$0xff]
        %v1997 = vld [vmem:[%s5 + $0x2e0] sm:$0xff]
        %v1998 = vld [vmem:[%s5 + $0x2e8] sm:$0xff]
        %v1999 = vld [vmem:[%s5 + $0x2f0] sm:$0xff]
        %v2000 = vld [vmem:[%s5 + $0x2f8] sm:$0xff]
        %2001 = vmatprep.subr.mxu0 %v1936
        %2002 = vmatpush1.msra.mxu0 %v1935
        %2003 = vmatprep.subr.mxu0 %v1934
        %2004 = vmatpush1.msra.mxu0 %v1933
        %2005 = vmatprep.subr.mxu0 %v1932
        %2006 = vmatpush1.msra.mxu0 %v1931
        %2007 = vmatprep.subr.mxu0 %v1930
        %2008 = vmatpush1.msra.mxu0 %v1929
        %2009 = vmatprep.subr.mxu0 %v1928
        %2010 = vmatpush1.msra.mxu0 %v1927
        %2011 = vmatprep.subr.mxu0 %v1926
        %2012 = vmatpush1.msra.mxu0 %v1925
        %2013 = vmatprep.subr.mxu0 %v1924
        %2014 = vmatpush1.msra.mxu0 %v1923
        %2015 = vmatprep.subr.mxu0 %v1922
        %2016 = vmatpush1.msra.mxu0 %v1921
        %2017 = vmatprep.subr.mxu0 %v1920
        %2018 = vmatpush1.msra.mxu0 %v1919
        %2019 = vmatprep.subr.mxu0 %v1918
        %2020 = vmatpush1.msra.mxu0 %v1917
        %2021 = vmatprep.subr.mxu0 %v1916
        %2022 = vmatpush1.msra.mxu0 %v1915
        %2023 = vmatprep.subr.mxu0 %v1914
        %2024 = vmatpush1.msra.mxu0 %v1913
        %2025 = vmatprep.subr.mxu0 %v1912
        %2026 = vmatpush1.msra.mxu0 %v1911
        %2027 = vmatprep.subr.mxu0 %v1910
        %2028 = vmatpush1.msra.mxu0 %v1909
        %2029 = vmatprep.subr.mxu0 %v1908
        %2030 = vmatpush1.msra.mxu0 %v1907
        %2031 = vmatprep.subr.mxu0 %v1906
        %2032 = vmatpush1.msra.mxu0 %v1905
        %2033 = vmatprep.subr.mxu0 %v1968
        %2034 = vmatpush2.msra.mxu0 %v1967
        %2035 = vmatprep.subr.mxu0 %v1966
        %2036 = vmatpush2.msra.mxu0 %v1965
        %2037 = vmatprep.subr.mxu0 %v1964
        %2038 = vmatpush2.msra.mxu0 %v1963
        %2039 = vmatprep.subr.mxu0 %v1962
        %2040 = vmatpush2.msra.mxu0 %v1961
        %2041 = vmatprep.subr.mxu0 %v1960
        %2042 = vmatpush2.msra.mxu0 %v1959
        %2043 = vmatprep.subr.mxu0 %v1958
        %2044 = vmatpush2.msra.mxu0 %v1957
        %2045 = vmatprep.subr.mxu0 %v1956
        %2046 = vmatpush2.msra.mxu0 %v1955
        %2047 = vmatprep.subr.mxu0 %v1954
        %2048 = vmatpush2.msra.mxu0 %v1953
        %2049 = vmatprep.subr.mxu0 %v1952
        %2050 = vmatpush2.msra.mxu0 %v1951
        %2051 = vmatprep.subr.mxu0 %v1950
        %2052 = vmatpush2.msra.mxu0 %v1949
        %2053 = vmatprep.subr.mxu0 %v1948
        %2054 = vmatpush2.msra.mxu0 %v1947
        %2055 = vmatprep.subr.mxu0 %v1946
        %2056 = vmatpush2.msra.mxu0 %v1945
        %2057 = vmatprep.subr.mxu0 %v1944
        %2058 = vmatpush2.msra.mxu0 %v1943
        %2059 = vmatprep.subr.mxu0 %v1942
        %2060 = vmatpush2.msra.mxu0 %v1941
        %2061 = vmatprep.subr.mxu0 %v1940
        %2062 = vmatpush2.msra.mxu0 %v1939
        %2063 = vmatprep.subr.mxu0 %v1938
        %2064 = vmatpush2.msra.mxu0 %v1937
        %2065 = vmatprep.mubr.f32.mxu0 %v1897
        %2066 = vmatmul.mubr.f32.gmra.mxu0 %v1896
        %v2067 = vpop.f32.mrf.mxu0
        %v2068 = vadd.f32 0.0, %v2067
        %v2069 = vpop.f32.mrf.mxu0
        %v2070 = vadd.f32 0.0, %v2069
        %2071 = vmatprep.mubr.f32.mxu0 %v1900
        %2072 = vmatmul.mubr.f32.gmra.mxu0 %v1899
        %v2073 = vpop.f32.mrf.mxu0
        %v2074 = vadd.f32 0.0, %v2073
        %v2075 = vpop.f32.mrf.mxu0
        %v2076 = vadd.f32 0.0, %v2075
        %2077 = vmatprep.mubr.f32.mxu0 %v1903
        %2078 = vmatmul.mubr.f32.gmra.mxu0 %v1902
        %v2079 = vpop.f32.mrf.mxu0
        %v2080 = vadd.f32 0.0, %v2079
        %v2081 = vpop.f32.mrf.mxu0
        %v2082 = vadd.f32 0.0, %v2081
        %2083 = vdwg.mxu0
        %2084 = vmatprep.subr.mxu0 %v2000
        %2085 = vmatpush1.msra.mxu0 %v1999
        %2086 = vmatprep.subr.mxu0 %v1998
        %2087 = vmatpush1.msra.mxu0 %v1997
        %2088 = vmatprep.subr.mxu0 %v1996
        %2089 = vmatpush1.msra.mxu0 %v1995
        %2090 = vmatprep.subr.mxu0 %v1994
        %2091 = vmatpush1.msra.mxu0 %v1993
        %2092 = vmatprep.subr.mxu0 %v1992
        %2093 = vmatpush1.msra.mxu0 %v1991
        %2094 = vmatprep.subr.mxu0 %v1990
        %2095 = vmatpush1.msra.mxu0 %v1989
        %2096 = vmatprep.subr.mxu0 %v1988
        %2097 = vmatpush1.msra.mxu0 %v1987
        %2098 = vmatprep.subr.mxu0 %v1986
        %2099 = vmatpush1.msra.mxu0 %v1985
        %2100 = vmatprep.subr.mxu0 %v1984
        %2101 = vmatpush1.msra.mxu0 %v1983
        %2102 = vmatprep.subr.mxu0 %v1982
        %2103 = vmatpush1.msra.mxu0 %v1981
        %2104 = vmatprep.subr.mxu0 %v1980
        %2105 = vmatpush1.msra.mxu0 %v1979
        %2106 = vmatprep.subr.mxu0 %v1978
        %2107 = vmatpush1.msra.mxu0 %v1977
        %2108 = vmatprep.subr.mxu0 %v1976
        %2109 = vmatpush1.msra.mxu0 %v1975
        %2110 = vmatprep.subr.mxu0 %v1974
        %2111 = vmatpush1.msra.mxu0 %v1973
        %2112 = vmatprep.subr.mxu0 %v1972
        %2113 = vmatpush1.msra.mxu0 %v1971
        %2114 = vmatprep.subr.mxu0 %v1970
        %2115 = vmatpush1.msra.mxu0 %v1969
        %2116 = vmatprep.subr.mxu0 0.0
        %2117 = vmatpush2.msra.mxu0 0.0
        %2118 = vmatprep.subr.mxu0 0.0
        %2119 = vmatpush2.msra.mxu0 0.0
        %2120 = vmatprep.subr.mxu0 0.0
        %2121 = vmatpush2.msra.mxu0 0.0
        %2122 = vmatprep.subr.mxu0 0.0
        %2123 = vmatpush2.msra.mxu0 0.0
        %2124 = vmatprep.subr.mxu0 0.0
        %2125 = vmatpush2.msra.mxu0 0.0
        %2126 = vmatprep.subr.mxu0 0.0
        %2127 = vmatpush2.msra.mxu0 0.0
        %2128 = vmatprep.subr.mxu0 0.0
        %2129 = vmatpush2.msra.mxu0 0.0
        %2130 = vmatprep.subr.mxu0 0.0
        %2131 = vmatpush2.msra.mxu0 0.0
        %2132 = vmatprep.subr.mxu0 0.0
        %2133 = vmatpush2.msra.mxu0 0.0
        %2134 = vmatprep.subr.mxu0 0.0
        %2135 = vmatpush2.msra.mxu0 0.0
        %2136 = vmatprep.subr.mxu0 0.0
        %2137 = vmatpush2.msra.mxu0 0.0
        %2138 = vmatprep.subr.mxu0 0.0
        %2139 = vmatpush2.msra.mxu0 0.0
        %2140 = vmatprep.subr.mxu0 0.0
        %2141 = vmatpush2.msra.mxu0 0.0
        %2142 = vmatprep.subr.mxu0 0.0
        %2143 = vmatpush2.msra.mxu0 0.0
        %2144 = vmatprep.subr.mxu0 0.0
        %2145 = vmatpush2.msra.mxu0 0.0
        %2146 = vmatprep.subr.mxu0 0.0
        %2147 = vmatpush2.msra.mxu0 0.0
        %2148 = vmatprep.mubr.f32.mxu0 0.0
        %2149 = vmatmul.mubr.f32.gmra.mxu0 %v1898
        %v2150 = vpop.f32.mrf.mxu0
        %v2151 = vadd.f32 %v2068, %v2150
        %v2152 = vpop.f32.mrf.mxu0
        %v2153 = vadd.f32 %v2070, %v2152
        %2154 = vmatprep.mubr.f32.mxu0 0.0
        %2155 = vmatmul.mubr.f32.gmra.mxu0 %v1901
        %v2156 = vpop.f32.mrf.mxu0
        %v2157 = vadd.f32 %v2074, %v2156
        %v2158 = vpop.f32.mrf.mxu0
        %v2159 = vadd.f32 %v2076, %v2158
        %2160 = vmatprep.mubr.f32.mxu0 0.0
        %2161 = vmatmul.mubr.f32.gmra.mxu0 %v1904
        %v2162 = vpop.f32.mrf.mxu0
        %v2163 = vadd.f32 %v2080, %v2162
        %v2164 = vpop.f32.mrf.mxu0
        %v2165 = vadd.f32 %v2082, %v2164
        %2166 = vdwg.mxu0
        %s2167 = scalar_lea.vmem %s5, 768
        %v2168 = vld [vmem:[%s2167] sm:$0xff]
        %v2169 = vld [vmem:[%s2167 + $0x8] sm:$0xff]
        %v2170 = vld [vmem:[%s2167 + $0x10] sm:$0xff]
        %v2171 = vld [vmem:[%s2167 + $0x18] sm:$0xff]
        %v2172 = vld [vmem:[%s2167 + $0x20] sm:$0xff]
        %v2173 = vld [vmem:[%s2167 + $0x28] sm:$0xff]
        %v2174 = vld [vmem:[%s2167 + $0x30] sm:$0xff]
        %v2175 = vld [vmem:[%s2167 + $0x38] sm:$0xff]
        %v2176 = vld [vmem:[%s2167 + $0x40] sm:$0xff]
        %v2177 = vld [vmem:[%s2167 + $0x48] sm:$0xff]
        %v2178 = vld [vmem:[%s2167 + $0x50] sm:$0xff]
        %v2179 = vld [vmem:[%s2167 + $0x58] sm:$0xff]
        %v2180 = vld [vmem:[%s2167 + $0x60] sm:$0xff]
        %v2181 = vld [vmem:[%s2167 + $0x68] sm:$0xff]
        %v2182 = vld [vmem:[%s2167 + $0x70] sm:$0xff]
        %v2183 = vld [vmem:[%s2167 + $0x78] sm:$0xff]
        %v2184 = vld [vmem:[%s2167 + $0x80] sm:$0xff]
        %v2185 = vld [vmem:[%s2167 + $0x88] sm:$0xff]
        %v2186 = vld [vmem:[%s2167 + $0x90] sm:$0xff]
        %v2187 = vld [vmem:[%s2167 + $0x98] sm:$0xff]
        %v2188 = vld [vmem:[%s2167 + $0xa0] sm:$0xff]
        %v2189 = vld [vmem:[%s2167 + $0xa8] sm:$0xff]
        %v2190 = vld [vmem:[%s2167 + $0xb0] sm:$0xff]
        %v2191 = vld [vmem:[%s2167 + $0xb8] sm:$0xff]
        %v2192 = vld [vmem:[%s2167 + $0xc0] sm:$0xff]
        %v2193 = vld [vmem:[%s2167 + $0xc8] sm:$0xff]
        %v2194 = vld [vmem:[%s2167 + $0xd0] sm:$0xff]
        %v2195 = vld [vmem:[%s2167 + $0xd8] sm:$0xff]
        %v2196 = vld [vmem:[%s2167 + $0xe0] sm:$0xff]
        %v2197 = vld [vmem:[%s2167 + $0xe8] sm:$0xff]
        %v2198 = vld [vmem:[%s2167 + $0xf0] sm:$0xff]
        %v2199 = vld [vmem:[%s2167 + $0xf8] sm:$0xff]
        %v2200 = vld [vmem:[%s2167 + $0x100] sm:$0xff]
        %v2201 = vld [vmem:[%s2167 + $0x108] sm:$0xff]
        %v2202 = vld [vmem:[%s2167 + $0x110] sm:$0xff]
        %v2203 = vld [vmem:[%s2167 + $0x118] sm:$0xff]
        %v2204 = vld [vmem:[%s2167 + $0x120] sm:$0xff]
        %v2205 = vld [vmem:[%s2167 + $0x128] sm:$0xff]
        %v2206 = vld [vmem:[%s2167 + $0x130] sm:$0xff]
        %v2207 = vld [vmem:[%s2167 + $0x138] sm:$0xff]
        %v2208 = vld [vmem:[%s2167 + $0x140] sm:$0xff]
        %v2209 = vld [vmem:[%s2167 + $0x148] sm:$0xff]
        %v2210 = vld [vmem:[%s2167 + $0x150] sm:$0xff]
        %v2211 = vld [vmem:[%s2167 + $0x158] sm:$0xff]
        %v2212 = vld [vmem:[%s2167 + $0x160] sm:$0xff]
        %v2213 = vld [vmem:[%s2167 + $0x168] sm:$0xff]
        %v2214 = vld [vmem:[%s2167 + $0x170] sm:$0xff]
        %v2215 = vld [vmem:[%s2167 + $0x178] sm:$0xff]
        %v2216 = vld [vmem:[%s2167 + $0x180] sm:$0xff]
        %v2217 = vld [vmem:[%s2167 + $0x188] sm:$0xff]
        %v2218 = vld [vmem:[%s2167 + $0x190] sm:$0xff]
        %v2219 = vld [vmem:[%s2167 + $0x198] sm:$0xff]
        %v2220 = vld [vmem:[%s2167 + $0x1a0] sm:$0xff]
        %v2221 = vld [vmem:[%s2167 + $0x1a8] sm:$0xff]
        %v2222 = vld [vmem:[%s2167 + $0x1b0] sm:$0xff]
        %v2223 = vld [vmem:[%s2167 + $0x1b8] sm:$0xff]
        %v2224 = vld [vmem:[%s2167 + $0x1c0] sm:$0xff]
        %v2225 = vld [vmem:[%s2167 + $0x1c8] sm:$0xff]
        %v2226 = vld [vmem:[%s2167 + $0x1d0] sm:$0xff]
        %v2227 = vld [vmem:[%s2167 + $0x1d8] sm:$0xff]
        %v2228 = vld [vmem:[%s2167 + $0x1e0] sm:$0xff]
        %v2229 = vld [vmem:[%s2167 + $0x1e8] sm:$0xff]
        %v2230 = vld [vmem:[%s2167 + $0x1f0] sm:$0xff]
        %v2231 = vld [vmem:[%s2167 + $0x1f8] sm:$0xff]
        %v2232 = vld [vmem:[%s2167 + $0x200] sm:$0xff]
        %v2233 = vld [vmem:[%s2167 + $0x208] sm:$0xff]
        %v2234 = vld [vmem:[%s2167 + $0x210] sm:$0xff]
        %v2235 = vld [vmem:[%s2167 + $0x218] sm:$0xff]
        %v2236 = vld [vmem:[%s2167 + $0x220] sm:$0xff]
        %v2237 = vld [vmem:[%s2167 + $0x228] sm:$0xff]
        %v2238 = vld [vmem:[%s2167 + $0x230] sm:$0xff]
        %v2239 = vld [vmem:[%s2167 + $0x238] sm:$0xff]
        %v2240 = vld [vmem:[%s2167 + $0x240] sm:$0xff]
        %v2241 = vld [vmem:[%s2167 + $0x248] sm:$0xff]
        %v2242 = vld [vmem:[%s2167 + $0x250] sm:$0xff]
        %v2243 = vld [vmem:[%s2167 + $0x258] sm:$0xff]
        %v2244 = vld [vmem:[%s2167 + $0x260] sm:$0xff]
        %v2245 = vld [vmem:[%s2167 + $0x268] sm:$0xff]
        %v2246 = vld [vmem:[%s2167 + $0x270] sm:$0xff]
        %v2247 = vld [vmem:[%s2167 + $0x278] sm:$0xff]
        %v2248 = vld [vmem:[%s2167 + $0x280] sm:$0xff]
        %v2249 = vld [vmem:[%s2167 + $0x288] sm:$0xff]
        %v2250 = vld [vmem:[%s2167 + $0x290] sm:$0xff]
        %v2251 = vld [vmem:[%s2167 + $0x298] sm:$0xff]
        %v2252 = vld [vmem:[%s2167 + $0x2a0] sm:$0xff]
        %v2253 = vld [vmem:[%s2167 + $0x2a8] sm:$0xff]
        %v2254 = vld [vmem:[%s2167 + $0x2b0] sm:$0xff]
        %v2255 = vld [vmem:[%s2167 + $0x2b8] sm:$0xff]
        %v2256 = vld [vmem:[%s2167 + $0x2c0] sm:$0xff]
        %v2257 = vld [vmem:[%s2167 + $0x2c8] sm:$0xff]
        %v2258 = vld [vmem:[%s2167 + $0x2d0] sm:$0xff]
        %v2259 = vld [vmem:[%s2167 + $0x2d8] sm:$0xff]
        %v2260 = vld [vmem:[%s2167 + $0x2e0] sm:$0xff]
        %v2261 = vld [vmem:[%s2167 + $0x2e8] sm:$0xff]
        %v2262 = vld [vmem:[%s2167 + $0x2f0] sm:$0xff]
        %v2263 = vld [vmem:[%s2167 + $0x2f8] sm:$0xff]
        %2264 = vmatprep.subr.mxu0 %v2199
        %2265 = vmatpush1.msra.mxu0 %v2198
        %2266 = vmatprep.subr.mxu0 %v2197
        %2267 = vmatpush1.msra.mxu0 %v2196
        %2268 = vmatprep.subr.mxu0 %v2195
        %2269 = vmatpush1.msra.mxu0 %v2194
        %2270 = vmatprep.subr.mxu0 %v2193
        %2271 = vmatpush1.msra.mxu0 %v2192
        %2272 = vmatprep.subr.mxu0 %v2191
        %2273 = vmatpush1.msra.mxu0 %v2190
        %2274 = vmatprep.subr.mxu0 %v2189
        %2275 = vmatpush1.msra.mxu0 %v2188
        %2276 = vmatprep.subr.mxu0 %v2187
        %2277 = vmatpush1.msra.mxu0 %v2186
        %2278 = vmatprep.subr.mxu0 %v2185
        %2279 = vmatpush1.msra.mxu0 %v2184
        %2280 = vmatprep.subr.mxu0 %v2183
        %2281 = vmatpush1.msra.mxu0 %v2182
        %2282 = vmatprep.subr.mxu0 %v2181
        %2283 = vmatpush1.msra.mxu0 %v2180
        %2284 = vmatprep.subr.mxu0 %v2179
        %2285 = vmatpush1.msra.mxu0 %v2178
        %2286 = vmatprep.subr.mxu0 %v2177
        %2287 = vmatpush1.msra.mxu0 %v2176
        %2288 = vmatprep.subr.mxu0 %v2175
        %2289 = vmatpush1.msra.mxu0 %v2174
        %2290 = vmatprep.subr.mxu0 %v2173
        %2291 = vmatpush1.msra.mxu0 %v2172
        %2292 = vmatprep.subr.mxu0 %v2171
        %2293 = vmatpush1.msra.mxu0 %v2170
        %2294 = vmatprep.subr.mxu0 %v2169
        %2295 = vmatpush1.msra.mxu0 %v2168
        %2296 = vmatprep.subr.mxu0 %v2231
        %2297 = vmatpush2.msra.mxu0 %v2230
        %2298 = vmatprep.subr.mxu0 %v2229
        %2299 = vmatpush2.msra.mxu0 %v2228
        %2300 = vmatprep.subr.mxu0 %v2227
        %2301 = vmatpush2.msra.mxu0 %v2226
        %2302 = vmatprep.subr.mxu0 %v2225
        %2303 = vmatpush2.msra.mxu0 %v2224
        %2304 = vmatprep.subr.mxu0 %v2223
        %2305 = vmatpush2.msra.mxu0 %v2222
        %2306 = vmatprep.subr.mxu0 %v2221
        %2307 = vmatpush2.msra.mxu0 %v2220
        %2308 = vmatprep.subr.mxu0 %v2219
        %2309 = vmatpush2.msra.mxu0 %v2218
        %2310 = vmatprep.subr.mxu0 %v2217
        %2311 = vmatpush2.msra.mxu0 %v2216
        %2312 = vmatprep.subr.mxu0 %v2215
        %2313 = vmatpush2.msra.mxu0 %v2214
        %2314 = vmatprep.subr.mxu0 %v2213
        %2315 = vmatpush2.msra.mxu0 %v2212
        %2316 = vmatprep.subr.mxu0 %v2211
        %2317 = vmatpush2.msra.mxu0 %v2210
        %2318 = vmatprep.subr.mxu0 %v2209
        %2319 = vmatpush2.msra.mxu0 %v2208
        %2320 = vmatprep.subr.mxu0 %v2207
        %2321 = vmatpush2.msra.mxu0 %v2206
        %2322 = vmatprep.subr.mxu0 %v2205
        %2323 = vmatpush2.msra.mxu0 %v2204
        %2324 = vmatprep.subr.mxu0 %v2203
        %2325 = vmatpush2.msra.mxu0 %v2202
        %2326 = vmatprep.subr.mxu0 %v2201
        %2327 = vmatpush2.msra.mxu0 %v2200
        %2328 = vmatprep.mubr.f32.mxu0 %v1897
        %2329 = vmatmul.mubr.f32.gmra.mxu0 %v1896
        %v2330 = vpop.f32.mrf.mxu0
        %v2331 = vadd.f32 0.0, %v2330
        %v2332 = vpop.f32.mrf.mxu0
        %v2333 = vadd.f32 0.0, %v2332
        %2334 = vmatprep.mubr.f32.mxu0 %v1900
        %2335 = vmatmul.mubr.f32.gmra.mxu0 %v1899
        %v2336 = vpop.f32.mrf.mxu0
        %v2337 = vadd.f32 0.0, %v2336
        %v2338 = vpop.f32.mrf.mxu0
        %v2339 = vadd.f32 0.0, %v2338
        %2340 = vmatprep.mubr.f32.mxu0 %v1903
        %2341 = vmatmul.mubr.f32.gmra.mxu0 %v1902
        %v2342 = vpop.f32.mrf.mxu0
        %v2343 = vadd.f32 0.0, %v2342
        %v2344 = vpop.f32.mrf.mxu0
        %v2345 = vadd.f32 0.0, %v2344
        %2346 = vdwg.mxu0
        %2347 = vmatprep.subr.mxu0 %v2263
        %2348 = vmatpush1.msra.mxu0 %v2262
        %2349 = vmatprep.subr.mxu0 %v2261
        %2350 = vmatpush1.msra.mxu0 %v2260
        %2351 = vmatprep.subr.mxu0 %v2259
        %2352 = vmatpush1.msra.mxu0 %v2258
        %2353 = vmatprep.subr.mxu0 %v2257
        %2354 = vmatpush1.msra.mxu0 %v2256
        %2355 = vmatprep.subr.mxu0 %v2255
        %2356 = vmatpush1.msra.mxu0 %v2254
        %2357 = vmatprep.subr.mxu0 %v2253
        %2358 = vmatpush1.msra.mxu0 %v2252
        %2359 = vmatprep.subr.mxu0 %v2251
        %2360 = vmatpush1.msra.mxu0 %v2250
        %2361 = vmatprep.subr.mxu0 %v2249
        %2362 = vmatpush1.msra.mxu0 %v2248
        %2363 = vmatprep.subr.mxu0 %v2247
        %2364 = vmatpush1.msra.mxu0 %v2246
        %2365 = vmatprep.subr.mxu0 %v2245
        %2366 = vmatpush1.msra.mxu0 %v2244
        %2367 = vmatprep.subr.mxu0 %v2243
        %2368 = vmatpush1.msra.mxu0 %v2242
        %2369 = vmatprep.subr.mxu0 %v2241
        %2370 = vmatpush1.msra.mxu0 %v2240
        %2371 = vmatprep.subr.mxu0 %v2239
        %2372 = vmatpush1.msra.mxu0 %v2238
        %2373 = vmatprep.subr.mxu0 %v2237
        %2374 = vmatpush1.msra.mxu0 %v2236
        %2375 = vmatprep.subr.mxu0 %v2235
        %2376 = vmatpush1.msra.mxu0 %v2234
        %2377 = vmatprep.subr.mxu0 %v2233
        %2378 = vmatpush1.msra.mxu0 %v2232
        %2379 = vmatprep.subr.mxu0 0.0
        %2380 = vmatpush2.msra.mxu0 0.0
        %2381 = vmatprep.subr.mxu0 0.0
        %2382 = vmatpush2.msra.mxu0 0.0
        %2383 = vmatprep.subr.mxu0 0.0
        %2384 = vmatpush2.msra.mxu0 0.0
        %2385 = vmatprep.subr.mxu0 0.0
        %2386 = vmatpush2.msra.mxu0 0.0
        %2387 = vmatprep.subr.mxu0 0.0
        %2388 = vmatpush2.msra.mxu0 0.0
        %2389 = vmatprep.subr.mxu0 0.0
        %2390 = vmatpush2.msra.mxu0 0.0
        %2391 = vmatprep.subr.mxu0 0.0
        %2392 = vmatpush2.msra.mxu0 0.0
        %2393 = vmatprep.subr.mxu0 0.0
        %2394 = vmatpush2.msra.mxu0 0.0
        %2395 = vmatprep.subr.mxu0 0.0
        %2396 = vmatpush2.msra.mxu0 0.0
        %2397 = vmatprep.subr.mxu0 0.0
        %2398 = vmatpush2.msra.mxu0 0.0
        %2399 = vmatprep.subr.mxu0 0.0
        %2400 = vmatpush2.msra.mxu0 0.0
        %2401 = vmatprep.subr.mxu0 0.0
        %2402 = vmatpush2.msra.mxu0 0.0
        %2403 = vmatprep.subr.mxu0 0.0
        %2404 = vmatpush2.msra.mxu0 0.0
        %2405 = vmatprep.subr.mxu0 0.0
        %2406 = vmatpush2.msra.mxu0 0.0
        %2407 = vmatprep.subr.mxu0 0.0
        %2408 = vmatpush2.msra.mxu0 0.0
        %2409 = vmatprep.subr.mxu0 0.0
        %2410 = vmatpush2.msra.mxu0 0.0
        %2411 = vmatprep.mubr.f32.mxu0 0.0
        %2412 = vmatmul.mubr.f32.gmra.mxu0 %v1898
        %v2413 = vpop.f32.mrf.mxu0
        %v2414 = vadd.f32 %v2331, %v2413
        %v2415 = vpop.f32.mrf.mxu0
        %v2416 = vadd.f32 %v2333, %v2415
        %2417 = vmatprep.mubr.f32.mxu0 0.0
        %2418 = vmatmul.mubr.f32.gmra.mxu0 %v1901
        %v2419 = vpop.f32.mrf.mxu0
        %v2420 = vadd.f32 %v2337, %v2419
        %v2421 = vpop.f32.mrf.mxu0
        %v2422 = vadd.f32 %v2339, %v2421
        %2423 = vmatprep.mubr.f32.mxu0 0.0
        %2424 = vmatmul.mubr.f32.gmra.mxu0 %v1904
        %v2425 = vpop.f32.mrf.mxu0
        %v2426 = vadd.f32 %v2343, %v2425
        %v2427 = vpop.f32.mrf.mxu0
        %v2428 = vadd.f32 %v2345, %v2427
        %2429 = vdwg.mxu0
        %v2430 = vmax.f32 %v2151, %v2414
        %v2431 = vmax.f32 %v2153, %v2416
        %v2432 = vmax.f32 %v2157, %v2420
        %v2433 = vmax.f32 %v2159, %v2422
        %v2434 = vmax.f32 %v2163, %v2426
        %v2435 = vmax.f32 %v2165, %v2428
        %v2436 = vld [vmem:[%s6] sm:$0xff]
        %v2437 = vld [vmem:[%s6 + $0x8] sm:$0xf]
        %vm2438 = vcmask 195584
        %v2440 = vsel %vm2438, %v2436, 0
        %v2443 = vsel %vm2438, %v2437, 0
        %2445 = vmatprep.subr.mxu0 0.0
        %2446 = vmatpush1.msra.mxu0 0.0
        %2447 = vmatprep.subr.mxu0 0.0
        %2448 = vmatpush1.msra.mxu0 0.0
        %2449 = vmatprep.subr.mxu0 0.0
        %2450 = vmatpush1.msra.mxu0 0.0
        %2451 = vmatprep.subr.mxu0 0.0
        %2452 = vmatpush1.msra.mxu0 0.0
        %2453 = vmatprep.subr.mxu0 0.0
        %2454 = vmatpush1.msra.mxu0 0.0
        %2455 = vmatprep.subr.mxu0 0.0
        %2456 = vmatpush1.msra.mxu0 0.0
        %2457 = vmatprep.subr.mxu0 0.0
        %2458 = vmatpush1.msra.mxu0 0.0
        %2459 = vmatprep.subr.mxu0 0.0
        %2460 = vmatpush1.msra.mxu0 0.0
        %2461 = vmatprep.subr.mxu0 0.0
        %2462 = vmatpush1.msra.mxu0 0.0
        %2463 = vmatprep.subr.mxu0 0.0
        %2464 = vmatpush1.msra.mxu0 0.0
        %2465 = vmatprep.subr.mxu0 0.0
        %2466 = vmatpush1.msra.mxu0 0.0
        %2467 = vmatprep.subr.mxu0 0.0
        %2468 = vmatpush1.msra.mxu0 0.0
        %2469 = vmatprep.subr.mxu0 0.0
        %2470 = vmatpush1.msra.mxu0 0.0
        %2471 = vmatprep.subr.mxu0 %v2435
        %2472 = vmatpush1.msra.mxu0 %v2434
        %2473 = vmatprep.subr.mxu0 %v2433
        %2474 = vmatpush1.msra.mxu0 %v2432
        %2475 = vmatprep.subr.mxu0 %v2431
        %2476 = vmatpush1.msra.mxu0 %v2430
        %2477 = vmatprep.subr.mxu0 0.0
        %2478 = vmatpush2.msra.mxu0 0.0
        %2479 = vmatprep.subr.mxu0 0.0
        %2480 = vmatpush2.msra.mxu0 0.0
        %2481 = vmatprep.subr.mxu0 0.0
        %2482 = vmatpush2.msra.mxu0 0.0
        %2483 = vmatprep.subr.mxu0 0.0
        %2484 = vmatpush2.msra.mxu0 0.0
        %2485 = vmatprep.subr.mxu0 0.0
        %2486 = vmatpush2.msra.mxu0 0.0
        %2487 = vmatprep.subr.mxu0 0.0
        %2488 = vmatpush2.msra.mxu0 0.0
        %2489 = vmatprep.subr.mxu0 0.0
        %2490 = vmatpush2.msra.mxu0 0.0
        %2491 = vmatprep.subr.mxu0 0.0
        %2492 = vmatpush2.msra.mxu0 0.0
        %2493 = vmatprep.subr.mxu0 0.0
        %2494 = vmatpush2.msra.mxu0 0.0
        %2495 = vmatprep.subr.mxu0 0.0
        %2496 = vmatpush2.msra.mxu0 0.0
        %2497 = vmatprep.subr.mxu0 0.0
        %2498 = vmatpush2.msra.mxu0 0.0
        %2499 = vmatprep.subr.mxu0 0.0
        %2500 = vmatpush2.msra.mxu0 0.0
        %2501 = vmatprep.subr.mxu0 0.0
        %2502 = vmatpush2.msra.mxu0 0.0
        %2503 = vmatprep.subr.mxu0 0.0
        %2504 = vmatpush2.msra.mxu0 0.0
        %2505 = vmatprep.subr.mxu0 0.0
        %2506 = vmatpush2.msra.mxu0 0.0
        %2507 = vmatprep.subr.mxu0 0.0
        %2508 = vmatpush2.msra.mxu0 0.0
        %2509 = vmatprep.mubr.f32.mxu0 0.0
        %2510 = vmatmul.mubr.f32.gmra.mxu0 %v2440
        %v2511 = vpop.f32.mrf.mxu0
        %v2512 = vadd.f32 0.0, %v2511
        %v2513 = vpop.f32.mrf.mxu0
        %v2514 = vadd.f32 0.0, %v2513
        %2515 = vmatprep.mubr.f32.mxu0 0.0
        %2516 = vmatmul.mubr.f32.gmra.mxu0 %v2443
        %v2517 = vpop.f32.mrf.mxu0
        %v2518 = vadd.f32 0.0, %v2517
        %v2519 = vpop.f32.mrf.mxu0
        %v2520 = vadd.f32 0.0, %v2519
        %2521 = vdwg.mxu0
        %s2522 = scalar_lea.vmem %s6, 16
        %v2523 = vld [vmem:[%s2522] sm:$0xff]
        %v2524 = vld [vmem:[%s2522 + $0x8] sm:$0xf]
        %v2526 = vsel %vm2438, %v2523, 0
        %v2529 = vsel %vm2438, %v2524, 0
        %2531 = vmatprep.subr.mxu0 0.0
        %2532 = vmatpush1.msra.mxu0 0.0
        %2533 = vmatprep.subr.mxu0 0.0
        %2534 = vmatpush1.msra.mxu0 0.0
        %2535 = vmatprep.subr.mxu0 0.0
        %2536 = vmatpush1.msra.mxu0 0.0
        %2537 = vmatprep.subr.mxu0 0.0
        %2538 = vmatpush1.msra.mxu0 0.0
        %2539 = vmatprep.subr.mxu0 0.0
        %2540 = vmatpush1.msra.mxu0 0.0
        %2541 = vmatprep.subr.mxu0 0.0
        %2542 = vmatpush1.msra.mxu0 0.0
        %2543 = vmatprep.subr.mxu0 0.0
        %2544 = vmatpush1.msra.mxu0 0.0
        %2545 = vmatprep.subr.mxu0 0.0
        %2546 = vmatpush1.msra.mxu0 0.0
        %2547 = vmatprep.subr.mxu0 0.0
        %2548 = vmatpush1.msra.mxu0 0.0
        %2549 = vmatprep.subr.mxu0 0.0
        %2550 = vmatpush1.msra.mxu0 0.0
        %2551 = vmatprep.subr.mxu0 0.0
        %2552 = vmatpush1.msra.mxu0 0.0
        %2553 = vmatprep.subr.mxu0 0.0
        %2554 = vmatpush1.msra.mxu0 0.0
        %2555 = vmatprep.subr.mxu0 0.0
        %2556 = vmatpush1.msra.mxu0 0.0
        %2557 = vmatprep.subr.mxu0 %v2435
        %2558 = vmatpush1.msra.mxu0 %v2434
        %2559 = vmatprep.subr.mxu0 %v2433
        %2560 = vmatpush1.msra.mxu0 %v2432
        %2561 = vmatprep.subr.mxu0 %v2431
        %2562 = vmatpush1.msra.mxu0 %v2430
        %2563 = vmatprep.subr.mxu0 0.0
        %2564 = vmatpush2.msra.mxu0 0.0
        %2565 = vmatprep.subr.mxu0 0.0
        %2566 = vmatpush2.msra.mxu0 0.0
        %2567 = vmatprep.subr.mxu0 0.0
        %2568 = vmatpush2.msra.mxu0 0.0
        %2569 = vmatprep.subr.mxu0 0.0
        %2570 = vmatpush2.msra.mxu0 0.0
        %2571 = vmatprep.subr.mxu0 0.0
        %2572 = vmatpush2.msra.mxu0 0.0
        %2573 = vmatprep.subr.mxu0 0.0
        %2574 = vmatpush2.msra.mxu0 0.0
        %2575 = vmatprep.subr.mxu0 0.0
        %2576 = vmatpush2.msra.mxu0 0.0
        %2577 = vmatprep.subr.mxu0 0.0
        %2578 = vmatpush2.msra.mxu0 0.0
        %2579 = vmatprep.subr.mxu0 0.0
        %2580 = vmatpush2.msra.mxu0 0.0
        %2581 = vmatprep.subr.mxu0 0.0
        %2582 = vmatpush2.msra.mxu0 0.0
        %2583 = vmatprep.subr.mxu0 0.0
        %2584 = vmatpush2.msra.mxu0 0.0
        %2585 = vmatprep.subr.mxu0 0.0
        %2586 = vmatpush2.msra.mxu0 0.0
        %2587 = vmatprep.subr.mxu0 0.0
        %2588 = vmatpush2.msra.mxu0 0.0
        %2589 = vmatprep.subr.mxu0 0.0
        %2590 = vmatpush2.msra.mxu0 0.0
        %2591 = vmatprep.subr.mxu0 0.0
        %2592 = vmatpush2.msra.mxu0 0.0
        %2593 = vmatprep.subr.mxu0 0.0
        %2594 = vmatpush2.msra.mxu0 0.0
        %2595 = vmatprep.mubr.f32.mxu0 0.0
        %2596 = vmatmul.mubr.f32.gmra.mxu0 %v2526
        %v2597 = vpop.f32.mrf.mxu0
        %v2598 = vadd.f32 0.0, %v2597
        %v2599 = vpop.f32.mrf.mxu0
        %v2600 = vadd.f32 0.0, %v2599
        %2601 = vmatprep.mubr.f32.mxu0 0.0
        %2602 = vmatmul.mubr.f32.gmra.mxu0 %v2529
        %v2603 = vpop.f32.mrf.mxu0
        %v2604 = vadd.f32 0.0, %v2603
        %v2605 = vpop.f32.mrf.mxu0
        %v2606 = vadd.f32 0.0, %v2605
        %2607 = vdwg.mxu0
        %v2608 = vmax.f32 %v2512, %v2598
        %v2609 = vmax.f32 %v2514, %v2600
        %v2610 = vmax.f32 %v2518, %v2604
        %v2611 = vmax.f32 %v2520, %v2606
        %v2612 = vld [vmem:[%s7] sm:$0xff]
        %v2613 = vld [vmem:[%s7 + $0x8] sm:$0xff]
        %v2614 = vld [vmem:[%s7 + $0x10] sm:$0xff]
        %v2615 = vld [vmem:[%s7 + $0x18] sm:$0xff]
        %v2616 = vld [vmem:[%s7 + $0x20] sm:$0xff]
        %v2617 = vld [vmem:[%s7 + $0x28] sm:$0xff]
        %v2618 = vld [vmem:[%s7 + $0x30] sm:$0xff]
        %v2619 = vld [vmem:[%s7 + $0x38] sm:$0xff]
        %v2620 = vld [vmem:[%s7 + $0x40] sm:$0xff]
        %v2621 = vld [vmem:[%s7 + $0x48] sm:$0xff]
        %v2622 = vld [vmem:[%s7 + $0x50] sm:$0xff]
        %v2623 = vld [vmem:[%s7 + $0x58] sm:$0xff]
        %v2624 = vld [vmem:[%s7 + $0x60] sm:$0xff]
        %v2625 = vld [vmem:[%s7 + $0x68] sm:$0xff]
        %v2626 = vld [vmem:[%s7 + $0x70] sm:$0xff]
        %v2627 = vld [vmem:[%s7 + $0x78] sm:$0xff]
        %v2628 = vld [vmem:[%s7 + $0x80] sm:$0xff]
        %v2629 = vld [vmem:[%s7 + $0x88] sm:$0xff]
        %v2630 = vld [vmem:[%s7 + $0x90] sm:$0xff]
        %v2631 = vld [vmem:[%s7 + $0x98] sm:$0xff]
        %v2632 = vld [vmem:[%s7 + $0xa0] sm:$0xff]
        %v2633 = vld [vmem:[%s7 + $0xa8] sm:$0xff]
        %v2634 = vld [vmem:[%s7 + $0xb0] sm:$0xff]
        %v2635 = vld [vmem:[%s7 + $0xb8] sm:$0xff]
        %vm2636 = vcmask 523264
        %v2638 = vsel %vm2636, %v2609, 0
        %v2641 = vsel %vm2636, %v2611, 0
        %2643 = vmatprep.subr.mxu0 0.0
        %2644 = vmatpush1.msra.mxu0 %v2627
        %2645 = vmatprep.subr.mxu0 0.0
        %2646 = vmatpush1.msra.mxu0 %v2626
        %2647 = vmatprep.subr.mxu0 0.0
        %2648 = vmatpush1.msra.mxu0 %v2625
        %2649 = vmatprep.subr.mxu0 0.0
        %2650 = vmatpush1.msra.mxu0 %v2624
        %2651 = vmatprep.subr.mxu0 0.0
        %2652 = vmatpush1.msra.mxu0 %v2623
        %2653 = vmatprep.subr.mxu0 0.0
        %2654 = vmatpush1.msra.mxu0 %v2622
        %2655 = vmatprep.subr.mxu0 0.0
        %2656 = vmatpush1.msra.mxu0 %v2621
        %2657 = vmatprep.subr.mxu0 0.0
        %2658 = vmatpush1.msra.mxu0 %v2620
        %2659 = vmatprep.subr.mxu0 0.0
        %2660 = vmatpush1.msra.mxu0 %v2619
        %2661 = vmatprep.subr.mxu0 0.0
        %2662 = vmatpush1.msra.mxu0 %v2618
        %2663 = vmatprep.subr.mxu0 0.0
        %2664 = vmatpush1.msra.mxu0 %v2617
        %2665 = vmatprep.subr.mxu0 0.0
        %2666 = vmatpush1.msra.mxu0 %v2616
        %2667 = vmatprep.subr.mxu0 0.0
        %2668 = vmatpush1.msra.mxu0 %v2615
        %2669 = vmatprep.subr.mxu0 0.0
        %2670 = vmatpush1.msra.mxu0 %v2614
        %2671 = vmatprep.subr.mxu0 0.0
        %2672 = vmatpush1.msra.mxu0 %v2613
        %2673 = vmatprep.subr.mxu0 0.0
        %2674 = vmatpush1.msra.mxu0 %v2612
        %2675 = vmatprep.subr.mxu0 0.0
        %2676 = vmatpush2.msra.mxu0 0.0
        %2677 = vmatprep.subr.mxu0 0.0
        %2678 = vmatpush2.msra.mxu0 0.0
        %2679 = vmatprep.subr.mxu0 0.0
        %2680 = vmatpush2.msra.mxu0 0.0
        %2681 = vmatprep.subr.mxu0 0.0
        %2682 = vmatpush2.msra.mxu0 0.0
        %2683 = vmatprep.subr.mxu0 0.0
        %2684 = vmatpush2.msra.mxu0 0.0
        %2685 = vmatprep.subr.mxu0 0.0
        %2686 = vmatpush2.msra.mxu0 0.0
        %2687 = vmatprep.subr.mxu0 0.0
        %2688 = vmatpush2.msra.mxu0 0.0
        %2689 = vmatprep.subr.mxu0 0.0
        %2690 = vmatpush2.msra.mxu0 0.0
        %2691 = vmatprep.subr.mxu0 0.0
        %2692 = vmatpush2.msra.mxu0 %v2635
        %2693 = vmatprep.subr.mxu0 0.0
        %2694 = vmatpush2.msra.mxu0 %v2634
        %2695 = vmatprep.subr.mxu0 0.0
        %2696 = vmatpush2.msra.mxu0 %v2633
        %2697 = vmatprep.subr.mxu0 0.0
        %2698 = vmatpush2.msra.mxu0 %v2632
        %2699 = vmatprep.subr.mxu0 0.0
        %2700 = vmatpush2.msra.mxu0 %v2631
        %2701 = vmatprep.subr.mxu0 0.0
        %2702 = vmatpush2.msra.mxu0 %v2630
        %2703 = vmatprep.subr.mxu0 0.0
        %2704 = vmatpush2.msra.mxu0 %v2629
        %2705 = vmatprep.subr.mxu0 0.0
        %2706 = vmatpush2.msra.mxu0 %v2628
        %2707 = vmatprep.mubr.f32.mxu0 %v2638
        %2708 = vmatmul.mubr.f32.gmra.mxu0 %v2608
        %v2709 = vpop.f32.mrf.mxu0
        %v2710 = vadd.f32 0.0, %v2709
        %v2711 = vpop.f32.mrf.mxu0
        %2712 = vmatprep.mubr.f32.mxu0 %v2641
        %2713 = vmatmul.mubr.f32.gmra.mxu0 %v2610
        %v2714 = vpop.f32.mrf.mxu0
        %v2715 = vadd.f32 0.0, %v2714
        %v2716 = vpop.f32.mrf.mxu0
        %2717 = vdwg.mxu0
        %vm2718 = vcmask 785408
        %2719 = vst.msk [vmem:[#allocation3] sm:$0xff] %vm2718, %v2710
        %vm2720 = vcmask 781312
        %2721 = vst.msk [vmem:[#allocation3 + $0x8] sm:$0xf] %vm2720, %v2715
        %v2722 = vld [vmem:[#allocation3] sm:$0xff]
        %v2723 = vld [vmem:[#allocation3 + $0x8] sm:$0x3]
        %v2724 = vld [vmem:[%s8] sm:$0xff]
        %v2725 = vld [vmem:[%s8 + $0x8] sm:$0xff]
        %v2726 = vld [vmem:[%s8 + $0x10] sm:$0xff]
        %v2727 = vld [vmem:[%s8 + $0x18] sm:$0xff]
        %v2728 = vld [vmem:[%s8 + $0x20] sm:$0xff]
        %v2729 = vld [vmem:[%s8 + $0x28] sm:$0xff]
        %v2730 = vld [vmem:[%s8 + $0x30] sm:$0xff]
        %v2731 = vld [vmem:[%s8 + $0x38] sm:$0xff]
        %v2732 = vld [vmem:[%s8 + $0x40] sm:$0xff]
        %v2733 = vld [vmem:[%s8 + $0x48] sm:$0xff]
        %v2734 = vld [vmem:[%s8 + $0x50] sm:$0xff]
        %v2735 = vld [vmem:[%s8 + $0x58] sm:$0xff]
        %v2736 = vld [vmem:[%s8 + $0x60] sm:$0xff]
        %v2737 = vld [vmem:[%s8 + $0x68] sm:$0xff]
        %v2738 = vld [vmem:[%s8 + $0x70] sm:$0xff]
        %v2739 = vld [vmem:[%s8 + $0x78] sm:$0xff]
        %v2740 = vld [vmem:[%s8 + $0x80] sm:$0xff]
        %v2741 = vld [vmem:[%s8 + $0x88] sm:$0xff]
        %v2742 = vld [vmem:[%s8 + $0x90] sm:$0xff]
        %v2743 = vld [vmem:[%s8 + $0x98] sm:$0xff]
        %v2744 = vld [vmem:[%s8 + $0xa0] sm:$0xff]
        %v2745 = vld [vmem:[%s8 + $0xa8] sm:$0xff]
        %v2746 = vld [vmem:[%s8 + $0xb0] sm:$0xff]
        %v2747 = vld [vmem:[%s8 + $0xb8] sm:$0xff]
        %v2748 = vld [vmem:[#allocation3 + $0x1] sm:$0xff]
        %v2749 = vld [vmem:[#allocation3 + $0x9] sm:$0x3]
        %s2750 = scalar_lea.vmem %s8, 192
        %v2751 = vld [vmem:[%s2750] sm:$0xff]
        %v2752 = vld [vmem:[%s2750 + $0x8] sm:$0xff]
        %v2753 = vld [vmem:[%s2750 + $0x10] sm:$0xff]
        %v2754 = vld [vmem:[%s2750 + $0x18] sm:$0xff]
        %v2755 = vld [vmem:[%s2750 + $0x20] sm:$0xff]
        %v2756 = vld [vmem:[%s2750 + $0x28] sm:$0xff]
        %v2757 = vld [vmem:[%s2750 + $0x30] sm:$0xff]
        %v2758 = vld [vmem:[%s2750 + $0x38] sm:$0xff]
        %v2759 = vld [vmem:[%s2750 + $0x40] sm:$0xff]
        %v2760 = vld [vmem:[%s2750 + $0x48] sm:$0xff]
        %v2761 = vld [vmem:[%s2750 + $0x50] sm:$0xff]
        %v2762 = vld [vmem:[%s2750 + $0x58] sm:$0xff]
        %v2763 = vld [vmem:[%s2750 + $0x60] sm:$0xff]
        %v2764 = vld [vmem:[%s2750 + $0x68] sm:$0xff]
        %v2765 = vld [vmem:[%s2750 + $0x70] sm:$0xff]
        %v2766 = vld [vmem:[%s2750 + $0x78] sm:$0xff]
        %v2767 = vld [vmem:[%s2750 + $0x80] sm:$0xff]
        %v2768 = vld [vmem:[%s2750 + $0x88] sm:$0xff]
        %v2769 = vld [vmem:[%s2750 + $0x90] sm:$0xff]
        %v2770 = vld [vmem:[%s2750 + $0x98] sm:$0xff]
        %v2771 = vld [vmem:[%s2750 + $0xa0] sm:$0xff]
        %v2772 = vld [vmem:[%s2750 + $0xa8] sm:$0xff]
        %v2773 = vld [vmem:[%s2750 + $0xb0] sm:$0xff]
        %v2774 = vld [vmem:[%s2750 + $0xb8] sm:$0xff]
        %v2776 = vsel %vm2718, %v2748, 0
        %v2779 = vsel %vm2718, %v2749, 0
        %2781 = vmatprep.subr.mxu0 0.0
        %2782 = vmatpush1.msra.mxu0 0.0
        %2783 = vmatprep.subr.mxu0 0.0
        %2784 = vmatpush1.msra.mxu0 0.0
        %2785 = vmatprep.subr.mxu0 0.0
        %2786 = vmatpush1.msra.mxu0 0.0
        %2787 = vmatprep.subr.mxu0 0.0
        %2788 = vmatpush1.msra.mxu0 0.0
        %2789 = vmatprep.subr.mxu0 %v2774
        %2790 = vmatpush1.msra.mxu0 %v2773
        %2791 = vmatprep.subr.mxu0 %v2772
        %2792 = vmatpush1.msra.mxu0 %v2771
        %2793 = vmatprep.subr.mxu0 %v2770
        %2794 = vmatpush1.msra.mxu0 %v2769
        %2795 = vmatprep.subr.mxu0 %v2768
        %2796 = vmatpush1.msra.mxu0 %v2767
        %2797 = vmatprep.subr.mxu0 %v2766
        %2798 = vmatpush1.msra.mxu0 %v2765
        %2799 = vmatprep.subr.mxu0 %v2764
        %2800 = vmatpush1.msra.mxu0 %v2763
        %2801 = vmatprep.subr.mxu0 %v2762
        %2802 = vmatpush1.msra.mxu0 %v2761
        %2803 = vmatprep.subr.mxu0 %v2760
        %2804 = vmatpush1.msra.mxu0 %v2759
        %2805 = vmatprep.subr.mxu0 %v2758
        %2806 = vmatpush1.msra.mxu0 %v2757
        %2807 = vmatprep.subr.mxu0 %v2756
        %2808 = vmatpush1.msra.mxu0 %v2755
        %2809 = vmatprep.subr.mxu0 %v2754
        %2810 = vmatpush1.msra.mxu0 %v2753
        %2811 = vmatprep.subr.mxu0 %v2752
        %2812 = vmatpush1.msra.mxu0 %v2751
        %2813 = vmatprep.subr.mxu0 0.0
        %2814 = vmatpush2.msra.mxu0 0.0
        %2815 = vmatprep.subr.mxu0 0.0
        %2816 = vmatpush2.msra.mxu0 0.0
        %2817 = vmatprep.subr.mxu0 0.0
        %2818 = vmatpush2.msra.mxu0 0.0
        %2819 = vmatprep.subr.mxu0 0.0
        %2820 = vmatpush2.msra.mxu0 0.0
        %2821 = vmatprep.subr.mxu0 0.0
        %2822 = vmatpush2.msra.mxu0 0.0
        %2823 = vmatprep.subr.mxu0 0.0
        %2824 = vmatpush2.msra.mxu0 0.0
        %2825 = vmatprep.subr.mxu0 0.0
        %2826 = vmatpush2.msra.mxu0 0.0
        %2827 = vmatprep.subr.mxu0 0.0
        %2828 = vmatpush2.msra.mxu0 0.0
        %2829 = vmatprep.subr.mxu0 0.0
        %2830 = vmatpush2.msra.mxu0 0.0
        %2831 = vmatprep.subr.mxu0 0.0
        %2832 = vmatpush2.msra.mxu0 0.0
        %2833 = vmatprep.subr.mxu0 0.0
        %2834 = vmatpush2.msra.mxu0 0.0
        %2835 = vmatprep.subr.mxu0 0.0
        %2836 = vmatpush2.msra.mxu0 0.0
        %2837 = vmatprep.subr.mxu0 0.0
        %2838 = vmatpush2.msra.mxu0 0.0
        %2839 = vmatprep.subr.mxu0 0.0
        %2840 = vmatpush2.msra.mxu0 0.0
        %2841 = vmatprep.subr.mxu0 0.0
        %2842 = vmatpush2.msra.mxu0 0.0
        %2843 = vmatprep.subr.mxu0 0.0
        %2844 = vmatpush2.msra.mxu0 0.0
        %2845 = vmatprep.mubr.f32.mxu0 0.0
        %2846 = vmatmul.mubr.f32.gmra.mxu0 %v2776
        %v2847 = vpop.f32.mrf.mxu0
        %v2848 = vadd.f32 0.0, %v2847
        %v2849 = vpop.f32.mrf.mxu0
        %v2850 = vadd.f32 0.0, %v2849
        %2851 = vmatprep.mubr.f32.mxu0 0.0
        %2852 = vmatmul.mubr.f32.gmra.mxu0 %v2779
        %v2853 = vpop.f32.mrf.mxu0
        %v2854 = vadd.f32 0.0, %v2853
        %v2855 = vpop.f32.mrf.mxu0
        %v2856 = vadd.f32 0.0, %v2855
        %2857 = vdwg.mxu0
        %v2859 = vsel %vm2718, %v2722, 0
        %v2862 = vsel %vm2718, %v2723, 0
        %2864 = vmatprep.subr.mxu0 0.0
        %2865 = vmatpush1.msra.mxu0 0.0
        %2866 = vmatprep.subr.mxu0 0.0
        %2867 = vmatpush1.msra.mxu0 0.0
        %2868 = vmatprep.subr.mxu0 0.0
        %2869 = vmatpush1.msra.mxu0 0.0
        %2870 = vmatprep.subr.mxu0 0.0
        %2871 = vmatpush1.msra.mxu0 0.0
        %2872 = vmatprep.subr.mxu0 %v2747
        %2873 = vmatpush1.msra.mxu0 %v2746
        %2874 = vmatprep.subr.mxu0 %v2745
        %2875 = vmatpush1.msra.mxu0 %v2744
        %2876 = vmatprep.subr.mxu0 %v2743
        %2877 = vmatpush1.msra.mxu0 %v2742
        %2878 = vmatprep.subr.mxu0 %v2741
        %2879 = vmatpush1.msra.mxu0 %v2740
        %2880 = vmatprep.subr.mxu0 %v2739
        %2881 = vmatpush1.msra.mxu0 %v2738
        %2882 = vmatprep.subr.mxu0 %v2737
        %2883 = vmatpush1.msra.mxu0 %v2736
        %2884 = vmatprep.subr.mxu0 %v2735
        %2885 = vmatpush1.msra.mxu0 %v2734
        %2886 = vmatprep.subr.mxu0 %v2733
        %2887 = vmatpush1.msra.mxu0 %v2732
        %2888 = vmatprep.subr.mxu0 %v2731
        %2889 = vmatpush1.msra.mxu0 %v2730
        %2890 = vmatprep.subr.mxu0 %v2729
        %2891 = vmatpush1.msra.mxu0 %v2728
        %2892 = vmatprep.subr.mxu0 %v2727
        %2893 = vmatpush1.msra.mxu0 %v2726
        %2894 = vmatprep.subr.mxu0 %v2725
        %2895 = vmatpush1.msra.mxu0 %v2724
        %2896 = vmatprep.subr.mxu0 0.0
        %2897 = vmatpush2.msra.mxu0 0.0
        %2898 = vmatprep.subr.mxu0 0.0
        %2899 = vmatpush2.msra.mxu0 0.0
        %2900 = vmatprep.subr.mxu0 0.0
        %2901 = vmatpush2.msra.mxu0 0.0
        %2902 = vmatprep.subr.mxu0 0.0
        %2903 = vmatpush2.msra.mxu0 0.0
        %2904 = vmatprep.subr.mxu0 0.0
        %2905 = vmatpush2.msra.mxu0 0.0
        %2906 = vmatprep.subr.mxu0 0.0
        %2907 = vmatpush2.msra.mxu0 0.0
        %2908 = vmatprep.subr.mxu0 0.0
        %2909 = vmatpush2.msra.mxu0 0.0
        %2910 = vmatprep.subr.mxu0 0.0
        %2911 = vmatpush2.msra.mxu0 0.0
        %2912 = vmatprep.subr.mxu0 0.0
        %2913 = vmatpush2.msra.mxu0 0.0
        %2914 = vmatprep.subr.mxu0 0.0
        %2915 = vmatpush2.msra.mxu0 0.0
        %2916 = vmatprep.subr.mxu0 0.0
        %2917 = vmatpush2.msra.mxu0 0.0
        %2918 = vmatprep.subr.mxu0 0.0
        %2919 = vmatpush2.msra.mxu0 0.0
        %2920 = vmatprep.subr.mxu0 0.0
        %2921 = vmatpush2.msra.mxu0 0.0
        %2922 = vmatprep.subr.mxu0 0.0
        %2923 = vmatpush2.msra.mxu0 0.0
        %2924 = vmatprep.subr.mxu0 0.0
        %2925 = vmatpush2.msra.mxu0 0.0
        %2926 = vmatprep.subr.mxu0 0.0
        %2927 = vmatpush2.msra.mxu0 0.0
        %2928 = vmatprep.mubr.f32.mxu0 0.0
        %2929 = vmatmul.mubr.f32.gmra.mxu0 %v2859
        %v2930 = vpop.f32.mrf.mxu0
        %v2931 = vadd.f32 %v2848, %v2930
        %v2932 = vpop.f32.mrf.mxu0
        %v2933 = vadd.f32 %v2850, %v2932
        %2934 = vmatprep.mubr.f32.mxu0 0.0
        %2935 = vmatmul.mubr.f32.gmra.mxu0 %v2862
        %v2936 = vpop.f32.mrf.mxu0
        %v2937 = vadd.f32 %v2854, %v2936
        %v2938 = vpop.f32.mrf.mxu0
        %v2939 = vadd.f32 %v2856, %v2938
        %2940 = vdwg.mxu0
        %v2941 = vld [vmem:[#allocation3 + $0x2] sm:$0xff]
        %v2942 = vld [vmem:[#allocation3 + $0xa] sm:$0x3]
        %s2943 = scalar_lea.vmem %s8, 384
        %v2944 = vld [vmem:[%s2943] sm:$0xff]
        %v2945 = vld [vmem:[%s2943 + $0x8] sm:$0xff]
        %v2946 = vld [vmem:[%s2943 + $0x10] sm:$0xff]
        %v2947 = vld [vmem:[%s2943 + $0x18] sm:$0xff]
        %v2948 = vld [vmem:[%s2943 + $0x20] sm:$0xff]
        %v2949 = vld [vmem:[%s2943 + $0x28] sm:$0xff]
        %v2950 = vld [vmem:[%s2943 + $0x30] sm:$0xff]
        %v2951 = vld [vmem:[%s2943 + $0x38] sm:$0xff]
        %v2952 = vld [vmem:[%s2943 + $0x40] sm:$0xff]
        %v2953 = vld [vmem:[%s2943 + $0x48] sm:$0xff]
        %v2954 = vld [vmem:[%s2943 + $0x50] sm:$0xff]
        %v2955 = vld [vmem:[%s2943 + $0x58] sm:$0xff]
        %v2956 = vld [vmem:[%s2943 + $0x60] sm:$0xff]
        %v2957 = vld [vmem:[%s2943 + $0x68] sm:$0xff]
        %v2958 = vld [vmem:[%s2943 + $0x70] sm:$0xff]
        %v2959 = vld [vmem:[%s2943 + $0x78] sm:$0xff]
        %v2960 = vld [vmem:[%s2943 + $0x80] sm:$0xff]
        %v2961 = vld [vmem:[%s2943 + $0x88] sm:$0xff]
        %v2962 = vld [vmem:[%s2943 + $0x90] sm:$0xff]
        %v2963 = vld [vmem:[%s2943 + $0x98] sm:$0xff]
        %v2964 = vld [vmem:[%s2943 + $0xa0] sm:$0xff]
        %v2965 = vld [vmem:[%s2943 + $0xa8] sm:$0xff]
        %v2966 = vld [vmem:[%s2943 + $0xb0] sm:$0xff]
        %v2967 = vld [vmem:[%s2943 + $0xb8] sm:$0xff]
        %v2969 = vsel %vm2718, %v2941, 0
        %v2972 = vsel %vm2718, %v2942, 0
        %2974 = vmatprep.subr.mxu0 0.0
        %2975 = vmatpush1.msra.mxu0 0.0
        %2976 = vmatprep.subr.mxu0 0.0
        %2977 = vmatpush1.msra.mxu0 0.0
        %2978 = vmatprep.subr.mxu0 0.0
        %2979 = vmatpush1.msra.mxu0 0.0
        %2980 = vmatprep.subr.mxu0 0.0
        %2981 = vmatpush1.msra.mxu0 0.0
        %2982 = vmatprep.subr.mxu0 %v2967
        %2983 = vmatpush1.msra.mxu0 %v2966
        %2984 = vmatprep.subr.mxu0 %v2965
        %2985 = vmatpush1.msra.mxu0 %v2964
        %2986 = vmatprep.subr.mxu0 %v2963
        %2987 = vmatpush1.msra.mxu0 %v2962
        %2988 = vmatprep.subr.mxu0 %v2961
        %2989 = vmatpush1.msra.mxu0 %v2960
        %2990 = vmatprep.subr.mxu0 %v2959
        %2991 = vmatpush1.msra.mxu0 %v2958
        %2992 = vmatprep.subr.mxu0 %v2957
        %2993 = vmatpush1.msra.mxu0 %v2956
        %2994 = vmatprep.subr.mxu0 %v2955
        %2995 = vmatpush1.msra.mxu0 %v2954
        %2996 = vmatprep.subr.mxu0 %v2953
        %2997 = vmatpush1.msra.mxu0 %v2952
        %2998 = vmatprep.subr.mxu0 %v2951
        %2999 = vmatpush1.msra.mxu0 %v2950
        %3000 = vmatprep.subr.mxu0 %v2949
        %3001 = vmatpush1.msra.mxu0 %v2948
        %3002 = vmatprep.subr.mxu0 %v2947
        %3003 = vmatpush1.msra.mxu0 %v2946
        %3004 = vmatprep.subr.mxu0 %v2945
        %3005 = vmatpush1.msra.mxu0 %v2944
        %3006 = vmatprep.subr.mxu0 0.0
        %3007 = vmatpush2.msra.mxu0 0.0
        %3008 = vmatprep.subr.mxu0 0.0
        %3009 = vmatpush2.msra.mxu0 0.0
        %3010 = vmatprep.subr.mxu0 0.0
        %3011 = vmatpush2.msra.mxu0 0.0
        %3012 = vmatprep.subr.mxu0 0.0
        %3013 = vmatpush2.msra.mxu0 0.0
        %3014 = vmatprep.subr.mxu0 0.0
        %3015 = vmatpush2.msra.mxu0 0.0
        %3016 = vmatprep.subr.mxu0 0.0
        %3017 = vmatpush2.msra.mxu0 0.0
        %3018 = vmatprep.subr.mxu0 0.0
        %3019 = vmatpush2.msra.mxu0 0.0
        %3020 = vmatprep.subr.mxu0 0.0
        %3021 = vmatpush2.msra.mxu0 0.0
        %3022 = vmatprep.subr.mxu0 0.0
        %3023 = vmatpush2.msra.mxu0 0.0
        %3024 = vmatprep.subr.mxu0 0.0
        %3025 = vmatpush2.msra.mxu0 0.0
        %3026 = vmatprep.subr.mxu0 0.0
        %3027 = vmatpush2.msra.mxu0 0.0
        %3028 = vmatprep.subr.mxu0 0.0
        %3029 = vmatpush2.msra.mxu0 0.0
        %3030 = vmatprep.subr.mxu0 0.0
        %3031 = vmatpush2.msra.mxu0 0.0
        %3032 = vmatprep.subr.mxu0 0.0
        %3033 = vmatpush2.msra.mxu0 0.0
        %3034 = vmatprep.subr.mxu0 0.0
        %3035 = vmatpush2.msra.mxu0 0.0
        %3036 = vmatprep.subr.mxu0 0.0
        %3037 = vmatpush2.msra.mxu0 0.0
        %3038 = vmatprep.mubr.f32.mxu0 0.0
        %3039 = vmatmul.mubr.f32.gmra.mxu0 %v2969
        %v3040 = vpop.f32.mrf.mxu0
        %v3041 = vadd.f32 0.0, %v3040
        %v3042 = vpop.f32.mrf.mxu0
        %v3043 = vadd.f32 0.0, %v3042
        %3044 = vmatprep.mubr.f32.mxu0 0.0
        %3045 = vmatmul.mubr.f32.gmra.mxu0 %v2972
        %v3046 = vpop.f32.mrf.mxu0
        %v3047 = vadd.f32 0.0, %v3046
        %v3048 = vpop.f32.mrf.mxu0
        %v3049 = vadd.f32 0.0, %v3048
        %3050 = vdwg.mxu0
        %v3051 = vadd.f32 %v2931, %v3041
        %v3052 = vadd.f32 %v2933, %v3043
        %v3053 = vadd.f32 %v2937, %v3047
        %v3054 = vadd.f32 %v2939, %v3049
        %v3055 = vmax.f32 %v3051, 0.0
        %v3056 = vmax.f32 %v3052, 0.0
        %v3057 = vmax.f32 %v3053, 0.0
        %v3058 = vmax.f32 %v3054, 0.0
        %v3059 = vld [vmem:[%s9] ss:$2 sm:$0x3]
        %v3061 = vlaneseq
        %v3062 = vshrl.u32 %v3061, 7
        %v3063 = vsub.s32 0, %v3062
        %v3064 = vrot.slane %v3059, %v3063
        %v3065 = vlaneseq
        %v3066 = vshrl.u32 %v3065, 7
        %v3067 = vsub.s32 1, %v3066
        %v3068 = vrot.slane %v3059, %v3067
        %v3071 = vmul.f32 %v3055, %v3064
        %v3072 = vmul.f32 %v3056, %v3068
        %v3073 = vmul.f32 %v3057, %v3064
        %v3074 = vmul.f32 %v3058, %v3068
        %s3075 = scalar_lea.vmem %s9, 1
        %v3076 = vld [vmem:[%s3075] ss:$2 sm:$0x3]
        %v3078 = vlaneseq
        %v3079 = vshrl.u32 %v3078, 7
        %v3080 = vsub.s32 0, %v3079
        %v3081 = vrot.slane %v3076, %v3080
        %v3082 = vlaneseq
        %v3083 = vshrl.u32 %v3082, 7
        %v3084 = vsub.s32 1, %v3083
        %v3085 = vrot.slane %v3076, %v3084
        %v3088 = vadd.f32 %v3071, %v3081
        %v3089 = vadd.f32 %v3072, %v3085
        %v3090 = vadd.f32 %v3073, %v3081
        %v3091 = vadd.f32 %v3074, %v3085
        %3092 = vst [vmem:[#allocation4] sm:$0xff] %v3088
        %vm3093 = vcmask 261120
        %3094 = vst.msk [vmem:[#allocation4 + $0x8] sm:$0xff] %vm3093, %v3089
        %3095 = vst [vmem:[#allocation4 + $0x10] sm:$0x3] %v3090
        %vm3096 = vcmask 254976
        %3097 = vst.msk [vmem:[#allocation4 + $0x18] sm:$0x3] %vm3096, %v3091
        %v3098 = vld [vmem:[#allocation4] sm:$0xff]
        %v3099 = vld [vmem:[#allocation4 + $0x8] sm:$0xff]
        %v3100 = vld [vmem:[%s10] sm:$0xff]
        %v3101 = vld [vmem:[%s10 + $0x8] sm:$0xff]
        %v3102 = vld [vmem:[%s10 + $0x10] sm:$0xff]
        %v3103 = vld [vmem:[%s10 + $0x18] sm:$0xff]
        %v3104 = vld [vmem:[%s10 + $0x20] sm:$0xff]
        %v3105 = vld [vmem:[%s10 + $0x28] sm:$0xff]
        %v3106 = vld [vmem:[%s10 + $0x30] sm:$0xff]
        %v3107 = vld [vmem:[%s10 + $0x38] sm:$0xff]
        %v3108 = vld [vmem:[%s10 + $0x40] sm:$0xff]
        %v3109 = vld [vmem:[%s10 + $0x48] sm:$0xff]
        %v3110 = vld [vmem:[%s10 + $0x50] sm:$0xff]
        %v3111 = vld [vmem:[%s10 + $0x58] sm:$0xff]
        %v3112 = vld [vmem:[%s10 + $0x60] sm:$0xff]
        %v3113 = vld [vmem:[%s10 + $0x68] sm:$0xff]
        %v3114 = vld [vmem:[%s10 + $0x70] sm:$0xff]
        %v3115 = vld [vmem:[%s10 + $0x78] sm:$0xff]
        %v3116 = vld [vmem:[%s10 + $0x80] sm:$0xff]
        %v3117 = vld [vmem:[%s10 + $0x88] sm:$0xff]
        %v3118 = vld [vmem:[%s10 + $0x90] sm:$0xff]
        %v3119 = vld [vmem:[%s10 + $0x98] sm:$0xff]
        %v3120 = vld [vmem:[#allocation4] sm:$0xfe]
        %v3121 = vld [vmem:[#allocation4 + $0x8] sm:$0xfe]
        %v3122 = vld [vmem:[#allocation4 + $0x10] sm:$0x1]
        %v3123 = vld [vmem:[#allocation4 + $0x18] sm:$0x1]
        %s3124 = scalar_lea.vmem %s10, 160
        %v3125 = vld [vmem:[%s3124] sm:$0xff]
        %v3126 = vld [vmem:[%s3124 + $0x8] sm:$0xff]
        %v3127 = vld [vmem:[%s3124 + $0x10] sm:$0xff]
        %v3128 = vld [vmem:[%s3124 + $0x18] sm:$0xff]
        %v3129 = vld [vmem:[%s3124 + $0x20] sm:$0xff]
        %v3130 = vld [vmem:[%s3124 + $0x28] sm:$0xff]
        %v3131 = vld [vmem:[%s3124 + $0x30] sm:$0xff]
        %v3132 = vld [vmem:[%s3124 + $0x38] sm:$0xff]
        %v3133 = vld [vmem:[%s3124 + $0x40] sm:$0xff]
        %v3134 = vld [vmem:[%s3124 + $0x48] sm:$0xff]
        %v3135 = vld [vmem:[%s3124 + $0x50] sm:$0xff]
        %v3136 = vld [vmem:[%s3124 + $0x58] sm:$0xff]
        %v3137 = vld [vmem:[%s3124 + $0x60] sm:$0xff]
        %v3138 = vld [vmem:[%s3124 + $0x68] sm:$0xff]
        %v3139 = vld [vmem:[%s3124 + $0x70] sm:$0xff]
        %v3140 = vld [vmem:[%s3124 + $0x78] sm:$0xff]
        %v3141 = vld [vmem:[%s3124 + $0x80] sm:$0xff]
        %v3142 = vld [vmem:[%s3124 + $0x88] sm:$0xff]
        %v3143 = vld [vmem:[%s3124 + $0x90] sm:$0xff]
        %v3144 = vld [vmem:[%s3124 + $0x98] sm:$0xff]
        %v3149 = vrot.slane %v3120, 1
        %v3150 = vrot.slane %v3122, 1
        %v3151 = vsel %vm1203, %v3149, %v3150
        %v3152 = vrot.slane %v3121, 1
        %v3153 = vrot.slane %v3123, 1
        %v3154 = vsel %vm1203, %v3152, %v3153
        %v3156 = vsel %vm3093, %v3154, 0
        %3158 = vmatprep.subr.mxu0 0.0
        %3159 = vmatpush1.msra.mxu0 %v3140
        %3160 = vmatprep.subr.mxu0 0.0
        %3161 = vmatpush1.msra.mxu0 %v3139
        %3162 = vmatprep.subr.mxu0 0.0
        %3163 = vmatpush1.msra.mxu0 %v3138
        %3164 = vmatprep.subr.mxu0 0.0
        %3165 = vmatpush1.msra.mxu0 %v3137
        %3166 = vmatprep.subr.mxu0 0.0
        %3167 = vmatpush1.msra.mxu0 %v3136
        %3168 = vmatprep.subr.mxu0 0.0
        %3169 = vmatpush1.msra.mxu0 %v3135
        %3170 = vmatprep.subr.mxu0 0.0
        %3171 = vmatpush1.msra.mxu0 %v3134
        %3172 = vmatprep.subr.mxu0 0.0
        %3173 = vmatpush1.msra.mxu0 %v3133
        %3174 = vmatprep.subr.mxu0 0.0
        %3175 = vmatpush1.msra.mxu0 %v3132
        %3176 = vmatprep.subr.mxu0 0.0
        %3177 = vmatpush1.msra.mxu0 %v3131
        %3178 = vmatprep.subr.mxu0 0.0
        %3179 = vmatpush1.msra.mxu0 %v3130
        %3180 = vmatprep.subr.mxu0 0.0
        %3181 = vmatpush1.msra.mxu0 %v3129
        %3182 = vmatprep.subr.mxu0 0.0
        %3183 = vmatpush1.msra.mxu0 %v3128
        %3184 = vmatprep.subr.mxu0 0.0
        %3185 = vmatpush1.msra.mxu0 %v3127
        %3186 = vmatprep.subr.mxu0 0.0
        %3187 = vmatpush1.msra.mxu0 %v3126
        %3188 = vmatprep.subr.mxu0 0.0
        %3189 = vmatpush1.msra.mxu0 %v3125
        %3190 = vmatprep.subr.mxu0 0.0
        %3191 = vmatpush2.msra.mxu0 0.0
        %3192 = vmatprep.subr.mxu0 0.0
        %3193 = vmatpush2.msra.mxu0 0.0
        %3194 = vmatprep.subr.mxu0 0.0
        %3195 = vmatpush2.msra.mxu0 0.0
        %3196 = vmatprep.subr.mxu0 0.0
        %3197 = vmatpush2.msra.mxu0 0.0
        %3198 = vmatprep.subr.mxu0 0.0
        %3199 = vmatpush2.msra.mxu0 0.0
        %3200 = vmatprep.subr.mxu0 0.0
        %3201 = vmatpush2.msra.mxu0 0.0
        %3202 = vmatprep.subr.mxu0 0.0
        %3203 = vmatpush2.msra.mxu0 0.0
        %3204 = vmatprep.subr.mxu0 0.0
        %3205 = vmatpush2.msra.mxu0 0.0
        %3206 = vmatprep.subr.mxu0 0.0
        %3207 = vmatpush2.msra.mxu0 0.0
        %3208 = vmatprep.subr.mxu0 0.0
        %3209 = vmatpush2.msra.mxu0 0.0
        %3210 = vmatprep.subr.mxu0 0.0
        %3211 = vmatpush2.msra.mxu0 0.0
        %3212 = vmatprep.subr.mxu0 0.0
        %3213 = vmatpush2.msra.mxu0 0.0
        %3214 = vmatprep.subr.mxu0 0.0
        %3215 = vmatpush2.msra.mxu0 %v3144
        %3216 = vmatprep.subr.mxu0 0.0
        %3217 = vmatpush2.msra.mxu0 %v3143
        %3218 = vmatprep.subr.mxu0 0.0
        %3219 = vmatpush2.msra.mxu0 %v3142
        %3220 = vmatprep.subr.mxu0 0.0
        %3221 = vmatpush2.msra.mxu0 %v3141
        %3222 = vmatprep.mubr.f32.mxu0 %v3156
        %3223 = vmatmul.mubr.f32.gmra.mxu0 %v3151
        %v3224 = vpop.f32.mrf.mxu0
        %v3225 = vadd.f32 0.0, %v3224
        %v3226 = vpop.f32.mrf.mxu0
        %3227 = vdwg.mxu0
        %v3229 = vsel %vm3093, %v3099, 0
        %3231 = vmatprep.subr.mxu0 0.0
        %3232 = vmatpush1.msra.mxu0 %v3115
        %3233 = vmatprep.subr.mxu0 0.0
        %3234 = vmatpush1.msra.mxu0 %v3114
        %3235 = vmatprep.subr.mxu0 0.0
        %3236 = vmatpush1.msra.mxu0 %v3113
        %3237 = vmatprep.subr.mxu0 0.0
        %3238 = vmatpush1.msra.mxu0 %v3112
        %3239 = vmatprep.subr.mxu0 0.0
        %3240 = vmatpush1.msra.mxu0 %v3111
        %3241 = vmatprep.subr.mxu0 0.0
        %3242 = vmatpush1.msra.mxu0 %v3110
        %3243 = vmatprep.subr.mxu0 0.0
        %3244 = vmatpush1.msra.mxu0 %v3109
        %3245 = vmatprep.subr.mxu0 0.0
        %3246 = vmatpush1.msra.mxu0 %v3108
        %3247 = vmatprep.subr.mxu0 0.0
        %3248 = vmatpush1.msra.mxu0 %v3107
        %3249 = vmatprep.subr.mxu0 0.0
        %3250 = vmatpush1.msra.mxu0 %v3106
        %3251 = vmatprep.subr.mxu0 0.0
        %3252 = vmatpush1.msra.mxu0 %v3105
        %3253 = vmatprep.subr.mxu0 0.0
        %3254 = vmatpush1.msra.mxu0 %v3104
        %3255 = vmatprep.subr.mxu0 0.0
        %3256 = vmatpush1.msra.mxu0 %v3103
        %3257 = vmatprep.subr.mxu0 0.0
        %3258 = vmatpush1.msra.mxu0 %v3102
        %3259 = vmatprep.subr.mxu0 0.0
        %3260 = vmatpush1.msra.mxu0 %v3101
        %3261 = vmatprep.subr.mxu0 0.0
        %3262 = vmatpush1.msra.mxu0 %v3100
        %3263 = vmatprep.subr.mxu0 0.0
        %3264 = vmatpush2.msra.mxu0 0.0
        %3265 = vmatprep.subr.mxu0 0.0
        %3266 = vmatpush2.msra.mxu0 0.0
        %3267 = vmatprep.subr.mxu0 0.0
        %3268 = vmatpush2.msra.mxu0 0.0
        %3269 = vmatprep.subr.mxu0 0.0
        %3270 = vmatpush2.msra.mxu0 0.0
        %3271 = vmatprep.subr.mxu0 0.0
        %3272 = vmatpush2.msra.mxu0 0.0
        %3273 = vmatprep.subr.mxu0 0.0
        %3274 = vmatpush2.msra.mxu0 0.0
        %3275 = vmatprep.subr.mxu0 0.0
        %3276 = vmatpush2.msra.mxu0 0.0
        %3277 = vmatprep.subr.mxu0 0.0
        %3278 = vmatpush2.msra.mxu0 0.0
        %3279 = vmatprep.subr.mxu0 0.0
        %3280 = vmatpush2.msra.mxu0 0.0
        %3281 = vmatprep.subr.mxu0 0.0
        %3282 = vmatpush2.msra.mxu0 0.0
        %3283 = vmatprep.subr.mxu0 0.0
        %3284 = vmatpush2.msra.mxu0 0.0
        %3285 = vmatprep.subr.mxu0 0.0
        %3286 = vmatpush2.msra.mxu0 0.0
        %3287 = vmatprep.subr.mxu0 0.0
        %3288 = vmatpush2.msra.mxu0 %v3119
        %3289 = vmatprep.subr.mxu0 0.0
        %3290 = vmatpush2.msra.mxu0 %v3118
        %3291 = vmatprep.subr.mxu0 0.0
        %3292 = vmatpush2.msra.mxu0 %v3117
        %3293 = vmatprep.subr.mxu0 0.0
        %3294 = vmatpush2.msra.mxu0 %v3116
        %3295 = vmatprep.mubr.f32.mxu0 %v3229
        %3296 = vmatmul.mubr.f32.gmra.mxu0 %v3098
        %v3297 = vpop.f32.mrf.mxu0
        %v3298 = vadd.f32 %v3225, %v3297
        %v3299 = vpop.f32.mrf.mxu0
        %3300 = vdwg.mxu0
        %v3301 = vld [vmem:[#allocation4] sm:$0xfc]
        %v3302 = vld [vmem:[#allocation4 + $0x8] sm:$0xfc]
        %v3303 = vld [vmem:[#allocation4 + $0x10] sm:$0x3]
        %v3304 = vld [vmem:[#allocation4 + $0x18] sm:$0x3]
        %s3305 = scalar_lea.vmem %s10, 320
        %v3306 = vld [vmem:[%s3305] sm:$0xff]
        %v3307 = vld [vmem:[%s3305 + $0x8] sm:$0xff]
        %v3308 = vld [vmem:[%s3305 + $0x10] sm:$0xff]
        %v3309 = vld [vmem:[%s3305 + $0x18] sm:$0xff]
        %v3310 = vld [vmem:[%s3305 + $0x20] sm:$0xff]
        %v3311 = vld [vmem:[%s3305 + $0x28] sm:$0xff]
        %v3312 = vld [vmem:[%s3305 + $0x30] sm:$0xff]
        %v3313 = vld [vmem:[%s3305 + $0x38] sm:$0xff]
        %v3314 = vld [vmem:[%s3305 + $0x40] sm:$0xff]
        %v3315 = vld [vmem:[%s3305 + $0x48] sm:$0xff]
        %v3316 = vld [vmem:[%s3305 + $0x50] sm:$0xff]
        %v3317 = vld [vmem:[%s3305 + $0x58] sm:$0xff]
        %v3318 = vld [vmem:[%s3305 + $0x60] sm:$0xff]
        %v3319 = vld [vmem:[%s3305 + $0x68] sm:$0xff]
        %v3320 = vld [vmem:[%s3305 + $0x70] sm:$0xff]
        %v3321 = vld [vmem:[%s3305 + $0x78] sm:$0xff]
        %v3322 = vld [vmem:[%s3305 + $0x80] sm:$0xff]
        %v3323 = vld [vmem:[%s3305 + $0x88] sm:$0xff]
        %v3324 = vld [vmem:[%s3305 + $0x90] sm:$0xff]
        %v3325 = vld [vmem:[%s3305 + $0x98] sm:$0xff]
        %v3330 = vrot.slane %v3301, 2
        %v3331 = vrot.slane %v3303, 2
        %v3332 = vsel %vm1647, %v3330, %v3331
        %v3333 = vrot.slane %v3302, 2
        %v3334 = vrot.slane %v3304, 2
        %v3335 = vsel %vm1647, %v3333, %v3334
        %v3337 = vsel %vm3093, %v3335, 0
        %3339 = vmatprep.subr.mxu0 0.0
        %3340 = vmatpush1.msra.mxu0 %v3321
        %3341 = vmatprep.subr.mxu0 0.0
        %3342 = vmatpush1.msra.mxu0 %v3320
        %3343 = vmatprep.subr.mxu0 0.0
        %3344 = vmatpush1.msra.mxu0 %v3319
        %3345 = vmatprep.subr.mxu0 0.0
        %3346 = vmatpush1.msra.mxu0 %v3318
        %3347 = vmatprep.subr.mxu0 0.0
        %3348 = vmatpush1.msra.mxu0 %v3317
        %3349 = vmatprep.subr.mxu0 0.0
        %3350 = vmatpush1.msra.mxu0 %v3316
        %3351 = vmatprep.subr.mxu0 0.0
        %3352 = vmatpush1.msra.mxu0 %v3315
        %3353 = vmatprep.subr.mxu0 0.0
        %3354 = vmatpush1.msra.mxu0 %v3314
        %3355 = vmatprep.subr.mxu0 0.0
        %3356 = vmatpush1.msra.mxu0 %v3313
        %3357 = vmatprep.subr.mxu0 0.0
        %3358 = vmatpush1.msra.mxu0 %v3312
        %3359 = vmatprep.subr.mxu0 0.0
        %3360 = vmatpush1.msra.mxu0 %v3311
        %3361 = vmatprep.subr.mxu0 0.0
        %3362 = vmatpush1.msra.mxu0 %v3310
        %3363 = vmatprep.subr.mxu0 0.0
        %3364 = vmatpush1.msra.mxu0 %v3309
        %3365 = vmatprep.subr.mxu0 0.0
        %3366 = vmatpush1.msra.mxu0 %v3308
        %3367 = vmatprep.subr.mxu0 0.0
        %3368 = vmatpush1.msra.mxu0 %v3307
        %3369 = vmatprep.subr.mxu0 0.0
        %3370 = vmatpush1.msra.mxu0 %v3306
        %3371 = vmatprep.subr.mxu0 0.0
        %3372 = vmatpush2.msra.mxu0 0.0
        %3373 = vmatprep.subr.mxu0 0.0
        %3374 = vmatpush2.msra.mxu0 0.0
        %3375 = vmatprep.subr.mxu0 0.0
        %3376 = vmatpush2.msra.mxu0 0.0
        %3377 = vmatprep.subr.mxu0 0.0
        %3378 = vmatpush2.msra.mxu0 0.0
        %3379 = vmatprep.subr.mxu0 0.0
        %3380 = vmatpush2.msra.mxu0 0.0
        %3381 = vmatprep.subr.mxu0 0.0
        %3382 = vmatpush2.msra.mxu0 0.0
        %3383 = vmatprep.subr.mxu0 0.0
        %3384 = vmatpush2.msra.mxu0 0.0
        %3385 = vmatprep.subr.mxu0 0.0
        %3386 = vmatpush2.msra.mxu0 0.0
        %3387 = vmatprep.subr.mxu0 0.0
        %3388 = vmatpush2.msra.mxu0 0.0
        %3389 = vmatprep.subr.mxu0 0.0
        %3390 = vmatpush2.msra.mxu0 0.0
        %3391 = vmatprep.subr.mxu0 0.0
        %3392 = vmatpush2.msra.mxu0 0.0
        %3393 = vmatprep.subr.mxu0 0.0
        %3394 = vmatpush2.msra.mxu0 0.0
        %3395 = vmatprep.subr.mxu0 0.0
        %3396 = vmatpush2.msra.mxu0 %v3325
        %3397 = vmatprep.subr.mxu0 0.0
        %3398 = vmatpush2.msra.mxu0 %v3324
        %3399 = vmatprep.subr.mxu0 0.0
        %3400 = vmatpush2.msra.mxu0 %v3323
        %3401 = vmatprep.subr.mxu0 0.0
        %3402 = vmatpush2.msra.mxu0 %v3322
        %3403 = vmatprep.mubr.f32.mxu0 %v3337
        %3404 = vmatmul.mubr.f32.gmra.mxu0 %v3332
        %v3405 = vpop.f32.mrf.mxu0
        %v3406 = vadd.f32 0.0, %v3405
        %v3407 = vpop.f32.mrf.mxu0
        %3408 = vdwg.mxu0
        %v3409 = vadd.f32 %v3298, %v3406
        %v3410 = vmax.f32 %v3409, 0.0
        %v3411 = vld [vmem:[%s11] sm:$0x1]
        %v3412 = vlaneseq
        %v3413 = vshrl.u32 %v3412, 7
        %v3414 = vsub.s32 0, %v3413
        %v3415 = vrot.slane %v3411, %v3414
        %v3416 = vmul.f32 %v3410, %v3415
        %v3417 = vld [vmem:[%s11 + $0x1] sm:$0x1]
        %v3418 = vlaneseq
        %v3419 = vshrl.u32 %v3418, 7
        %v3420 = vsub.s32 0, %v3419
        %v3421 = vrot.slane %v3417, %v3420
        %v3422 = vadd.f32 %v3416, %v3421
        %3423 = vst [vmem:[#allocation5] sm:$0xff] %v3422
        %v3424 = vld [vmem:[#allocation5] sm:$0x3f]
        %v3425 = vld [vmem:[%s12] sm:$0xff]
        %v3426 = vld [vmem:[%s12 + $0x8] sm:$0xff]
        %v3427 = vld [vmem:[%s12 + $0x10] sm:$0xff]
        %v3428 = vld [vmem:[%s12 + $0x18] sm:$0xff]
        %v3429 = vld [vmem:[%s12 + $0x20] sm:$0xff]
        %v3430 = vld [vmem:[%s12 + $0x28] sm:$0xff]
        %v3431 = vld [vmem:[%s12 + $0x30] sm:$0xff]
        %v3432 = vld [vmem:[%s12 + $0x38] sm:$0xff]
        %v3433 = vld [vmem:[%s12 + $0x40] sm:$0xff]
        %v3434 = vld [vmem:[%s12 + $0x48] sm:$0xff]
        %v3435 = vld [vmem:[%s12 + $0x50] sm:$0xff]
        %v3436 = vld [vmem:[%s12 + $0x58] sm:$0xff]
        %v3437 = vld [vmem:[%s12 + $0x60] sm:$0xff]
        %v3438 = vld [vmem:[%s12 + $0x68] sm:$0xff]
        %v3439 = vld [vmem:[%s12 + $0x70] sm:$0xff]
        %v3440 = vld [vmem:[%s12 + $0x78] sm:$0xff]
        %v3441 = vld [vmem:[#allocation5 + $0x1] sm:$0x3f]
        %s3442 = scalar_lea.vmem %s12, 128
        %v3443 = vld [vmem:[%s3442] sm:$0xff]
        %v3444 = vld [vmem:[%s3442 + $0x8] sm:$0xff]
        %v3445 = vld [vmem:[%s3442 + $0x10] sm:$0xff]
        %v3446 = vld [vmem:[%s3442 + $0x18] sm:$0xff]
        %v3447 = vld [vmem:[%s3442 + $0x20] sm:$0xff]
        %v3448 = vld [vmem:[%s3442 + $0x28] sm:$0xff]
        %v3449 = vld [vmem:[%s3442 + $0x30] sm:$0xff]
        %v3450 = vld [vmem:[%s3442 + $0x38] sm:$0xff]
        %v3451 = vld [vmem:[%s3442 + $0x40] sm:$0xff]
        %v3452 = vld [vmem:[%s3442 + $0x48] sm:$0xff]
        %v3453 = vld [vmem:[%s3442 + $0x50] sm:$0xff]
        %v3454 = vld [vmem:[%s3442 + $0x58] sm:$0xff]
        %v3455 = vld [vmem:[%s3442 + $0x60] sm:$0xff]
        %v3456 = vld [vmem:[%s3442 + $0x68] sm:$0xff]
        %v3457 = vld [vmem:[%s3442 + $0x70] sm:$0xff]
        %v3458 = vld [vmem:[%s3442 + $0x78] sm:$0xff]
        %3459 = vmatprep.subr.mxu0 0.0
        %3460 = vmatpush1.msra.mxu0 %v3458
        %3461 = vmatprep.subr.mxu0 0.0
        %3462 = vmatpush1.msra.mxu0 %v3457
        %3463 = vmatprep.subr.mxu0 0.0
        %3464 = vmatpush1.msra.mxu0 %v3456
        %3465 = vmatprep.subr.mxu0 0.0
        %3466 = vmatpush1.msra.mxu0 %v3455
        %3467 = vmatprep.subr.mxu0 0.0
        %3468 = vmatpush1.msra.mxu0 %v3454
        %3469 = vmatprep.subr.mxu0 0.0
        %3470 = vmatpush1.msra.mxu0 %v3453
        %3471 = vmatprep.subr.mxu0 0.0
        %3472 = vmatpush1.msra.mxu0 %v3452
        %3473 = vmatprep.subr.mxu0 0.0
        %3474 = vmatpush1.msra.mxu0 %v3451
        %3475 = vmatprep.subr.mxu0 0.0
        %3476 = vmatpush1.msra.mxu0 %v3450
        %3477 = vmatprep.subr.mxu0 0.0
        %3478 = vmatpush1.msra.mxu0 %v3449
        %3479 = vmatprep.subr.mxu0 0.0
        %3480 = vmatpush1.msra.mxu0 %v3448
        %3481 = vmatprep.subr.mxu0 0.0
        %3482 = vmatpush1.msra.mxu0 %v3447
        %3483 = vmatprep.subr.mxu0 0.0
        %3484 = vmatpush1.msra.mxu0 %v3446
        %3485 = vmatprep.subr.mxu0 0.0
        %3486 = vmatpush1.msra.mxu0 %v3445
        %3487 = vmatprep.subr.mxu0 0.0
        %3488 = vmatpush1.msra.mxu0 %v3444
        %3489 = vmatprep.subr.mxu0 0.0
        %3490 = vmatpush1.msra.mxu0 %v3443
        %3491 = vmatprep.subr.mxu0 0.0
        %3492 = vmatpush2.msra.mxu0 0.0
        %3493 = vmatprep.subr.mxu0 0.0
        %3494 = vmatpush2.msra.mxu0 0.0
        %3495 = vmatprep.subr.mxu0 0.0
        %3496 = vmatpush2.msra.mxu0 0.0
        %3497 = vmatprep.subr.mxu0 0.0
        %3498 = vmatpush2.msra.mxu0 0.0
        %3499 = vmatprep.subr.mxu0 0.0
        %3500 = vmatpush2.msra.mxu0 0.0
        %3501 = vmatprep.subr.mxu0 0.0
        %3502 = vmatpush2.msra.mxu0 0.0
        %3503 = vmatprep.subr.mxu0 0.0
        %3504 = vmatpush2.msra.mxu0 0.0
        %3505 = vmatprep.subr.mxu0 0.0
        %3506 = vmatpush2.msra.mxu0 0.0
        %3507 = vmatprep.subr.mxu0 0.0
        %3508 = vmatpush2.msra.mxu0 0.0
        %3509 = vmatprep.subr.mxu0 0.0
        %3510 = vmatpush2.msra.mxu0 0.0
        %3511 = vmatprep.subr.mxu0 0.0
        %3512 = vmatpush2.msra.mxu0 0.0
        %3513 = vmatprep.subr.mxu0 0.0
        %3514 = vmatpush2.msra.mxu0 0.0
        %3515 = vmatprep.subr.mxu0 0.0
        %3516 = vmatpush2.msra.mxu0 0.0
        %3517 = vmatprep.subr.mxu0 0.0
        %3518 = vmatpush2.msra.mxu0 0.0
        %3519 = vmatprep.subr.mxu0 0.0
        %3520 = vmatpush2.msra.mxu0 0.0
        %3521 = vmatprep.subr.mxu0 0.0
        %3522 = vmatpush2.msra.mxu0 0.0
        %3523 = vmatprep.mubr.f32.mxu0 0.0
        %3524 = vmatmul.mubr.f32.gmra.mxu0 %v3441
        %v3525 = vpop.f32.mrf.mxu0
        %v3526 = vadd.f32 0.0, %v3525
        %v3527 = vpop.f32.mrf.mxu0
        %3528 = vdwg.mxu0
        %3529 = vmatprep.subr.mxu0 0.0
        %3530 = vmatpush1.msra.mxu0 %v3440
        %3531 = vmatprep.subr.mxu0 0.0
        %3532 = vmatpush1.msra.mxu0 %v3439
        %3533 = vmatprep.subr.mxu0 0.0
        %3534 = vmatpush1.msra.mxu0 %v3438
        %3535 = vmatprep.subr.mxu0 0.0
        %3536 = vmatpush1.msra.mxu0 %v3437
        %3537 = vmatprep.subr.mxu0 0.0
        %3538 = vmatpush1.msra.mxu0 %v3436
        %3539 = vmatprep.subr.mxu0 0.0
        %3540 = vmatpush1.msra.mxu0 %v3435
        %3541 = vmatprep.subr.mxu0 0.0
        %3542 = vmatpush1.msra.mxu0 %v3434
        %3543 = vmatprep.subr.mxu0 0.0
        %3544 = vmatpush1.msra.mxu0 %v3433
        %3545 = vmatprep.subr.mxu0 0.0
        %3546 = vmatpush1.msra.mxu0 %v3432
        %3547 = vmatprep.subr.mxu0 0.0
        %3548 = vmatpush1.msra.mxu0 %v3431
        %3549 = vmatprep.subr.mxu0 0.0
        %3550 = vmatpush1.msra.mxu0 %v3430
        %3551 = vmatprep.subr.mxu0 0.0
        %3552 = vmatpush1.msra.mxu0 %v3429
        %3553 = vmatprep.subr.mxu0 0.0
        %3554 = vmatpush1.msra.mxu0 %v3428
        %3555 = vmatprep.subr.mxu0 0.0
        %3556 = vmatpush1.msra.mxu0 %v3427
        %3557 = vmatprep.subr.mxu0 0.0
        %3558 = vmatpush1.msra.mxu0 %v3426
        %3559 = vmatprep.subr.mxu0 0.0
        %3560 = vmatpush1.msra.mxu0 %v3425
        %3561 = vmatprep.subr.mxu0 0.0
        %3562 = vmatpush2.msra.mxu0 0.0
        %3563 = vmatprep.subr.mxu0 0.0
        %3564 = vmatpush2.msra.mxu0 0.0
        %3565 = vmatprep.subr.mxu0 0.0
        %3566 = vmatpush2.msra.mxu0 0.0
        %3567 = vmatprep.subr.mxu0 0.0
        %3568 = vmatpush2.msra.mxu0 0.0
        %3569 = vmatprep.subr.mxu0 0.0
        %3570 = vmatpush2.msra.mxu0 0.0
        %3571 = vmatprep.subr.mxu0 0.0
        %3572 = vmatpush2.msra.mxu0 0.0
        %3573 = vmatprep.subr.mxu0 0.0
        %3574 = vmatpush2.msra.mxu0 0.0
        %3575 = vmatprep.subr.mxu0 0.0
        %3576 = vmatpush2.msra.mxu0 0.0
        %3577 = vmatprep.subr.mxu0 0.0
        %3578 = vmatpush2.msra.mxu0 0.0
        %3579 = vmatprep.subr.mxu0 0.0
        %3580 = vmatpush2.msra.mxu0 0.0
        %3581 = vmatprep.subr.mxu0 0.0
        %3582 = vmatpush2.msra.mxu0 0.0
        %3583 = vmatprep.subr.mxu0 0.0
        %3584 = vmatpush2.msra.mxu0 0.0
        %3585 = vmatprep.subr.mxu0 0.0
        %3586 = vmatpush2.msra.mxu0 0.0
        %3587 = vmatprep.subr.mxu0 0.0
        %3588 = vmatpush2.msra.mxu0 0.0
        %3589 = vmatprep.subr.mxu0 0.0
        %3590 = vmatpush2.msra.mxu0 0.0
        %3591 = vmatprep.subr.mxu0 0.0
        %3592 = vmatpush2.msra.mxu0 0.0
        %3593 = vmatprep.mubr.f32.mxu0 0.0
        %3594 = vmatmul.mubr.f32.gmra.mxu0 %v3424
        %v3595 = vpop.f32.mrf.mxu0
        %v3596 = vadd.f32 %v3526, %v3595
        %v3597 = vpop.f32.mrf.mxu0
        %3598 = vdwg.mxu0
        %v3599 = vld [vmem:[#allocation5 + $0x2] sm:$0x3f]
        %s3600 = scalar_lea.vmem %s12, 256
        %v3601 = vld [vmem:[%s3600] sm:$0xff]
        %v3602 = vld [vmem:[%s3600 + $0x8] sm:$0xff]
        %v3603 = vld [vmem:[%s3600 + $0x10] sm:$0xff]
        %v3604 = vld [vmem:[%s3600 + $0x18] sm:$0xff]
        %v3605 = vld [vmem:[%s3600 + $0x20] sm:$0xff]
        %v3606 = vld [vmem:[%s3600 + $0x28] sm:$0xff]
        %v3607 = vld [vmem:[%s3600 + $0x30] sm:$0xff]
        %v3608 = vld [vmem:[%s3600 + $0x38] sm:$0xff]
        %v3609 = vld [vmem:[%s3600 + $0x40] sm:$0xff]
        %v3610 = vld [vmem:[%s3600 + $0x48] sm:$0xff]
        %v3611 = vld [vmem:[%s3600 + $0x50] sm:$0xff]
        %v3612 = vld [vmem:[%s3600 + $0x58] sm:$0xff]
        %v3613 = vld [vmem:[%s3600 + $0x60] sm:$0xff]
        %v3614 = vld [vmem:[%s3600 + $0x68] sm:$0xff]
        %v3615 = vld [vmem:[%s3600 + $0x70] sm:$0xff]
        %v3616 = vld [vmem:[%s3600 + $0x78] sm:$0xff]
        %3617 = vmatprep.subr.mxu0 0.0
        %3618 = vmatpush1.msra.mxu0 %v3616
        %3619 = vmatprep.subr.mxu0 0.0
        %3620 = vmatpush1.msra.mxu0 %v3615
        %3621 = vmatprep.subr.mxu0 0.0
        %3622 = vmatpush1.msra.mxu0 %v3614
        %3623 = vmatprep.subr.mxu0 0.0
        %3624 = vmatpush1.msra.mxu0 %v3613
        %3625 = vmatprep.subr.mxu0 0.0
        %3626 = vmatpush1.msra.mxu0 %v3612
        %3627 = vmatprep.subr.mxu0 0.0
        %3628 = vmatpush1.msra.mxu0 %v3611
        %3629 = vmatprep.subr.mxu0 0.0
        %3630 = vmatpush1.msra.mxu0 %v3610
        %3631 = vmatprep.subr.mxu0 0.0
        %3632 = vmatpush1.msra.mxu0 %v3609
        %3633 = vmatprep.subr.mxu0 0.0
        %3634 = vmatpush1.msra.mxu0 %v3608
        %3635 = vmatprep.subr.mxu0 0.0
        %3636 = vmatpush1.msra.mxu0 %v3607
        %3637 = vmatprep.subr.mxu0 0.0
        %3638 = vmatpush1.msra.mxu0 %v3606
        %3639 = vmatprep.subr.mxu0 0.0
        %3640 = vmatpush1.msra.mxu0 %v3605
        %3641 = vmatprep.subr.mxu0 0.0
        %3642 = vmatpush1.msra.mxu0 %v3604
        %3643 = vmatprep.subr.mxu0 0.0
        %3644 = vmatpush1.msra.mxu0 %v3603
        %3645 = vmatprep.subr.mxu0 0.0
        %3646 = vmatpush1.msra.mxu0 %v3602
        %3647 = vmatprep.subr.mxu0 0.0
        %3648 = vmatpush1.msra.mxu0 %v3601
        %3649 = vmatprep.subr.mxu0 0.0
        %3650 = vmatpush2.msra.mxu0 0.0
        %3651 = vmatprep.subr.mxu0 0.0
        %3652 = vmatpush2.msra.mxu0 0.0
        %3653 = vmatprep.subr.mxu0 0.0
        %3654 = vmatpush2.msra.mxu0 0.0
        %3655 = vmatprep.subr.mxu0 0.0
        %3656 = vmatpush2.msra.mxu0 0.0
        %3657 = vmatprep.subr.mxu0 0.0
        %3658 = vmatpush2.msra.mxu0 0.0
        %3659 = vmatprep.subr.mxu0 0.0
        %3660 = vmatpush2.msra.mxu0 0.0
        %3661 = vmatprep.subr.mxu0 0.0
        %3662 = vmatpush2.msra.mxu0 0.0
        %3663 = vmatprep.subr.mxu0 0.0
        %3664 = vmatpush2.msra.mxu0 0.0
        %3665 = vmatprep.subr.mxu0 0.0
        %3666 = vmatpush2.msra.mxu0 0.0
        %3667 = vmatprep.subr.mxu0 0.0
        %3668 = vmatpush2.msra.mxu0 0.0
        %3669 = vmatprep.subr.mxu0 0.0
        %3670 = vmatpush2.msra.mxu0 0.0
        %3671 = vmatprep.subr.mxu0 0.0
        %3672 = vmatpush2.msra.mxu0 0.0
        %3673 = vmatprep.subr.mxu0 0.0
        %3674 = vmatpush2.msra.mxu0 0.0
        %3675 = vmatprep.subr.mxu0 0.0
        %3676 = vmatpush2.msra.mxu0 0.0
        %3677 = vmatprep.subr.mxu0 0.0
        %3678 = vmatpush2.msra.mxu0 0.0
        %3679 = vmatprep.subr.mxu0 0.0
        %3680 = vmatpush2.msra.mxu0 0.0
        %3681 = vmatprep.mubr.f32.mxu0 0.0
        %3682 = vmatmul.mubr.f32.gmra.mxu0 %v3599
        %v3683 = vpop.f32.mrf.mxu0
        %v3684 = vadd.f32 0.0, %v3683
        %v3685 = vpop.f32.mrf.mxu0
        %3686 = vdwg.mxu0
        %v3687 = vadd.f32 %v3596, %v3684
        %v3688 = vmax.f32 %v3687, 0.0
        %v3689 = vld [vmem:[%s13] sm:$0x1]
        %v3690 = vlaneseq
        %v3691 = vshrl.u32 %v3690, 7
        %v3692 = vsub.s32 0, %v3691
        %v3693 = vrot.slane %v3689, %v3692
        %v3694 = vmul.f32 %v3688, %v3693
        %v3695 = vld [vmem:[%s13 + $0x1] sm:$0x1]
        %v3696 = vlaneseq
        %v3697 = vshrl.u32 %v3696, 7
        %v3698 = vsub.s32 0, %v3697
        %v3699 = vrot.slane %v3695, %v3698
        %v3700 = vadd.f32 %v3694, %v3699
        %v3701 = vld [vmem:[%s14] sm:$0x1]
        %vm3702 = vcmask 48128
        %v3704 = vsel %vm3702, %v3701, 0
        %v3707 = vsel %vm1647, %v3700, 0
        %3709 = vmatprep.subr.mxu0 0.0
        %3710 = vmatpush1.msra.mxu0 0.0
        %3711 = vmatprep.subr.mxu0 0.0
        %3712 = vmatpush1.msra.mxu0 0.0
        %3713 = vmatprep.subr.mxu0 0.0
        %3714 = vmatpush1.msra.mxu0 0.0
        %3715 = vmatprep.subr.mxu0 0.0
        %3716 = vmatpush1.msra.mxu0 0.0
        %3717 = vmatprep.subr.mxu0 0.0
        %3718 = vmatpush1.msra.mxu0 0.0
        %3719 = vmatprep.subr.mxu0 0.0
        %3720 = vmatpush1.msra.mxu0 0.0
        %3721 = vmatprep.subr.mxu0 0.0
        %3722 = vmatpush1.msra.mxu0 0.0
        %3723 = vmatprep.subr.mxu0 0.0
        %3724 = vmatpush1.msra.mxu0 0.0
        %3725 = vmatprep.subr.mxu0 0.0
        %3726 = vmatpush1.msra.mxu0 0.0
        %3727 = vmatprep.subr.mxu0 0.0
        %3728 = vmatpush1.msra.mxu0 0.0
        %3729 = vmatprep.subr.mxu0 0.0
        %3730 = vmatpush1.msra.mxu0 0.0
        %3731 = vmatprep.subr.mxu0 0.0
        %3732 = vmatpush1.msra.mxu0 0.0
        %3733 = vmatprep.subr.mxu0 0.0
        %3734 = vmatpush1.msra.mxu0 0.0
        %3735 = vmatprep.subr.mxu0 0.0
        %3736 = vmatpush1.msra.mxu0 0.0
        %3737 = vmatprep.subr.mxu0 0.0
        %3738 = vmatpush1.msra.mxu0 0.0
        %3739 = vmatprep.subr.mxu0 0.0
        %3740 = vmatpush1.msra.mxu0 %v3707
        %3741 = vmatprep.subr.mxu0 0.0
        %3742 = vmatpush2.msra.mxu0 0.0
        %3743 = vmatprep.subr.mxu0 0.0
        %3744 = vmatpush2.msra.mxu0 0.0
        %3745 = vmatprep.subr.mxu0 0.0
        %3746 = vmatpush2.msra.mxu0 0.0
        %3747 = vmatprep.subr.mxu0 0.0
        %3748 = vmatpush2.msra.mxu0 0.0
        %3749 = vmatprep.subr.mxu0 0.0
        %3750 = vmatpush2.msra.mxu0 0.0
        %3751 = vmatprep.subr.mxu0 0.0
        %3752 = vmatpush2.msra.mxu0 0.0
        %3753 = vmatprep.subr.mxu0 0.0
        %3754 = vmatpush2.msra.mxu0 0.0
        %3755 = vmatprep.subr.mxu0 0.0
        %3756 = vmatpush2.msra.mxu0 0.0
        %3757 = vmatprep.subr.mxu0 0.0
        %3758 = vmatpush2.msra.mxu0 0.0
        %3759 = vmatprep.subr.mxu0 0.0
        %3760 = vmatpush2.msra.mxu0 0.0
        %3761 = vmatprep.subr.mxu0 0.0
        %3762 = vmatpush2.msra.mxu0 0.0
        %3763 = vmatprep.subr.mxu0 0.0
        %3764 = vmatpush2.msra.mxu0 0.0
        %3765 = vmatprep.subr.mxu0 0.0
        %3766 = vmatpush2.msra.mxu0 0.0
        %3767 = vmatprep.subr.mxu0 0.0
        %3768 = vmatpush2.msra.mxu0 0.0
        %3769 = vmatprep.subr.mxu0 0.0
        %3770 = vmatpush2.msra.mxu0 0.0
        %3771 = vmatprep.subr.mxu0 0.0
        %3772 = vmatpush2.msra.mxu0 0.0
        %3773 = vmatprep.mubr.f32.mxu0 0.0
        %3774 = vmatmul.mubr.f32.gmra.mxu0 %v3704
        %v3775 = vpop.f32.mrf.mxu0
        %v3776 = vadd.f32 0.0, %v3775
        %v3777 = vpop.f32.mrf.mxu0
        %3778 = vdwg.mxu0
        %v3779 = vld [vmem:[%s15] sm:$0xff]
        %v3780 = vld [vmem:[%s15 + $0x8] sm:$0xff]
        %v3781 = vld [vmem:[%s15 + $0x10] sm:$0xff]
        %v3782 = vld [vmem:[%s15 + $0x18] sm:$0xff]
        %v3783 = vld [vmem:[%s15 + $0x20] sm:$0xff]
        %v3784 = vld [vmem:[%s15 + $0x28] sm:$0xff]
        %v3785 = vld [vmem:[%s15 + $0x30] sm:$0xff]
        %v3786 = vld [vmem:[%s15 + $0x38] sm:$0xff]
        %v3787 = vld [vmem:[%s15 + $0x40] sm:$0xff]
        %v3788 = vld [vmem:[%s15 + $0x48] sm:$0xff]
        %v3789 = vld [vmem:[%s15 + $0x50] sm:$0xff]
        %v3790 = vld [vmem:[%s15 + $0x58] sm:$0xff]
        %v3792 = vsel %vm2718, %v3776, 0
        %3794 = vmatprep.subr.mxu0 0.0
        %3795 = vmatpush1.msra.mxu0 0.0
        %3796 = vmatprep.subr.mxu0 0.0
        %3797 = vmatpush1.msra.mxu0 0.0
        %3798 = vmatprep.subr.mxu0 0.0
        %3799 = vmatpush1.msra.mxu0 0.0
        %3800 = vmatprep.subr.mxu0 0.0
        %3801 = vmatpush1.msra.mxu0 0.0
        %3802 = vmatprep.subr.mxu0 0.0
        %3803 = vmatpush1.msra.mxu0 %v3790
        %3804 = vmatprep.subr.mxu0 0.0
        %3805 = vmatpush1.msra.mxu0 %v3789
        %3806 = vmatprep.subr.mxu0 0.0
        %3807 = vmatpush1.msra.mxu0 %v3788
        %3808 = vmatprep.subr.mxu0 0.0
        %3809 = vmatpush1.msra.mxu0 %v3787
        %3810 = vmatprep.subr.mxu0 0.0
        %3811 = vmatpush1.msra.mxu0 %v3786
        %3812 = vmatprep.subr.mxu0 0.0
        %3813 = vmatpush1.msra.mxu0 %v3785
        %3814 = vmatprep.subr.mxu0 0.0
        %3815 = vmatpush1.msra.mxu0 %v3784
        %3816 = vmatprep.subr.mxu0 0.0
        %3817 = vmatpush1.msra.mxu0 %v3783
        %3818 = vmatprep.subr.mxu0 0.0
        %3819 = vmatpush1.msra.mxu0 %v3782
        %3820 = vmatprep.subr.mxu0 0.0
        %3821 = vmatpush1.msra.mxu0 %v3781
        %3822 = vmatprep.subr.mxu0 0.0
        %3823 = vmatpush1.msra.mxu0 %v3780
        %3824 = vmatprep.subr.mxu0 0.0
        %3825 = vmatpush1.msra.mxu0 %v3779
        %3826 = vmatprep.subr.mxu0 0.0
        %3827 = vmatpush2.msra.mxu0 0.0
        %3828 = vmatprep.subr.mxu0 0.0
        %3829 = vmatpush2.msra.mxu0 0.0
        %3830 = vmatprep.subr.mxu0 0.0
        %3831 = vmatpush2.msra.mxu0 0.0
        %3832 = vmatprep.subr.mxu0 0.0
        %3833 = vmatpush2.msra.mxu0 0.0
        %3834 = vmatprep.subr.mxu0 0.0
        %3835 = vmatpush2.msra.mxu0 0.0
        %3836 = vmatprep.subr.mxu0 0.0
        %3837 = vmatpush2.msra.mxu0 0.0
        %3838 = vmatprep.subr.mxu0 0.0
        %3839 = vmatpush2.msra.mxu0 0.0
        %3840 = vmatprep.subr.mxu0 0.0
        %3841 = vmatpush2.msra.mxu0 0.0
        %3842 = vmatprep.subr.mxu0 0.0
        %3843 = vmatpush2.msra.mxu0 0.0
        %3844 = vmatprep.subr.mxu0 0.0
        %3845 = vmatpush2.msra.mxu0 0.0
        %3846 = vmatprep.subr.mxu0 0.0
        %3847 = vmatpush2.msra.mxu0 0.0
        %3848 = vmatprep.subr.mxu0 0.0
        %3849 = vmatpush2.msra.mxu0 0.0
        %3850 = vmatprep.subr.mxu0 0.0
        %3851 = vmatpush2.msra.mxu0 0.0
        %3852 = vmatprep.subr.mxu0 0.0
        %3853 = vmatpush2.msra.mxu0 0.0
        %3854 = vmatprep.subr.mxu0 0.0
        %3855 = vmatpush2.msra.mxu0 0.0
        %3856 = vmatprep.subr.mxu0 0.0
        %3857 = vmatpush2.msra.mxu0 0.0
        %3858 = vmatprep.mubr.f32.mxu0 0.0
        %3859 = vmatmul.mubr.f32.gmra.mxu0 %v3792
        %v3860 = vpop.f32.mrf.mxu0
        %v3861 = vadd.f32 0.0, %v3860
        %v3862 = vpop.f32.mrf.mxu0
        %3863 = vdwg.mxu0
        %v3864 = vld [vmem:[%s16] sm:$0xff]
        %v3865 = vld [vmem:[%s16 + $0x8] sm:$0xff]
        %vm3866 = vcmask 130048
        %v3868 = vsel %vm3866, %v3861, 0
        %3870 = vmatprep.subr.mxu0 0.0
        %3871 = vmatpush1.msra.mxu0 0.0
        %3872 = vmatprep.subr.mxu0 0.0
        %3873 = vmatpush1.msra.mxu0 0.0
        %3874 = vmatprep.subr.mxu0 0.0
        %3875 = vmatpush1.msra.mxu0 0.0
        %3876 = vmatprep.subr.mxu0 0.0
        %3877 = vmatpush1.msra.mxu0 0.0
        %3878 = vmatprep.subr.mxu0 0.0
        %3879 = vmatpush1.msra.mxu0 0.0
        %3880 = vmatprep.subr.mxu0 0.0
        %3881 = vmatpush1.msra.mxu0 0.0
        %3882 = vmatprep.subr.mxu0 0.0
        %3883 = vmatpush1.msra.mxu0 0.0
        %3884 = vmatprep.subr.mxu0 0.0
        %3885 = vmatpush1.msra.mxu0 0.0
        %3886 = vmatprep.subr.mxu0 0.0
        %3887 = vmatpush1.msra.mxu0 0.0
        %3888 = vmatprep.subr.mxu0 0.0
        %3889 = vmatpush1.msra.mxu0 0.0
        %3890 = vmatprep.subr.mxu0 0.0
        %3891 = vmatpush1.msra.mxu0 0.0
        %3892 = vmatprep.subr.mxu0 0.0
        %3893 = vmatpush1.msra.mxu0 0.0
        %3894 = vmatprep.subr.mxu0 0.0
        %3895 = vmatpush1.msra.mxu0 0.0
        %3896 = vmatprep.subr.mxu0 0.0
        %3897 = vmatpush1.msra.mxu0 0.0
        %3898 = vmatprep.subr.mxu0 0.0
        %3899 = vmatpush1.msra.mxu0 %v3865
        %3900 = vmatprep.subr.mxu0 0.0
        %3901 = vmatpush1.msra.mxu0 %v3864
        %3902 = vmatprep.subr.mxu0 0.0
        %3903 = vmatpush2.msra.mxu0 0.0
        %3904 = vmatprep.subr.mxu0 0.0
        %3905 = vmatpush2.msra.mxu0 0.0
        %3906 = vmatprep.subr.mxu0 0.0
        %3907 = vmatpush2.msra.mxu0 0.0
        %3908 = vmatprep.subr.mxu0 0.0
        %3909 = vmatpush2.msra.mxu0 0.0
        %3910 = vmatprep.subr.mxu0 0.0
        %3911 = vmatpush2.msra.mxu0 0.0
        %3912 = vmatprep.subr.mxu0 0.0
        %3913 = vmatpush2.msra.mxu0 0.0
        %3914 = vmatprep.subr.mxu0 0.0
        %3915 = vmatpush2.msra.mxu0 0.0
        %3916 = vmatprep.subr.mxu0 0.0
        %3917 = vmatpush2.msra.mxu0 0.0
        %3918 = vmatprep.subr.mxu0 0.0
        %3919 = vmatpush2.msra.mxu0 0.0
        %3920 = vmatprep.subr.mxu0 0.0
        %3921 = vmatpush2.msra.mxu0 0.0
        %3922 = vmatprep.subr.mxu0 0.0
        %3923 = vmatpush2.msra.mxu0 0.0
        %3924 = vmatprep.subr.mxu0 0.0
        %3925 = vmatpush2.msra.mxu0 0.0
        %3926 = vmatprep.subr.mxu0 0.0
        %3927 = vmatpush2.msra.mxu0 0.0
        %3928 = vmatprep.subr.mxu0 0.0
        %3929 = vmatpush2.msra.mxu0 0.0
        %3930 = vmatprep.subr.mxu0 0.0
        %3931 = vmatpush2.msra.mxu0 0.0
        %3932 = vmatprep.subr.mxu0 0.0
        %3933 = vmatpush2.msra.mxu0 0.0
        %3934 = vmatprep.mubr.f32.mxu0 0.0
        %3935 = vmatmul.mubr.f32.gmra.mxu0 %v3868
        %v3936 = vpop.f32.mrf.mxu0
        %v3937 = vadd.f32 0.0, %v3936
        %v3938 = vpop.f32.mrf.mxu0
        %3939 = vdwg.mxu0
        %v3940 = vmax.f32 %v3937, 0.0
        %v3941 = vld [vmem:[%s17] sm:$0x1]
        %v3942 = vmul.f32 %v3940, %v3941
        %v3943 = vld [vmem:[%s17 + $0x1] sm:$0x1]
        %v3944 = vadd.f32 %v3942, %v3943
        %v3945 = vld [vmem:[%s18] sm:$0xff]
        %v3946 = vld [vmem:[%s18 + $0x8] sm:$0xff]
        %v3948 = vsel %vm3866, %v3944, 0
        %3950 = vmatprep.subr.mxu0 0.0
        %3951 = vmatpush1.msra.mxu0 0.0
        %3952 = vmatprep.subr.mxu0 0.0
        %3953 = vmatpush1.msra.mxu0 0.0
        %3954 = vmatprep.subr.mxu0 0.0
        %3955 = vmatpush1.msra.mxu0 0.0
        %3956 = vmatprep.subr.mxu0 0.0
        %3957 = vmatpush1.msra.mxu0 0.0
        %3958 = vmatprep.subr.mxu0 0.0
        %3959 = vmatpush1.msra.mxu0 0.0
        %3960 = vmatprep.subr.mxu0 0.0
        %3961 = vmatpush1.msra.mxu0 0.0
        %3962 = vmatprep.subr.mxu0 0.0
        %3963 = vmatpush1.msra.mxu0 0.0
        %3964 = vmatprep.subr.mxu0 0.0
        %3965 = vmatpush1.msra.mxu0 0.0
        %3966 = vmatprep.subr.mxu0 0.0
        %3967 = vmatpush1.msra.mxu0 0.0
        %3968 = vmatprep.subr.mxu0 0.0
        %3969 = vmatpush1.msra.mxu0 0.0
        %3970 = vmatprep.subr.mxu0 0.0
        %3971 = vmatpush1.msra.mxu0 0.0
        %3972 = vmatprep.subr.mxu0 0.0
        %3973 = vmatpush1.msra.mxu0 0.0
        %3974 = vmatprep.subr.mxu0 0.0
        %3975 = vmatpush1.msra.mxu0 0.0
        %3976 = vmatprep.subr.mxu0 0.0
        %3977 = vmatpush1.msra.mxu0 0.0
        %3978 = vmatprep.subr.mxu0 0.0
        %3979 = vmatpush1.msra.mxu0 %v3946
        %3980 = vmatprep.subr.mxu0 0.0
        %3981 = vmatpush1.msra.mxu0 %v3945
        %3982 = vmatprep.subr.mxu0 0.0
        %3983 = vmatpush2.msra.mxu0 0.0
        %3984 = vmatprep.subr.mxu0 0.0
        %3985 = vmatpush2.msra.mxu0 0.0
        %3986 = vmatprep.subr.mxu0 0.0
        %3987 = vmatpush2.msra.mxu0 0.0
        %3988 = vmatprep.subr.mxu0 0.0
        %3989 = vmatpush2.msra.mxu0 0.0
        %3990 = vmatprep.subr.mxu0 0.0
        %3991 = vmatpush2.msra.mxu0 0.0
        %3992 = vmatprep.subr.mxu0 0.0
        %3993 = vmatpush2.msra.mxu0 0.0
        %3994 = vmatprep.subr.mxu0 0.0
        %3995 = vmatpush2.msra.mxu0 0.0
        %3996 = vmatprep.subr.mxu0 0.0
        %3997 = vmatpush2.msra.mxu0 0.0
        %3998 = vmatprep.subr.mxu0 0.0
        %3999 = vmatpush2.msra.mxu0 0.0
        %4000 = vmatprep.subr.mxu0 0.0
        %4001 = vmatpush2.msra.mxu0 0.0
        %4002 = vmatprep.subr.mxu0 0.0
        %4003 = vmatpush2.msra.mxu0 0.0
        %4004 = vmatprep.subr.mxu0 0.0
        %4005 = vmatpush2.msra.mxu0 0.0
        %4006 = vmatprep.subr.mxu0 0.0
        %4007 = vmatpush2.msra.mxu0 0.0
        %4008 = vmatprep.subr.mxu0 0.0
        %4009 = vmatpush2.msra.mxu0 0.0
        %4010 = vmatprep.subr.mxu0 0.0
        %4011 = vmatpush2.msra.mxu0 0.0
        %4012 = vmatprep.subr.mxu0 0.0
        %4013 = vmatpush2.msra.mxu0 0.0
        %4014 = vmatprep.mubr.f32.mxu0 0.0
        %4015 = vmatmul.mubr.f32.gmra.mxu0 %v3948
        %v4016 = vpop.f32.mrf.mxu0
        %v4017 = vadd.f32 0.0, %v4016
        %v4018 = vpop.f32.mrf.mxu0
        %4019 = vdwg.mxu0
        %vm4020 = vcmask 73728
        %v4021 = vsel %vm4020, %v4017, -inf
        %4022 = vmax.xlane.f32.xlu0 %v4021
        %v4023 = vpop.xlane.xlu0 %4022
        %v4024 = vsub.f32 %v4017, %v4023
        %v4025 = vmul.f32 %v4024, 1.442695
        %v4026 = vpow.pop %v4025
        %v4027 = vsel %vm4020, %v4026, 0.0
        %4028 = vadd.xlane.f32.xlu0 %v4027
        %v4029 = vpop.xlane.xlu0 %4028
        %v4030 = vlog2.pop %v4029
        %v4031 = vmul.f32 %v4030, 0.6931472
        %v4032 = vsub.f32 %v4024, %v4031
        %4033 = vst.msk [vmem:[%s594] sm:$0x1] %vm4020, %v4032
        %s4034 = sand.u32 %s445, 1
        %s4035 = scalar_lea.sflag [#allocation7], %s4034
        %s4036 = sand.u32 %s445, 1
        %s4037 = scalar_lea.vmem [#allocation6], %s4036
        // Predicated region
        $region97: #{net_forward.1} parent=95 // pred_check
          %p4038 = pneg %p455
        $region98: #{net_forward.1} parent=95 // pred_check_branch
          %4040 = sbr.rel (%p4038) target = $region100
        $region99: #{net_forward.1} parent=95 // pred_region
          %s4042 = ssub.s32 16, 16
          %4043 = vsyncadd %s4035, %s4042
          %s4044 = smul.addr %s33, 16
          %s4045 = scalar_lea.hbm %s19, %s4044
          %s4047 = sshll.u32 %s4037, 4
          %s4048 = int_to_ptr.vmem [resolvable:$true] %s4047
          %4050 = dma.vmem_to_hbm [thread:$0]  %s4048, 16, %s4045, %s4035
        $region100: #{net_forward.1} parent=95 // pred_fallthru
          _
      $region96: #{net_forward.1} parent=5 // pred_fallthru
        _
      %p4051 = scmp.le.s32.totalorder 2, %s28
      // Predicated region
      $region101: #{net_forward.1} parent=5 // pred_check
        %p4052 = pneg %p4051
      $region102: #{net_forward.1} parent=5 // pred_check_branch
        %4054 = sbr.rel (%p4052) target = $region104
      $region103: #{net_forward.1} parent=5 // pred_region
        %s4055 = ssub.s32 %s28, 2
        // Predicated region
        $region105: #{net_forward.1} parent=103 // pred_check
          %p4056 = pneg %p461
        $region106: #{net_forward.1} parent=103 // pred_check_branch
          %4058 = sbr.rel (%p4056) target = $region108
        $region107: #{net_forward.1} parent=103 // pred_region
          %s4059 = sand.u32 %s446, 1
          %s4060 = scalar_lea.sflag [#allocation7], %s4059
          %s4061 = sand.u32 %s446, 1
          %s4062 = scalar_lea.vmem [#allocation6], %s4061
          %4063 = dma.done %s4060, 16
        $region108: #{net_forward.1} parent=103 // pred_fallthru
          _
      $region104: #{net_forward.1} parent=5 // pred_fallthru
        _
    $region6: #{net_forward.1} parent=1 // loop_footer
      %s32 = sadd.s32 1, %s28
    $region7: #{net_forward.1} parent=1 // loop_footer_branch
      %27 = sbr.rel target = $region3
    $region8: #{net_forward.1} parent=1 // loop_exit
      _
    %4064 = vsyncpa [#allocation7], 1
    %s4065 = scalar_lea.sflag [#allocation7], 1
    %4066 = vsyncpa %s4065, 1

</llo_original>
